<compile_context>
chip_gen: v7x
topology: tpu7x:2x2x1
jax: 0.10.0
libtpu: 0.0.40
codegen_flags: <defaults>
</compile_context>

<pallas_src>
import functools

import jax
import jax.numpy as jnp
from jax.experimental import pallas as pl
from jax.experimental.pallas import tpu as pltpu

INPUT_DIM = 162   # LSTM input feature size
HIDDEN = 128      # LSTM hidden size
X_DIM = 484       # extra features concatenated after the LSTM
MLP_DIM = 512

# Packed bias-array row layout (all rows length 512 == 4*HIDDEN == MLP_DIM):
#   row 0: b_lstm (b_ih + b_hh)   rows 1..5: b1..b5
#   row 6: dense6 weight (as a row)   row 7: [b6, 0, 0, ...]


# ----------------------------------------------------------------------------
# Fused LSTM + MLP + argmax kernel
# ----------------------------------------------------------------------------
def _fused_kernel(
    # auto-pipelined VMEM inputs (small; fetched before the body runs)
    z_ref, x_ref, w_ih_ref, w_hh_ref, bias_ref,
    # big MLP weights left in HBM; copied manually so DMA overlaps the LSTM
    w1h_hbm, w1x_hbm, w2_hbm, w3_hbm, w4_hbm, w5_hbm,
    # outputs
    values_ref, action_ref,
    # scratch
    w1h_v, w1x_v, w2_v, w3_v, w4_v, w5_v, dma_sems,
):
    T, B, _ = z_ref.shape  # z is time-major: [T, B, 162]

    # Kick off HBM->VMEM copies of the dense-layer weights immediately so they
    # stream in while the serial LSTM recurrence runs.  w1_x first (needed
    # first), then w1_h, then w2..w5.
    copies = []
    for i, (src, dst) in enumerate((
            (w1x_hbm, w1x_v), (w1h_hbm, w1h_v),
            (w2_hbm, w2_v), (w3_hbm, w3_v), (w4_hbm, w4_v), (w5_hbm, w5_v))):
        cp = pltpu.make_async_copy(src, dst, dma_sems.at[i])
        cp.start()
        copies.append(cp)

    bias = bias_ref[...]          # [8, 512] f32 (one packed DMA)
    b_lstm = bias[0:1, :]

    # ------------- LSTM input projection, hoisted over time ----------------
    # One [T*B,162]x[162,512] matmul; time-major so per-step slices below are
    # contiguous sublane slabs (no strided gather in the serial chain).
    w_ih = w_ih_ref[...]
    z_flat = z_ref[...].reshape(T * B, INPUT_DIM).astype(w_ih.dtype)
    gx = jnp.dot(z_flat, w_ih, preferred_element_type=jnp.float32) + b_lstm

    # ------------- dense1, x-path (independent of h) ------------------------
    # Issued before the recurrence so its MXU work interleaves with the
    # EUP/VALU-bound LSTM chain; w1_x (~0.5 MB, first in DMA order) has
    # typically landed by the time the gx matmul retires on v6e/v7x.
    copies[0].wait()   # w1_x
    a1x = jnp.dot(x_ref[...].astype(w1x_v.dtype), w1x_v[...],
                  preferred_element_type=jnp.float32)

    # ------------- LSTM recurrence (T small & static -> unrolled) -----------
    h = jnp.zeros((B, HIDDEN), jnp.float32)
    c = jnp.zeros((B, HIDDEN), jnp.float32)
    w_hh = w_hh_ref[...]
    for t in range(T):
        gates = gx[t * B:(t + 1) * B, :] + jnp.dot(
            h.astype(w_hh.dtype), w_hh, preferred_element_type=jnp.float32)
        # PyTorch gate order: i, f, g, o  (128-lane aligned slices)
        i_g = jax.nn.sigmoid(gates[:, 0 * HIDDEN:1 * HIDDEN])
        f_g = jax.nn.sigmoid(gates[:, 1 * HIDDEN:2 * HIDDEN])
        g_g = jnp.tanh(gates[:, 2 * HIDDEN:3 * HIDDEN])
        o_g = jax.nn.sigmoid(gates[:, 3 * HIDDEN:4 * HIDDEN])
        c = f_g * c + i_g * g_g
        h = o_g * jnp.tanh(c)

    # ------------- dense1, h-path + bias + ReLU -----------------------------
    copies[1].wait()   # w1_h
    a1 = a1x + jnp.dot(h.astype(w1h_v.dtype), w1h_v[...],
                       preferred_element_type=jnp.float32)
    act = jnp.maximum(a1 + bias[1:2, :], 0.0)

    # ------------- dense2 .. dense5 (wait each weight just-in-time) ---------
    for idx, (cp, w_v) in enumerate(((copies[2], w2_v), (copies[3], w3_v),
                                     (copies[4], w4_v), (copies[5], w5_v))):
        cp.wait()
        act = jnp.maximum(
            jnp.dot(act.astype(w_v.dtype), w_v[...],
                    preferred_element_type=jnp.float32)
            + bias[2 + idx:3 + idx, :], 0.0)

    # ------------- dense6 (512 -> 1) as multiply + lane reduction -----------
    v = jnp.sum(act * bias[6:7, :], axis=-1, keepdims=True) + bias[7:8, 0:1]
    values_ref[...] = v

    # ------------- greedy argmax over the batch, fused in-kernel ------------
    ids = jax.lax.broadcasted_iota(jnp.int32, (B, 1), 0).astype(jnp.float32)
    maxv = jnp.max(v, axis=0, keepdims=True)                       # [1, 1]
    masked = jnp.where(v >= maxv, ids, float(B))                   # first max
    action = jnp.min(masked, axis=0, keepdims=True)                # [1, 1]
    action_ref[...] = action.astype(jnp.int32)


def _fused_forward(params, z, x):
    """z: [B, T, 162] batch-first (PyTorch layout), x: [B, 484].
    Returns (values [B,1] f32, action [1,1] i32)."""
    B, T, _ = z.shape
    # Free ~20 KB relayout so the in-kernel recurrence is time-major.
    z_tm = jnp.swapaxes(z, 0, 1)                                   # [T, B, 162]

    vmem = pl.BlockSpec(memory_space=pltpu.MemorySpace.VMEM)
    hbm = pl.BlockSpec(memory_space=pl.ANY)

    weight_keys = ("w_ih", "w_hh", "w1_h", "w1_x", "w2", "w3", "w4", "w5",
                   "biases")
    weight_bytes = sum(int(params[k].size) * params[k].dtype.itemsize
                       for k in weight_keys)
    flops = 2 * (T * B * INPUT_DIM * 4 * HIDDEN        # input projection
                 + T * B * HIDDEN * 4 * HIDDEN         # recurrence
                 + B * (X_DIM + HIDDEN) * MLP_DIM      # dense1
                 + 4 * B * MLP_DIM * MLP_DIM           # dense2..5
                 + B * MLP_DIM)                        # dense6
    transcendentals = T * B * 5 * HIDDEN               # 3 sigmoid + 2 tanh
    bytes_accessed = (weight_bytes + int(z.size) * 4 + int(x.size) * 4
                      + B * 4 + 4)

    values, action = pl.pallas_call(
        _fused_kernel,
        out_shape=(jax.ShapeDtypeStruct((B, 1), jnp.float32),
                   jax.ShapeDtypeStruct((1, 1), jnp.int32)),
        in_specs=[vmem] * 5 + [hbm] * 6,
        out_specs=(vmem, vmem),
        scratch_shapes=[
            pltpu.VMEM(params["w1_h"].shape, params["w1_h"].dtype),
            pltpu.VMEM(params["w1_x"].shape, params["w1_x"].dtype),
            pltpu.VMEM(params["w2"].shape, params["w2"].dtype),
            pltpu.VMEM(params["w3"].shape, params["w3"].dtype),
            pltpu.VMEM(params["w4"].shape, params["w4"].dtype),
            pltpu.VMEM(params["w5"].shape, params["w5"].dtype),
            pltpu.SemaphoreType.DMA((6,)),
        ],
        cost_estimate=pl.CostEstimate(flops=int(flops),
                                      transcendentals=int(transcendentals),
                                      bytes_accessed=int(bytes_accessed)),
    )(z_tm, x,
      params["w_ih"], params["w_hh"], params["biases"],
      params["w1_h"], params["w1_x"],
      params["w2"], params["w3"], params["w4"], params["w5"])
    return values, action


# ----------------------------------------------------------------------------
# Parameter construction (deterministic, PyTorch-style uniform init)
# ----------------------------------------------------------------------------
def init_params(key, weight_dtype=jnp.bfloat16):
    """Weights stored [in_features, out_features] (transpose of PyTorch);
    matmul weights are cast to `weight_dtype` (bf16 default, f32 accumulate);
    packed biases stay float32.  Use weight_dtype=jnp.float32 for f32 parity."""
    keys = iter(jax.random.split(key, 24))

    def uni(shape, fan_in):
        bound = 1.0 / float(fan_in) ** 0.5
        return jax.random.uniform(next(keys), shape, jnp.float32, -bound, bound)

    p = {}
    # LSTM: PyTorch weight_ih [4H,162], weight_hh [4H,H], biases b_ih + b_hh.
    p["w_ih"] = uni((INPUT_DIM, 4 * HIDDEN), HIDDEN).astype(weight_dtype)
    p["w_hh"] = uni((HIDDEN, 4 * HIDDEN), HIDDEN).astype(weight_dtype)
    b_lstm = uni((4 * HIDDEN,), HIDDEN) + uni((4 * HIDDEN,), HIDDEN)

    # dense1 (612 -> 512), split so the kernel never materializes concat.
    fan1 = X_DIM + HIDDEN
    p["w1_h"] = uni((HIDDEN, MLP_DIM), fan1).astype(weight_dtype)
    p["w1_x"] = uni((X_DIM, MLP_DIM), fan1).astype(weight_dtype)
    b1 = uni((MLP_DIM,), fan1)
    bs = [b_lstm, b1]
    for i in range(2, 6):
        p[f"w{i}"] = uni((MLP_DIM, MLP_DIM), MLP_DIM).astype(weight_dtype)
        bs.append(uni((MLP_DIM,), MLP_DIM))
    # dense6 (512 -> 1): weight stored as a row (mul + lane-reduce in kernel).
    w6 = uni((MLP_DIM,), MLP_DIM)
    b6 = uni((1,), MLP_DIM)
    b6_row = jnp.zeros((MLP_DIM,), jnp.float32).at[0].set(b6[0])
    bs += [w6, b6_row]
    # One packed [8,512] f32 array -> a single tiny auto-DMA in the kernel.
    p["biases"] = jnp.stack(bs, axis=0)
    return p


# ----------------------------------------------------------------------------
# Full forward pass
# ----------------------------------------------------------------------------
@functools.partial(jax.jit, static_argnames=("return_value",))
def farmer_lstm_forward(params, z, x, return_value=False):
    """z: [B, T, 162] (batch-first, like PyTorch), x: [B, 484]."""
    values, action = _fused_forward(params, z, x)
    if return_value:
        return dict(values=values)
    # TODO(synk): epsilon-greedy exploration branch uses host-side RNG
    # (np.random / torch.randint); only the greedy argmax path is implemented.
    return dict(action=action[0, 0])


# Pure-jnp reference (same bf16 weight/activation casts) for a sanity check.
def _reference_forward(params, z, x):
    def mm(a, w):
        return jnp.dot(a.astype(w.dtype), w, preferred_element_type=jnp.float32)

    bias = params["biases"]
    b_lstm, b1 = bias[0:1, :], bias[1:2, :]
    w6, b6 = bias[6:7, :], bias[7:8, 0:1]

    B, T, _ = z.shape
    h = jnp.zeros((B, HIDDEN), jnp.float32)
    c = jnp.zeros((B, HIDDEN), jnp.float32)
    for t in range(T):
        g = mm(z[:, t, :], params["w_ih"]) + b_lstm + mm(h, params["w_hh"])
        i_g = jax.nn.sigmoid(g[:, :HIDDEN])
        f_g = jax.nn.sigmoid(g[:, HIDDEN:2 * HIDDEN])
        g_g = jnp.tanh(g[:, 2 * HIDDEN:3 * HIDDEN])
        o_g = jax.nn.sigmoid(g[:, 3 * HIDDEN:])
        c = f_g * c + i_g * g_g
        h = o_g * jnp.tanh(c)
    act = jnp.maximum(mm(h, params["w1_h"]) + mm(x, params["w1_x"]) + b1, 0.0)
    for i in range(2, 6):
        act = jnp.maximum(mm(act, params[f"w{i}"]) + bias[i:i + 1, :], 0.0)
    return jnp.sum(act * w6, axis=-1, keepdims=True) + b6


if __name__ == "__main__":
    key = jax.random.PRNGKey(0)
    pkey, zkey, xkey = jax.random.split(key, 3)

    params = init_params(pkey)

    B, T = 8, 8   # B = one full f32 sublane tile (per perf review)
    z = jax.random.normal(zkey, (B, T, INPUT_DIM), jnp.float32)
    x = jax.random.normal(xkey, (B, X_DIM), jnp.float32)

    out_val = farmer_lstm_forward(params, z, x, return_value=True)
    values = jax.block_until_ready(out_val["values"])
    out_act = farmer_lstm_forward(params, z, x, return_value=False)
    action = jax.block_until_ready(out_act["action"])

    assert values.shape == (B, 1)
    assert action.shape == ()
    # In-kernel fused argmax must agree with argmax over the kernel's values.
    assert int(action) == int(jnp.argmax(values[:, 0]))

    ref = _reference_forward(params, z, x)
    max_err = float(jnp.max(jnp.abs(values - ref)))
    assert max_err < 2e-2, f"kernel/reference mismatch: max abs err {max_err}"

    print("KERNEL_OK")
</pallas_src>

<mosaic_0001>
module attributes {stable_mosaic.version = 11 : i64} {
  func.func @_fused_kernel(%arg0: memref<8x8x162xf32, #tpu.memory_space<vmem>>, %arg1: memref<8x484xf32, #tpu.memory_space<vmem>>, %arg2: memref<162x512xbf16, #tpu.memory_space<vmem>>, %arg3: memref<128x512xbf16, #tpu.memory_space<vmem>>, %arg4: memref<8x512xf32, #tpu.memory_space<vmem>>, %arg5: memref<128x512xbf16, #tpu.memory_space<any>>, %arg6: memref<484x512xbf16, #tpu.memory_space<any>>, %arg7: memref<512x512xbf16, #tpu.memory_space<any>>, %arg8: memref<512x512xbf16, #tpu.memory_space<any>>, %arg9: memref<512x512xbf16, #tpu.memory_space<any>>, %arg10: memref<512x512xbf16, #tpu.memory_space<any>>, %arg11: memref<8x1xf32, #tpu.memory_space<vmem>>, %arg12: memref<1x1xi32, #tpu.memory_space<vmem>>, %arg13: memref<128x512xbf16, #tpu.memory_space<vmem>>, %arg14: memref<484x512xbf16, #tpu.memory_space<vmem>>, %arg15: memref<512x512xbf16, #tpu.memory_space<vmem>>, %arg16: memref<512x512xbf16, #tpu.memory_space<vmem>>, %arg17: memref<512x512xbf16, #tpu.memory_space<vmem>>, %arg18: memref<512x512xbf16, #tpu.memory_space<vmem>>, %arg19: memref<6x!tpu.dma_semaphore, #tpu.memory_space<semaphore_mem>>) attributes {dimension_semantics = [], scalar_prefetch = 0 : i64, scratch_operands = 7 : i64, tpu.core_type = #tpu.core_type<tc>} {
    %c0_i32 = arith.constant 0 : i32
    %0 = tpu.memref_slice %arg19[%c0_i32] : memref<6x!tpu.dma_semaphore, #tpu.memory_space<semaphore_mem>> -> memref<1x!tpu.dma_semaphore, #tpu.memory_space<semaphore_mem>>
    %1 = tpu.memref_squeeze %0 : memref<1x!tpu.dma_semaphore, #tpu.memory_space<semaphore_mem>> -> memref<!tpu.dma_semaphore, #tpu.memory_space<semaphore_mem>>
    tpu.enqueue_dma source(%arg6 : memref<484x512xbf16, #tpu.memory_space<any>>) target(%arg14 : memref<484x512xbf16, #tpu.memory_space<vmem>>) target_semaphore(%1 : memref<!tpu.dma_semaphore, #tpu.memory_space<semaphore_mem>>)
    %c1_i32 = arith.constant 1 : i32
    %2 = tpu.memref_slice %arg19[%c1_i32] : memref<6x!tpu.dma_semaphore, #tpu.memory_space<semaphore_mem>> -> memref<1x!tpu.dma_semaphore, #tpu.memory_space<semaphore_mem>>
    %3 = tpu.memref_squeeze %2 : memref<1x!tpu.dma_semaphore, #tpu.memory_space<semaphore_mem>> -> memref<!tpu.dma_semaphore, #tpu.memory_space<semaphore_mem>>
    tpu.enqueue_dma source(%arg5 : memref<128x512xbf16, #tpu.memory_space<any>>) target(%arg13 : memref<128x512xbf16, #tpu.memory_space<vmem>>) target_semaphore(%3 : memref<!tpu.dma_semaphore, #tpu.memory_space<semaphore_mem>>)
    %c2_i32 = arith.constant 2 : i32
    %4 = tpu.memref_slice %arg19[%c2_i32] : memref<6x!tpu.dma_semaphore, #tpu.memory_space<semaphore_mem>> -> memref<1x!tpu.dma_semaphore, #tpu.memory_space<semaphore_mem>>
    %5 = tpu.memref_squeeze %4 : memref<1x!tpu.dma_semaphore, #tpu.memory_space<semaphore_mem>> -> memref<!tpu.dma_semaphore, #tpu.memory_space<semaphore_mem>>
    tpu.enqueue_dma source(%arg7 : memref<512x512xbf16, #tpu.memory_space<any>>) target(%arg15 : memref<512x512xbf16, #tpu.memory_space<vmem>>) target_semaphore(%5 : memref<!tpu.dma_semaphore, #tpu.memory_space<semaphore_mem>>)
    %c3_i32 = arith.constant 3 : i32
    %6 = tpu.memref_slice %arg19[%c3_i32] : memref<6x!tpu.dma_semaphore, #tpu.memory_space<semaphore_mem>> -> memref<1x!tpu.dma_semaphore, #tpu.memory_space<semaphore_mem>>
    %7 = tpu.memref_squeeze %6 : memref<1x!tpu.dma_semaphore, #tpu.memory_space<semaphore_mem>> -> memref<!tpu.dma_semaphore, #tpu.memory_space<semaphore_mem>>
    tpu.enqueue_dma source(%arg8 : memref<512x512xbf16, #tpu.memory_space<any>>) target(%arg16 : memref<512x512xbf16, #tpu.memory_space<vmem>>) target_semaphore(%7 : memref<!tpu.dma_semaphore, #tpu.memory_space<semaphore_mem>>)
    %c4_i32 = arith.constant 4 : i32
    %8 = tpu.memref_slice %arg19[%c4_i32] : memref<6x!tpu.dma_semaphore, #tpu.memory_space<semaphore_mem>> -> memref<1x!tpu.dma_semaphore, #tpu.memory_space<semaphore_mem>>
    %9 = tpu.memref_squeeze %8 : memref<1x!tpu.dma_semaphore, #tpu.memory_space<semaphore_mem>> -> memref<!tpu.dma_semaphore, #tpu.memory_space<semaphore_mem>>
    tpu.enqueue_dma source(%arg9 : memref<512x512xbf16, #tpu.memory_space<any>>) target(%arg17 : memref<512x512xbf16, #tpu.memory_space<vmem>>) target_semaphore(%9 : memref<!tpu.dma_semaphore, #tpu.memory_space<semaphore_mem>>)
    %c5_i32 = arith.constant 5 : i32
    %10 = tpu.memref_slice %arg19[%c5_i32] : memref<6x!tpu.dma_semaphore, #tpu.memory_space<semaphore_mem>> -> memref<1x!tpu.dma_semaphore, #tpu.memory_space<semaphore_mem>>
    %11 = tpu.memref_squeeze %10 : memref<1x!tpu.dma_semaphore, #tpu.memory_space<semaphore_mem>> -> memref<!tpu.dma_semaphore, #tpu.memory_space<semaphore_mem>>
    tpu.enqueue_dma source(%arg10 : memref<512x512xbf16, #tpu.memory_space<any>>) target(%arg18 : memref<512x512xbf16, #tpu.memory_space<vmem>>) target_semaphore(%11 : memref<!tpu.dma_semaphore, #tpu.memory_space<semaphore_mem>>)
    %c0 = arith.constant 0 : index
    %c0_0 = arith.constant 0 : index
    %12 = vector.load %arg4[%c0, %c0_0] : memref<8x512xf32, #tpu.memory_space<vmem>>, vector<8x512xf32>
    %13 = vector.extract_strided_slice %12 {offsets = [0, 0], sizes = [1, 512], strides = [1, 1]} : vector<8x512xf32> to vector<1x512xf32>
    %c0_1 = arith.constant 0 : index
    %c0_2 = arith.constant 0 : index
    %14 = vector.load %arg2[%c0_1, %c0_2] : memref<162x512xbf16, #tpu.memory_space<vmem>>, vector<162x512xbf16>
    %c0_3 = arith.constant 0 : index
    %c0_4 = arith.constant 0 : index
    %c0_5 = arith.constant 0 : index
    %15 = vector.load %arg0[%c0_3, %c0_4, %c0_5] : memref<8x8x162xf32, #tpu.memory_space<vmem>>, vector<8x8x162xf32>
    %16 = vector.shape_cast %15 : vector<8x8x162xf32> to vector<64x162xf32>
    %17 = arith.truncf %16 : vector<64x162xf32> to vector<64x162xbf16>
    %cst = arith.constant dense<0.000000e+00> : vector<64x512xf32>
    %18 = tpu.matmul %17, %14, %cst {dimension_numbers = #tpu.dot_dimension_numbers<[1], [0], [0], [1], [0, 0, 1, 1], [], []>} : vector<64x162xbf16>, vector<162x512xbf16>, vector<64x512xf32> -> vector<64x512xf32>
    %19 = vector.broadcast %13 : vector<1x512xf32> to vector<64x512xf32>
    %20 = arith.addf %18, %19 : vector<64x512xf32>
    %c0_i32_6 = arith.constant 0 : i32
    %21 = tpu.memref_slice %arg19[%c0_i32_6] : memref<6x!tpu.dma_semaphore, #tpu.memory_space<semaphore_mem>> -> memref<1x!tpu.dma_semaphore, #tpu.memory_space<semaphore_mem>>
    %22 = tpu.memref_squeeze %21 : memref<1x!tpu.dma_semaphore, #tpu.memory_space<semaphore_mem>> -> memref<!tpu.dma_semaphore, #tpu.memory_space<semaphore_mem>>
    tpu.wait_dma2 semaphore(%22 : memref<!tpu.dma_semaphore, #tpu.memory_space<semaphore_mem>>) src(%arg6 : memref<484x512xbf16, #tpu.memory_space<any>>) dst(%arg14 : memref<484x512xbf16, #tpu.memory_space<vmem>>)
    %c0_7 = arith.constant 0 : index
    %c0_8 = arith.constant 0 : index
    %23 = vector.load %arg1[%c0_7, %c0_8] : memref<8x484xf32, #tpu.memory_space<vmem>>, vector<8x484xf32>
    %24 = arith.truncf %23 : vector<8x484xf32> to vector<8x484xbf16>
    %c0_9 = arith.constant 0 : index
    %c0_10 = arith.constant 0 : index
    %25 = vector.load %arg14[%c0_9, %c0_10] : memref<484x512xbf16, #tpu.memory_space<vmem>>, vector<484x512xbf16>
    %cst_11 = arith.constant dense<0.000000e+00> : vector<8x512xf32>
    %26 = tpu.matmul %24, %25, %cst_11 {dimension_numbers = #tpu.dot_dimension_numbers<[1], [0], [0], [1], [0, 0, 1, 1], [], []>} : vector<8x484xbf16>, vector<484x512xbf16>, vector<8x512xf32> -> vector<8x512xf32>
    %cst_12 = arith.constant 0.000000e+00 : f32
    %27 = vector.broadcast %cst_12 : f32 to vector<8x128xf32>
    %cst_13 = arith.constant 0.000000e+00 : f32
    %28 = vector.broadcast %cst_13 : f32 to vector<8x128xf32>
    %c0_14 = arith.constant 0 : index
    %c0_15 = arith.constant 0 : index
    %29 = vector.load %arg3[%c0_14, %c0_15] : memref<128x512xbf16, #tpu.memory_space<vmem>>, vector<128x512xbf16>
    %30 = vector.extract_strided_slice %20 {offsets = [0, 0], sizes = [8, 512], strides = [1, 1]} : vector<64x512xf32> to vector<8x512xf32>
    %31 = arith.truncf %27 : vector<8x128xf32> to vector<8x128xbf16>
    %cst_16 = arith.constant dense<0.000000e+00> : vector<8x512xf32>
    %32 = tpu.matmul %31, %29, %cst_16 {dimension_numbers = #tpu.dot_dimension_numbers<[1], [0], [0], [1], [0, 0, 1, 1], [], []>} : vector<8x128xbf16>, vector<128x512xbf16>, vector<8x512xf32> -> vector<8x512xf32>
    %33 = arith.addf %30, %32 : vector<8x512xf32>
    %34 = vector.extract_strided_slice %33 {offsets = [0, 0], sizes = [8, 128], strides = [1, 1]} : vector<8x512xf32> to vector<8x128xf32>
    %35 = arith.negf %34 : vector<8x128xf32>
    %36 = math.exp %35 : vector<8x128xf32>
    %cst_17 = arith.constant 1.000000e+00 : f32
    %37 = vector.broadcast %cst_17 : f32 to vector<8x128xf32>
    %38 = arith.addf %37, %36 : vector<8x128xf32>
    %39 = arith.divf %37, %38 : vector<8x128xf32>
    %40 = vector.extract_strided_slice %33 {offsets = [0, 128], sizes = [8, 128], strides = [1, 1]} : vector<8x512xf32> to vector<8x128xf32>
    %41 = arith.negf %40 : vector<8x128xf32>
    %42 = math.exp %41 : vector<8x128xf32>
    %cst_18 = arith.constant 1.000000e+00 : f32
    %43 = vector.broadcast %cst_18 : f32 to vector<8x128xf32>
    %44 = arith.addf %43, %42 : vector<8x128xf32>
    %45 = arith.divf %43, %44 : vector<8x128xf32>
    %46 = vector.extract_strided_slice %33 {offsets = [0, 256], sizes = [8, 128], strides = [1, 1]} : vector<8x512xf32> to vector<8x128xf32>
    %47 = math.tanh %46 : vector<8x128xf32>
    %48 = vector.extract_strided_slice %33 {offsets = [0, 384], sizes = [8, 128], strides = [1, 1]} : vector<8x512xf32> to vector<8x128xf32>
    %49 = arith.negf %48 : vector<8x128xf32>
    %50 = math.exp %49 : vector<8x128xf32>
    %cst_19 = arith.constant 1.000000e+00 : f32
    %51 = vector.broadcast %cst_19 : f32 to vector<8x128xf32>
    %52 = arith.addf %51, %50 : vector<8x128xf32>
    %53 = arith.divf %51, %52 : vector<8x128xf32>
    %54 = arith.mulf %45, %28 : vector<8x128xf32>
    %55 = arith.mulf %39, %47 : vector<8x128xf32>
    %56 = arith.addf %54, %55 : vector<8x128xf32>
    %57 = math.tanh %56 : vector<8x128xf32>
    %58 = arith.mulf %53, %57 : vector<8x128xf32>
    %59 = vector.extract_strided_slice %20 {offsets = [8, 0], sizes = [8, 512], strides = [1, 1]} : vector<64x512xf32> to vector<8x512xf32>
    %60 = arith.truncf %58 : vector<8x128xf32> to vector<8x128xbf16>
    %cst_20 = arith.constant dense<0.000000e+00> : vector<8x512xf32>
    %61 = tpu.matmul %60, %29, %cst_20 {dimension_numbers = #tpu.dot_dimension_numbers<[1], [0], [0], [1], [0, 0, 1, 1], [], []>} : vector<8x128xbf16>, vector<128x512xbf16>, vector<8x512xf32> -> vector<8x512xf32>
    %62 = arith.addf %59, %61 : vector<8x512xf32>
    %63 = vector.extract_strided_slice %62 {offsets = [0, 0], sizes = [8, 128], strides = [1, 1]} : vector<8x512xf32> to vector<8x128xf32>
    %64 = arith.negf %63 : vector<8x128xf32>
    %65 = math.exp %64 : vector<8x128xf32>
    %cst_21 = arith.constant 1.000000e+00 : f32
    %66 = vector.broadcast %cst_21 : f32 to vector<8x128xf32>
    %67 = arith.addf %66, %65 : vector<8x128xf32>
    %68 = arith.divf %66, %67 : vector<8x128xf32>
    %69 = vector.extract_strided_slice %62 {offsets = [0, 128], sizes = [8, 128], strides = [1, 1]} : vector<8x512xf32> to vector<8x128xf32>
    %70 = arith.negf %69 : vector<8x128xf32>
    %71 = math.exp %70 : vector<8x128xf32>
    %cst_22 = arith.constant 1.000000e+00 : f32
    %72 = vector.broadcast %cst_22 : f32 to vector<8x128xf32>
    %73 = arith.addf %72, %71 : vector<8x128xf32>
    %74 = arith.divf %72, %73 : vector<8x128xf32>
    %75 = vector.extract_strided_slice %62 {offsets = [0, 256], sizes = [8, 128], strides = [1, 1]} : vector<8x512xf32> to vector<8x128xf32>
    %76 = math.tanh %75 : vector<8x128xf32>
    %77 = vector.extract_strided_slice %62 {offsets = [0, 384], sizes = [8, 128], strides = [1, 1]} : vector<8x512xf32> to vector<8x128xf32>
    %78 = arith.negf %77 : vector<8x128xf32>
    %79 = math.exp %78 : vector<8x128xf32>
    %cst_23 = arith.constant 1.000000e+00 : f32
    %80 = vector.broadcast %cst_23 : f32 to vector<8x128xf32>
    %81 = arith.addf %80, %79 : vector<8x128xf32>
    %82 = arith.divf %80, %81 : vector<8x128xf32>
    %83 = arith.mulf %74, %56 : vector<8x128xf32>
    %84 = arith.mulf %68, %76 : vector<8x128xf32>
    %85 = arith.addf %83, %84 : vector<8x128xf32>
    %86 = math.tanh %85 : vector<8x128xf32>
    %87 = arith.mulf %82, %86 : vector<8x128xf32>
    %88 = vector.extract_strided_slice %20 {offsets = [16, 0], sizes = [8, 512], strides = [1, 1]} : vector<64x512xf32> to vector<8x512xf32>
    %89 = arith.truncf %87 : vector<8x128xf32> to vector<8x128xbf16>
    %cst_24 = arith.constant dense<0.000000e+00> : vector<8x512xf32>
    %90 = tpu.matmul %89, %29, %cst_24 {dimension_numbers = #tpu.dot_dimension_numbers<[1], [0], [0], [1], [0, 0, 1, 1], [], []>} : vector<8x128xbf16>, vector<128x512xbf16>, vector<8x512xf32> -> vector<8x512xf32>
    %91 = arith.addf %88, %90 : vector<8x512xf32>
    %92 = vector.extract_strided_slice %91 {offsets = [0, 0], sizes = [8, 128], strides = [1, 1]} : vector<8x512xf32> to vector<8x128xf32>
    %93 = arith.negf %92 : vector<8x128xf32>
    %94 = math.exp %93 : vector<8x128xf32>
    %cst_25 = arith.constant 1.000000e+00 : f32
    %95 = vector.broadcast %cst_25 : f32 to vector<8x128xf32>
    %96 = arith.addf %95, %94 : vector<8x128xf32>
    %97 = arith.divf %95, %96 : vector<8x128xf32>
    %98 = vector.extract_strided_slice %91 {offsets = [0, 128], sizes = [8, 128], strides = [1, 1]} : vector<8x512xf32> to vector<8x128xf32>
    %99 = arith.negf %98 : vector<8x128xf32>
    %100 = math.exp %99 : vector<8x128xf32>
    %cst_26 = arith.constant 1.000000e+00 : f32
    %101 = vector.broadcast %cst_26 : f32 to vector<8x128xf32>
    %102 = arith.addf %101, %100 : vector<8x128xf32>
    %103 = arith.divf %101, %102 : vector<8x128xf32>
    %104 = vector.extract_strided_slice %91 {offsets = [0, 256], sizes = [8, 128], strides = [1, 1]} : vector<8x512xf32> to vector<8x128xf32>
    %105 = math.tanh %104 : vector<8x128xf32>
    %106 = vector.extract_strided_slice %91 {offsets = [0, 384], sizes = [8, 128], strides = [1, 1]} : vector<8x512xf32> to vector<8x128xf32>
    %107 = arith.negf %106 : vector<8x128xf32>
    %108 = math.exp %107 : vector<8x128xf32>
    %cst_27 = arith.constant 1.000000e+00 : f32
    %109 = vector.broadcast %cst_27 : f32 to vector<8x128xf32>
    %110 = arith.addf %109, %108 : vector<8x128xf32>
    %111 = arith.divf %109, %110 : vector<8x128xf32>
    %112 = arith.mulf %103, %85 : vector<8x128xf32>
    %113 = arith.mulf %97, %105 : vector<8x128xf32>
    %114 = arith.addf %112, %113 : vector<8x128xf32>
    %115 = math.tanh %114 : vector<8x128xf32>
    %116 = arith.mulf %111, %115 : vector<8x128xf32>
    %117 = vector.extract_strided_slice %20 {offsets = [24, 0], sizes = [8, 512], strides = [1, 1]} : vector<64x512xf32> to vector<8x512xf32>
    %118 = arith.truncf %116 : vector<8x128xf32> to vector<8x128xbf16>
    %cst_28 = arith.constant dense<0.000000e+00> : vector<8x512xf32>
    %119 = tpu.matmul %118, %29, %cst_28 {dimension_numbers = #tpu.dot_dimension_numbers<[1], [0], [0], [1], [0, 0, 1, 1], [], []>} : vector<8x128xbf16>, vector<128x512xbf16>, vector<8x512xf32> -> vector<8x512xf32>
    %120 = arith.addf %117, %119 : vector<8x512xf32>
    %121 = vector.extract_strided_slice %120 {offsets = [0, 0], sizes = [8, 128], strides = [1, 1]} : vector<8x512xf32> to vector<8x128xf32>
    %122 = arith.negf %121 : vector<8x128xf32>
    %123 = math.exp %122 : vector<8x128xf32>
    %cst_29 = arith.constant 1.000000e+00 : f32
    %124 = vector.broadcast %cst_29 : f32 to vector<8x128xf32>
    %125 = arith.addf %124, %123 : vector<8x128xf32>
    %126 = arith.divf %124, %125 : vector<8x128xf32>
    %127 = vector.extract_strided_slice %120 {offsets = [0, 128], sizes = [8, 128], strides = [1, 1]} : vector<8x512xf32> to vector<8x128xf32>
    %128 = arith.negf %127 : vector<8x128xf32>
    %129 = math.exp %128 : vector<8x128xf32>
    %cst_30 = arith.constant 1.000000e+00 : f32
    %130 = vector.broadcast %cst_30 : f32 to vector<8x128xf32>
    %131 = arith.addf %130, %129 : vector<8x128xf32>
    %132 = arith.divf %130, %131 : vector<8x128xf32>
    %133 = vector.extract_strided_slice %120 {offsets = [0, 256], sizes = [8, 128], strides = [1, 1]} : vector<8x512xf32> to vector<8x128xf32>
    %134 = math.tanh %133 : vector<8x128xf32>
    %135 = vector.extract_strided_slice %120 {offsets = [0, 384], sizes = [8, 128], strides = [1, 1]} : vector<8x512xf32> to vector<8x128xf32>
    %136 = arith.negf %135 : vector<8x128xf32>
    %137 = math.exp %136 : vector<8x128xf32>
    %cst_31 = arith.constant 1.000000e+00 : f32
    %138 = vector.broadcast %cst_31 : f32 to vector<8x128xf32>
    %139 = arith.addf %138, %137 : vector<8x128xf32>
    %140 = arith.divf %138, %139 : vector<8x128xf32>
    %141 = arith.mulf %132, %114 : vector<8x128xf32>
    %142 = arith.mulf %126, %134 : vector<8x128xf32>
    %143 = arith.addf %141, %142 : vector<8x128xf32>
    %144 = math.tanh %143 : vector<8x128xf32>
    %145 = arith.mulf %140, %144 : vector<8x128xf32>
    %146 = vector.extract_strided_slice %20 {offsets = [32, 0], sizes = [8, 512], strides = [1, 1]} : vector<64x512xf32> to vector<8x512xf32>
    %147 = arith.truncf %145 : vector<8x128xf32> to vector<8x128xbf16>
    %cst_32 = arith.constant dense<0.000000e+00> : vector<8x512xf32>
    %148 = tpu.matmul %147, %29, %cst_32 {dimension_numbers = #tpu.dot_dimension_numbers<[1], [0], [0], [1], [0, 0, 1, 1], [], []>} : vector<8x128xbf16>, vector<128x512xbf16>, vector<8x512xf32> -> vector<8x512xf32>
    %149 = arith.addf %146, %148 : vector<8x512xf32>
    %150 = vector.extract_strided_slice %149 {offsets = [0, 0], sizes = [8, 128], strides = [1, 1]} : vector<8x512xf32> to vector<8x128xf32>
    %151 = arith.negf %150 : vector<8x128xf32>
    %152 = math.exp %151 : vector<8x128xf32>
    %cst_33 = arith.constant 1.000000e+00 : f32
    %153 = vector.broadcast %cst_33 : f32 to vector<8x128xf32>
    %154 = arith.addf %153, %152 : vector<8x128xf32>
    %155 = arith.divf %153, %154 : vector<8x128xf32>
    %156 = vector.extract_strided_slice %149 {offsets = [0, 128], sizes = [8, 128], strides = [1, 1]} : vector<8x512xf32> to vector<8x128xf32>
    %157 = arith.negf %156 : vector<8x128xf32>
    %158 = math.exp %157 : vector<8x128xf32>
    %cst_34 = arith.constant 1.000000e+00 : f32
    %159 = vector.broadcast %cst_34 : f32 to vector<8x128xf32>
    %160 = arith.addf %159, %158 : vector<8x128xf32>
    %161 = arith.divf %159, %160 : vector<8x128xf32>
    %162 = vector.extract_strided_slice %149 {offsets = [0, 256], sizes = [8, 128], strides = [1, 1]} : vector<8x512xf32> to vector<8x128xf32>
    %163 = math.tanh %162 : vector<8x128xf32>
    %164 = vector.extract_strided_slice %149 {offsets = [0, 384], sizes = [8, 128], strides = [1, 1]} : vector<8x512xf32> to vector<8x128xf32>
    %165 = arith.negf %164 : vector<8x128xf32>
    %166 = math.exp %165 : vector<8x128xf32>
    %cst_35 = arith.constant 1.000000e+00 : f32
    %167 = vector.broadcast %cst_35 : f32 to vector<8x128xf32>
    %168 = arith.addf %167, %166 : vector<8x128xf32>
    %169 = arith.divf %167, %168 : vector<8x128xf32>
    %170 = arith.mulf %161, %143 : vector<8x128xf32>
    %171 = arith.mulf %155, %163 : vector<8x128xf32>
    %172 = arith.addf %170, %171 : vector<8x128xf32>
    %173 = math.tanh %172 : vector<8x128xf32>
    %174 = arith.mulf %169, %173 : vector<8x128xf32>
    %175 = vector.extract_strided_slice %20 {offsets = [40, 0], sizes = [8, 512], strides = [1, 1]} : vector<64x512xf32> to vector<8x512xf32>
    %176 = arith.truncf %174 : vector<8x128xf32> to vector<8x128xbf16>
    %cst_36 = arith.constant dense<0.000000e+00> : vector<8x512xf32>
    %177 = tpu.matmul %176, %29, %cst_36 {dimension_numbers = #tpu.dot_dimension_numbers<[1], [0], [0], [1], [0, 0, 1, 1], [], []>} : vector<8x128xbf16>, vector<128x512xbf16>, vector<8x512xf32> -> vector<8x512xf32>
    %178 = arith.addf %175, %177 : vector<8x512xf32>
    %179 = vector.extract_strided_slice %178 {offsets = [0, 0], sizes = [8, 128], strides = [1, 1]} : vector<8x512xf32> to vector<8x128xf32>
    %180 = arith.negf %179 : vector<8x128xf32>
    %181 = math.exp %180 : vector<8x128xf32>
    %cst_37 = arith.constant 1.000000e+00 : f32
    %182 = vector.broadcast %cst_37 : f32 to vector<8x128xf32>
    %183 = arith.addf %182, %181 : vector<8x128xf32>
    %184 = arith.divf %182, %183 : vector<8x128xf32>
    %185 = vector.extract_strided_slice %178 {offsets = [0, 128], sizes = [8, 128], strides = [1, 1]} : vector<8x512xf32> to vector<8x128xf32>
    %186 = arith.negf %185 : vector<8x128xf32>
    %187 = math.exp %186 : vector<8x128xf32>
    %cst_38 = arith.constant 1.000000e+00 : f32
    %188 = vector.broadcast %cst_38 : f32 to vector<8x128xf32>
    %189 = arith.addf %188, %187 : vector<8x128xf32>
    %190 = arith.divf %188, %189 : vector<8x128xf32>
    %191 = vector.extract_strided_slice %178 {offsets = [0, 256], sizes = [8, 128], strides = [1, 1]} : vector<8x512xf32> to vector<8x128xf32>
    %192 = math.tanh %191 : vector<8x128xf32>
    %193 = vector.extract_strided_slice %178 {offsets = [0, 384], sizes = [8, 128], strides = [1, 1]} : vector<8x512xf32> to vector<8x128xf32>
    %194 = arith.negf %193 : vector<8x128xf32>
    %195 = math.exp %194 : vector<8x128xf32>
    %cst_39 = arith.constant 1.000000e+00 : f32
    %196 = vector.broadcast %cst_39 : f32 to vector<8x128xf32>
    %197 = arith.addf %196, %195 : vector<8x128xf32>
    %198 = arith.divf %196, %197 : vector<8x128xf32>
    %199 = arith.mulf %190, %172 : vector<8x128xf32>
    %200 = arith.mulf %184, %192 : vector<8x128xf32>
    %201 = arith.addf %199, %200 : vector<8x128xf32>
    %202 = math.tanh %201 : vector<8x128xf32>
    %203 = arith.mulf %198, %202 : vector<8x128xf32>
    %204 = vector.extract_strided_slice %20 {offsets = [48, 0], sizes = [8, 512], strides = [1, 1]} : vector<64x512xf32> to vector<8x512xf32>
    %205 = arith.truncf %203 : vector<8x128xf32> to vector<8x128xbf16>
    %cst_40 = arith.constant dense<0.000000e+00> : vector<8x512xf32>
    %206 = tpu.matmul %205, %29, %cst_40 {dimension_numbers = #tpu.dot_dimension_numbers<[1], [0], [0], [1], [0, 0, 1, 1], [], []>} : vector<8x128xbf16>, vector<128x512xbf16>, vector<8x512xf32> -> vector<8x512xf32>
    %207 = arith.addf %204, %206 : vector<8x512xf32>
    %208 = vector.extract_strided_slice %207 {offsets = [0, 0], sizes = [8, 128], strides = [1, 1]} : vector<8x512xf32> to vector<8x128xf32>
    %209 = arith.negf %208 : vector<8x128xf32>
    %210 = math.exp %209 : vector<8x128xf32>
    %cst_41 = arith.constant 1.000000e+00 : f32
    %211 = vector.broadcast %cst_41 : f32 to vector<8x128xf32>
    %212 = arith.addf %211, %210 : vector<8x128xf32>
    %213 = arith.divf %211, %212 : vector<8x128xf32>
    %214 = vector.extract_strided_slice %207 {offsets = [0, 128], sizes = [8, 128], strides = [1, 1]} : vector<8x512xf32> to vector<8x128xf32>
    %215 = arith.negf %214 : vector<8x128xf32>
    %216 = math.exp %215 : vector<8x128xf32>
    %cst_42 = arith.constant 1.000000e+00 : f32
    %217 = vector.broadcast %cst_42 : f32 to vector<8x128xf32>
    %218 = arith.addf %217, %216 : vector<8x128xf32>
    %219 = arith.divf %217, %218 : vector<8x128xf32>
    %220 = vector.extract_strided_slice %207 {offsets = [0, 256], sizes = [8, 128], strides = [1, 1]} : vector<8x512xf32> to vector<8x128xf32>
    %221 = math.tanh %220 : vector<8x128xf32>
    %222 = vector.extract_strided_slice %207 {offsets = [0, 384], sizes = [8, 128], strides = [1, 1]} : vector<8x512xf32> to vector<8x128xf32>
    %223 = arith.negf %222 : vector<8x128xf32>
    %224 = math.exp %223 : vector<8x128xf32>
    %cst_43 = arith.constant 1.000000e+00 : f32
    %225 = vector.broadcast %cst_43 : f32 to vector<8x128xf32>
    %226 = arith.addf %225, %224 : vector<8x128xf32>
    %227 = arith.divf %225, %226 : vector<8x128xf32>
    %228 = arith.mulf %219, %201 : vector<8x128xf32>
    %229 = arith.mulf %213, %221 : vector<8x128xf32>
    %230 = arith.addf %228, %229 : vector<8x128xf32>
    %231 = math.tanh %230 : vector<8x128xf32>
    %232 = arith.mulf %227, %231 : vector<8x128xf32>
    %233 = vector.extract_strided_slice %20 {offsets = [56, 0], sizes = [8, 512], strides = [1, 1]} : vector<64x512xf32> to vector<8x512xf32>
    %234 = arith.truncf %232 : vector<8x128xf32> to vector<8x128xbf16>
    %cst_44 = arith.constant dense<0.000000e+00> : vector<8x512xf32>
    %235 = tpu.matmul %234, %29, %cst_44 {dimension_numbers = #tpu.dot_dimension_numbers<[1], [0], [0], [1], [0, 0, 1, 1], [], []>} : vector<8x128xbf16>, vector<128x512xbf16>, vector<8x512xf32> -> vector<8x512xf32>
    %236 = arith.addf %233, %235 : vector<8x512xf32>
    %237 = vector.extract_strided_slice %236 {offsets = [0, 0], sizes = [8, 128], strides = [1, 1]} : vector<8x512xf32> to vector<8x128xf32>
    %238 = arith.negf %237 : vector<8x128xf32>
    %239 = math.exp %238 : vector<8x128xf32>
    %cst_45 = arith.constant 1.000000e+00 : f32
    %240 = vector.broadcast %cst_45 : f32 to vector<8x128xf32>
    %241 = arith.addf %240, %239 : vector<8x128xf32>
    %242 = arith.divf %240, %241 : vector<8x128xf32>
    %243 = vector.extract_strided_slice %236 {offsets = [0, 128], sizes = [8, 128], strides = [1, 1]} : vector<8x512xf32> to vector<8x128xf32>
    %244 = arith.negf %243 : vector<8x128xf32>
    %245 = math.exp %244 : vector<8x128xf32>
    %cst_46 = arith.constant 1.000000e+00 : f32
    %246 = vector.broadcast %cst_46 : f32 to vector<8x128xf32>
    %247 = arith.addf %246, %245 : vector<8x128xf32>
    %248 = arith.divf %246, %247 : vector<8x128xf32>
    %249 = vector.extract_strided_slice %236 {offsets = [0, 256], sizes = [8, 128], strides = [1, 1]} : vector<8x512xf32> to vector<8x128xf32>
    %250 = math.tanh %249 : vector<8x128xf32>
    %251 = vector.extract_strided_slice %236 {offsets = [0, 384], sizes = [8, 128], strides = [1, 1]} : vector<8x512xf32> to vector<8x128xf32>
    %252 = arith.negf %251 : vector<8x128xf32>
    %253 = math.exp %252 : vector<8x128xf32>
    %cst_47 = arith.constant 1.000000e+00 : f32
    %254 = vector.broadcast %cst_47 : f32 to vector<8x128xf32>
    %255 = arith.addf %254, %253 : vector<8x128xf32>
    %256 = arith.divf %254, %255 : vector<8x128xf32>
    %257 = arith.mulf %248, %230 : vector<8x128xf32>
    %258 = arith.mulf %242, %250 : vector<8x128xf32>
    %259 = arith.addf %257, %258 : vector<8x128xf32>
    %260 = math.tanh %259 : vector<8x128xf32>
    %261 = arith.mulf %256, %260 : vector<8x128xf32>
    %c1_i32_48 = arith.constant 1 : i32
    %262 = tpu.memref_slice %arg19[%c1_i32_48] : memref<6x!tpu.dma_semaphore, #tpu.memory_space<semaphore_mem>> -> memref<1x!tpu.dma_semaphore, #tpu.memory_space<semaphore_mem>>
    %263 = tpu.memref_squeeze %262 : memref<1x!tpu.dma_semaphore, #tpu.memory_space<semaphore_mem>> -> memref<!tpu.dma_semaphore, #tpu.memory_space<semaphore_mem>>
    tpu.wait_dma2 semaphore(%263 : memref<!tpu.dma_semaphore, #tpu.memory_space<semaphore_mem>>) src(%arg5 : memref<128x512xbf16, #tpu.memory_space<any>>) dst(%arg13 : memref<128x512xbf16, #tpu.memory_space<vmem>>)
    %264 = arith.truncf %261 : vector<8x128xf32> to vector<8x128xbf16>
    %c0_49 = arith.constant 0 : index
    %c0_50 = arith.constant 0 : index
    %265 = vector.load %arg13[%c0_49, %c0_50] : memref<128x512xbf16, #tpu.memory_space<vmem>>, vector<128x512xbf16>
    %cst_51 = arith.constant dense<0.000000e+00> : vector<8x512xf32>
    %266 = tpu.matmul %264, %265, %cst_51 {dimension_numbers = #tpu.dot_dimension_numbers<[1], [0], [0], [1], [0, 0, 1, 1], [], []>} : vector<8x128xbf16>, vector<128x512xbf16>, vector<8x512xf32> -> vector<8x512xf32>
    %267 = arith.addf %26, %266 : vector<8x512xf32>
    %268 = vector.extract_strided_slice %12 {offsets = [1, 0], sizes = [1, 512], strides = [1, 1]} : vector<8x512xf32> to vector<1x512xf32>
    %269 = vector.broadcast %268 : vector<1x512xf32> to vector<8x512xf32>
    %270 = arith.addf %267, %269 : vector<8x512xf32>
    %cst_52 = arith.constant 0.000000e+00 : f32
    %271 = vector.broadcast %cst_52 : f32 to vector<8x512xf32>
    %272 = arith.maximumf %270, %271 : vector<8x512xf32>
    %c2_i32_53 = arith.constant 2 : i32
    %273 = tpu.memref_slice %arg19[%c2_i32_53] : memref<6x!tpu.dma_semaphore, #tpu.memory_space<semaphore_mem>> -> memref<1x!tpu.dma_semaphore, #tpu.memory_space<semaphore_mem>>
    %274 = tpu.memref_squeeze %273 : memref<1x!tpu.dma_semaphore, #tpu.memory_space<semaphore_mem>> -> memref<!tpu.dma_semaphore, #tpu.memory_space<semaphore_mem>>
    tpu.wait_dma2 semaphore(%274 : memref<!tpu.dma_semaphore, #tpu.memory_space<semaphore_mem>>) src(%arg7 : memref<512x512xbf16, #tpu.memory_space<any>>) dst(%arg15 : memref<512x512xbf16, #tpu.memory_space<vmem>>)
    %275 = arith.truncf %272 : vector<8x512xf32> to vector<8x512xbf16>
    %c0_54 = arith.constant 0 : index
    %c0_55 = arith.constant 0 : index
    %276 = vector.load %arg15[%c0_54, %c0_55] : memref<512x512xbf16, #tpu.memory_space<vmem>>, vector<512x512xbf16>
    %cst_56 = arith.constant dense<0.000000e+00> : vector<8x512xf32>
    %277 = tpu.matmul %275, %276, %cst_56 {dimension_numbers = #tpu.dot_dimension_numbers<[1], [0], [0], [1], [0, 0, 1, 1], [], []>} : vector<8x512xbf16>, vector<512x512xbf16>, vector<8x512xf32> -> vector<8x512xf32>
    %278 = vector.extract_strided_slice %12 {offsets = [2, 0], sizes = [1, 512], strides = [1, 1]} : vector<8x512xf32> to vector<1x512xf32>
    %279 = vector.broadcast %278 : vector<1x512xf32> to vector<8x512xf32>
    %280 = arith.addf %277, %279 : vector<8x512xf32>
    %cst_57 = arith.constant 0.000000e+00 : f32
    %281 = vector.broadcast %cst_57 : f32 to vector<8x512xf32>
    %282 = arith.maximumf %280, %281 : vector<8x512xf32>
    %c3_i32_58 = arith.constant 3 : i32
    %283 = tpu.memref_slice %arg19[%c3_i32_58] : memref<6x!tpu.dma_semaphore, #tpu.memory_space<semaphore_mem>> -> memref<1x!tpu.dma_semaphore, #tpu.memory_space<semaphore_mem>>
    %284 = tpu.memref_squeeze %283 : memref<1x!tpu.dma_semaphore, #tpu.memory_space<semaphore_mem>> -> memref<!tpu.dma_semaphore, #tpu.memory_space<semaphore_mem>>
    tpu.wait_dma2 semaphore(%284 : memref<!tpu.dma_semaphore, #tpu.memory_space<semaphore_mem>>) src(%arg8 : memref<512x512xbf16, #tpu.memory_space<any>>) dst(%arg16 : memref<512x512xbf16, #tpu.memory_space<vmem>>)
    %285 = arith.truncf %282 : vector<8x512xf32> to vector<8x512xbf16>
    %c0_59 = arith.constant 0 : index
    %c0_60 = arith.constant 0 : index
    %286 = vector.load %arg16[%c0_59, %c0_60] : memref<512x512xbf16, #tpu.memory_space<vmem>>, vector<512x512xbf16>
    %cst_61 = arith.constant dense<0.000000e+00> : vector<8x512xf32>
    %287 = tpu.matmul %285, %286, %cst_61 {dimension_numbers = #tpu.dot_dimension_numbers<[1], [0], [0], [1], [0, 0, 1, 1], [], []>} : vector<8x512xbf16>, vector<512x512xbf16>, vector<8x512xf32> -> vector<8x512xf32>
    %288 = vector.extract_strided_slice %12 {offsets = [3, 0], sizes = [1, 512], strides = [1, 1]} : vector<8x512xf32> to vector<1x512xf32>
    %289 = vector.broadcast %288 : vector<1x512xf32> to vector<8x512xf32>
    %290 = arith.addf %287, %289 : vector<8x512xf32>
    %cst_62 = arith.constant 0.000000e+00 : f32
    %291 = vector.broadcast %cst_62 : f32 to vector<8x512xf32>
    %292 = arith.maximumf %290, %291 : vector<8x512xf32>
    %c4_i32_63 = arith.constant 4 : i32
    %293 = tpu.memref_slice %arg19[%c4_i32_63] : memref<6x!tpu.dma_semaphore, #tpu.memory_space<semaphore_mem>> -> memref<1x!tpu.dma_semaphore, #tpu.memory_space<semaphore_mem>>
    %294 = tpu.memref_squeeze %293 : memref<1x!tpu.dma_semaphore, #tpu.memory_space<semaphore_mem>> -> memref<!tpu.dma_semaphore, #tpu.memory_space<semaphore_mem>>
    tpu.wait_dma2 semaphore(%294 : memref<!tpu.dma_semaphore, #tpu.memory_space<semaphore_mem>>) src(%arg9 : memref<512x512xbf16, #tpu.memory_space<any>>) dst(%arg17 : memref<512x512xbf16, #tpu.memory_space<vmem>>)
    %295 = arith.truncf %292 : vector<8x512xf32> to vector<8x512xbf16>
    %c0_64 = arith.constant 0 : index
    %c0_65 = arith.constant 0 : index
    %296 = vector.load %arg17[%c0_64, %c0_65] : memref<512x512xbf16, #tpu.memory_space<vmem>>, vector<512x512xbf16>
    %cst_66 = arith.constant dense<0.000000e+00> : vector<8x512xf32>
    %297 = tpu.matmul %295, %296, %cst_66 {dimension_numbers = #tpu.dot_dimension_numbers<[1], [0], [0], [1], [0, 0, 1, 1], [], []>} : vector<8x512xbf16>, vector<512x512xbf16>, vector<8x512xf32> -> vector<8x512xf32>
    %298 = vector.extract_strided_slice %12 {offsets = [4, 0], sizes = [1, 512], strides = [1, 1]} : vector<8x512xf32> to vector<1x512xf32>
    %299 = vector.broadcast %298 : vector<1x512xf32> to vector<8x512xf32>
    %300 = arith.addf %297, %299 : vector<8x512xf32>
    %cst_67 = arith.constant 0.000000e+00 : f32
    %301 = vector.broadcast %cst_67 : f32 to vector<8x512xf32>
    %302 = arith.maximumf %300, %301 : vector<8x512xf32>
    %c5_i32_68 = arith.constant 5 : i32
    %303 = tpu.memref_slice %arg19[%c5_i32_68] : memref<6x!tpu.dma_semaphore, #tpu.memory_space<semaphore_mem>> -> memref<1x!tpu.dma_semaphore, #tpu.memory_space<semaphore_mem>>
    %304 = tpu.memref_squeeze %303 : memref<1x!tpu.dma_semaphore, #tpu.memory_space<semaphore_mem>> -> memref<!tpu.dma_semaphore, #tpu.memory_space<semaphore_mem>>
    tpu.wait_dma2 semaphore(%304 : memref<!tpu.dma_semaphore, #tpu.memory_space<semaphore_mem>>) src(%arg10 : memref<512x512xbf16, #tpu.memory_space<any>>) dst(%arg18 : memref<512x512xbf16, #tpu.memory_space<vmem>>)
    %305 = arith.truncf %302 : vector<8x512xf32> to vector<8x512xbf16>
    %c0_69 = arith.constant 0 : index
    %c0_70 = arith.constant 0 : index
    %306 = vector.load %arg18[%c0_69, %c0_70] : memref<512x512xbf16, #tpu.memory_space<vmem>>, vector<512x512xbf16>
    %cst_71 = arith.constant dense<0.000000e+00> : vector<8x512xf32>
    %307 = tpu.matmul %305, %306, %cst_71 {dimension_numbers = #tpu.dot_dimension_numbers<[1], [0], [0], [1], [0, 0, 1, 1], [], []>} : vector<8x512xbf16>, vector<512x512xbf16>, vector<8x512xf32> -> vector<8x512xf32>
    %308 = vector.extract_strided_slice %12 {offsets = [5, 0], sizes = [1, 512], strides = [1, 1]} : vector<8x512xf32> to vector<1x512xf32>
    %309 = vector.broadcast %308 : vector<1x512xf32> to vector<8x512xf32>
    %310 = arith.addf %307, %309 : vector<8x512xf32>
    %cst_72 = arith.constant 0.000000e+00 : f32
    %311 = vector.broadcast %cst_72 : f32 to vector<8x512xf32>
    %312 = arith.maximumf %310, %311 : vector<8x512xf32>
    %313 = vector.extract_strided_slice %12 {offsets = [6, 0], sizes = [1, 512], strides = [1, 1]} : vector<8x512xf32> to vector<1x512xf32>
    %314 = vector.broadcast %313 : vector<1x512xf32> to vector<8x512xf32>
    %315 = arith.mulf %312, %314 : vector<8x512xf32>
    %cst_73 = arith.constant dense<0.000000e+00> : vector<8xf32>
    %316 = vector.multi_reduction <add>, %315, %cst_73 [1] : vector<8x512xf32> to vector<8xf32>
    %317 = vector.shape_cast %316 : vector<8xf32> to vector<8x1xf32>
    %318 = vector.extract_strided_slice %12 {offsets = [7, 0], sizes = [1, 1], strides = [1, 1]} : vector<8x512xf32> to vector<1x1xf32>
    %319 = vector.broadcast %318 : vector<1x1xf32> to vector<8x1xf32>
    %320 = arith.addf %317, %319 : vector<8x1xf32>
    %c0_74 = arith.constant 0 : index
    %c0_75 = arith.constant 0 : index
    %321 = vector.load %arg11[%c0_74, %c0_75] : memref<8x1xf32, #tpu.memory_space<vmem>>, vector<8x1xf32>
    tpu.vector_store %arg11[%c0_74, %c0_75], %320 {strides = array<i32>} : memref<8x1xf32, #tpu.memory_space<vmem>>, vector<8x1xf32>,
    %322 = tpu.iota {dimensions = array<i32: 0>} : vector<8x1xi32>
    %323 = arith.sitofp %322 : vector<8x1xi32> to vector<8x1xf32>
    %cst_76 = arith.constant dense<0xFF800000> : vector<1xf32>
    %324 = vector.multi_reduction <maximumf>, %320, %cst_76 [0] : vector<8x1xf32> to vector<1xf32>
    %325 = vector.shape_cast %324 : vector<1xf32> to vector<1x1xf32>
    %326 = vector.broadcast %325 : vector<1x1xf32> to vector<8x1xf32>
    %327 = arith.cmpf oge, %320, %326 : vector<8x1xf32>
    %cst_77 = arith.constant 8.000000e+00 : f32
    %328 = vector.broadcast %cst_77 : f32 to vector<8x1xf32>
    %329 = arith.select %327, %323, %328 : vector<8x1xi1>, vector<8x1xf32>
    %cst_78 = arith.constant dense<0x7F800000> : vector<1xf32>
    %330 = vector.multi_reduction <minimumf>, %329, %cst_78 [0] : vector<8x1xf32> to vector<1xf32>
    %331 = vector.shape_cast %330 : vector<1xf32> to vector<1x1xf32>
    %332 = arith.fptosi %331 : vector<1x1xf32> to vector<1x1xi32>
    %c0_79 = arith.constant 0 : index
    %c0_80 = arith.constant 0 : index
    %333 = vector.load %arg12[%c0_79, %c0_80] : memref<1x1xi32, #tpu.memory_space<vmem>>, vector<1x1xi32>
    tpu.vector_store %arg12[%c0_79, %c0_80], %332 {strides = array<i32>} : memref<1x1xi32, #tpu.memory_space<vmem>>, vector<1x1xi32>,
    return
  }
}

</mosaic_0001>

<llo_original>
// kernel: farmer_lstm_forward.1
$region0: #{farmer_lstm_forward.1}
  #allocation0 [shape = 'u32[]', space=smem, size = 0x4, offset = 0x4, fixed_abs, tag = 'smem constant byte address 0x4 - core index']
  #allocation1 [shape = 'u32[144,128]{1,0:T(1,128)}', space=vmem, size = 0x12000, scoped, tag = 'internal scratch']
  #allocation2 [shape = 'bf16[128,512]{1,0:T(16,128)(2,1)}', space=vmem, size = 0x20000, scoped, tag = 'scratch operand']
  #allocation3 [shape = 'bf16[484,512]{1,0:T(8,128)(2,1)}', space=vmem, size = 0x7a000, scoped, tag = 'scratch operand']
  #allocation4 [shape = 'bf16[512,512]{1,0:T(16,128)(2,1)}', space=vmem, size = 0x80000, scoped, tag = 'scratch operand']
  #allocation5 [shape = 'bf16[512,512]{1,0:T(16,128)(2,1)}', space=vmem, size = 0x80000, scoped, tag = 'scratch operand']
  #allocation6 [shape = 'bf16[512,512]{1,0:T(16,128)(2,1)}', space=vmem, size = 0x80000, scoped, tag = 'scratch operand']
  #allocation7 [shape = 'bf16[512,512]{1,0:T(16,128)(2,1)}', space=vmem, size = 0x80000, scoped, tag = 'scratch operand']
  #allocation8 [shape = 's32[6]{0}', space=sflag, size = 0x18, scoped, tag = 'scratch operand']
  #allocation15 [shape = 's32[]', space=sflag, size = 0x4, offset = 0, fixed_abs, tag = 'sflag constant byte address 0x0 - dummy sync flag']
  #allocation16 [shape = 's32[]', space=sflag, size = 0x4, offset = 0, fixed_abs, tag = 'sflag constant byte address 0x0 - dummy sync flag']
  #allocation17 [shape = 'u32[]', space=smem, size = 0x4, offset = 0x44, fixed_abs, tag = 'smem constant byte address 0x44 - assertion arg 0']
  #allocation18 [shape = 'u32[]', space=smem, size = 0x4, offset = 0x48, fixed_abs, tag = 'smem constant byte address 0x48 - assertion arg 1']
  #allocation19 [shape = 's32[]', space=sflag, size = 0x4, offset = 0, fixed_abs, tag = 'sflag constant byte address 0x0 - dummy sync flag']
  #allocation21 [shape = 's32[]', space=sflag, size = 0x4, offset = 0, fixed_abs, tag = 'sflag constant byte address 0x0 - dummy sync flag']
  #allocation23 [shape = 's32[]', space=sflag, size = 0x4, offset = 0, fixed_abs, tag = 'sflag constant byte address 0x0 - dummy sync flag']
  #allocation25 [shape = 's32[]', space=sflag, size = 0x4, offset = 0, fixed_abs, tag = 'sflag constant byte address 0x0 - dummy sync flag']
  #allocation27 [shape = 's32[]', space=sflag, size = 0x4, offset = 0, fixed_abs, tag = 'sflag constant byte address 0x0 - dummy sync flag']
  %s0 = inlined_call_operand.vmem [shape: f32[8,8,162], index: 0, kind: input, shape index: {}]
  %s1 = inlined_call_operand.vmem [shape: f32[8,484], index: 1, kind: input, shape index: {}]
  %s2 = inlined_call_operand.hbm [shape: bf16[162,512], index: 2, kind: input, shape index: {}]
  %s3 = inlined_call_operand.vmem [shape: bf16[128,512], index: 3, kind: input, shape index: {}]
  %s4 = inlined_call_operand.hbm [shape: f32[8,512], index: 4, kind: input, shape index: {}]
  %s5 = inlined_call_operand.hbm [shape: bf16[128,512], index: 5, kind: input, shape index: {}]
  %s6 = inlined_call_operand.hbm [shape: bf16[484,512], index: 6, kind: input, shape index: {}]
  %s7 = inlined_call_operand.hbm [shape: bf16[512,512], index: 7, kind: input, shape index: {}]
  %s8 = inlined_call_operand.hbm [shape: bf16[512,512], index: 8, kind: input, shape index: {}]
  %s9 = inlined_call_operand.hbm [shape: bf16[512,512], index: 9, kind: input, shape index: {}]
  %s10 = inlined_call_operand.hbm [shape: bf16[512,512], index: 10, kind: input, shape index: {}]
  %s11 = inlined_call_operand.vmem [shape: f32[8,1], index: 11, kind: output, shape index: {0}]
  %s12 = inlined_call_operand.hbm [shape: s32[1,1], index: 12, kind: output, shape index: {1}]
  %13 = xla_tuple %s11, %s12
  %s14 = sld [smem:[#allocation0]]
  $region50: #{farmer_lstm_forward.1} parent=0
    _
  %s16 = ssub.s32 1, %s14
  %s17 = scalar_select 0, %s16, %s14
  $region1: #{farmer_lstm_forward.1} parent=0
    #allocation9 [shape = 'u8[172032]{0}', space=vmem, size = 0x2a000, scoped, tag = 'input window, operand 2, single buffered']
    #allocation10 [shape = 's32[1]{0}', space=sflag, size = 0x4, scoped, tag = 'scoped memory for farmer_lstm_forward.1']
    #allocation11 [shape = 's32[1]{0}', space=sflag, size = 0x4, scoped, tag = 'scoped memory for farmer_lstm_forward.1']
    #allocation12 [shape = 'u8[16384]{0}', space=vmem, size = 0x4000, scoped, tag = 'input window, operand 4, single buffered']
    #allocation13 [shape = 's32[1]{0}', space=sflag, size = 0x4, scoped, tag = 'scoped memory for farmer_lstm_forward.1']
    #allocation14 [shape = 'u8[512]{0}', space=vmem, size = 0x400, scoped, tag = 'output window, operand 1, single buffered']
    #allocation20 [shape = 'u32[9]{0}', space=smem, size = 0x24, scoped, tag = 'DMA stride descriptor']
    #allocation22 [shape = 'u32[9]{0}', space=smem, size = 0x24, scoped, tag = 'DMA stride descriptor']
    #allocation24 [shape = 'u32[9]{0}', space=smem, size = 0x24, scoped, tag = 'DMA stride descriptor']
    #allocation26 [shape = 'u32[9]{0}', space=smem, size = 0x24, scoped, tag = 'DMA stride descriptor']
    #allocation28 [shape = 'u32[9]{0}', space=smem, size = 0x24, scoped, tag = 'DMA stride descriptor']
    %18 = vsyncpa [#allocation10], 0
    %19 = vsyncpa [#allocation13], 0
    %20 = vsyncpa [#allocation11], 0
    // Predicated region
    $region2: #{farmer_lstm_forward.1} parent=1 // pred_check
      _
    $region3: #{farmer_lstm_forward.1} parent=1 // pred_check_branch
      %22 = sbr.rel (0) target = $region5
    $region4: #{farmer_lstm_forward.1} parent=1 // pred_region
      _
    $region5: #{farmer_lstm_forward.1} parent=1 // pred_fallthru
      _
    // Predicated region
    $region6: #{farmer_lstm_forward.1} parent=1 // pred_check
      _
    $region7: #{farmer_lstm_forward.1} parent=1 // pred_check_branch
      %24 = sbr.rel (0) target = $region9
    $region8: #{farmer_lstm_forward.1} parent=1 // pred_region
      _
    $region9: #{farmer_lstm_forward.1} parent=1 // pred_fallthru
      _
    // Predicated region
    $region10: #{farmer_lstm_forward.1} parent=1 // pred_check
      _
    $region11: #{farmer_lstm_forward.1} parent=1 // pred_check_branch
      %26 = sbr.rel (0) target = $region13
    $region12: #{farmer_lstm_forward.1} parent=1 // pred_region
      %s28 = ssub.s32 5376, 5376
      %29 = vsyncadd [#allocation10], %s28
      %s30 = sshll.u32 [#allocation9], 4
      %s31 = int_to_ptr.vmem [resolvable:$true] %s30
      %36 = dma.hbm_to_vmem [thread:$0]  %s2, 5376, %s31, [#allocation10], 256, 256, 16
    $region13: #{farmer_lstm_forward.1} parent=1 // pred_fallthru
      _
    // Predicated region
    $region14: #{farmer_lstm_forward.1} parent=1 // pred_check
      _
    $region15: #{farmer_lstm_forward.1} parent=1 // pred_check_branch
      %38 = sbr.rel (0) target = $region17
    $region16: #{farmer_lstm_forward.1} parent=1 // pred_region
      _
    $region17: #{farmer_lstm_forward.1} parent=1 // pred_fallthru
      _
    // Predicated region
    $region18: #{farmer_lstm_forward.1} parent=1 // pred_check
      _
    $region19: #{farmer_lstm_forward.1} parent=1 // pred_check_branch
      %40 = sbr.rel (0) target = $region21
    $region20: #{farmer_lstm_forward.1} parent=1 // pred_region
      %s42 = ssub.s32 512, 512
      %43 = vsyncadd [#allocation13], %s42
      %s45 = sshll.u32 [#allocation12], 4
      %s46 = int_to_ptr.vmem [resolvable:$true] %s45
      %48 = dma.hbm_to_vmem [thread:$0]  %s4, 512, %s46, [#allocation13]
    $region21: #{farmer_lstm_forward.1} parent=1 // pred_fallthru
      _
    // Predicated region
    $region22: #{farmer_lstm_forward.1} parent=1 // pred_check
      _
    $region23: #{farmer_lstm_forward.1} parent=1 // pred_check_branch
      %50 = sbr.rel (0) target = $region25
    $region24: #{farmer_lstm_forward.1} parent=1 // pred_region
      %51 = dma.done [#allocation10], 5376
    $region25: #{farmer_lstm_forward.1} parent=1 // pred_fallthru
      _
    // Predicated region
    $region26: #{farmer_lstm_forward.1} parent=1 // pred_check
      _
    $region27: #{farmer_lstm_forward.1} parent=1 // pred_check_branch
      %53 = sbr.rel (0) target = $region29
    $region28: #{farmer_lstm_forward.1} parent=1 // pred_region
      %54 = dma.done [#allocation13], 512
    $region29: #{farmer_lstm_forward.1} parent=1 // pred_fallthru
      _
    // Predicated region
    $region30: #{farmer_lstm_forward.1} parent=1 // pred_check
      _
    $region31: #{farmer_lstm_forward.1} parent=1 // pred_check_branch
      %57 = sbr.rel target = $region33
    $region32: #{farmer_lstm_forward.1} parent=1 // pred_region
      %58 = sst [smem:[#allocation17]] [#allocation16]
      %59 = sst [smem:[#allocation18]] [#allocation15]
    $region33: #{farmer_lstm_forward.1} parent=1 // pred_fallthru
      _
    %61 = shalt.err (0)
    %s63 = sshll.u32 [#allocation3], 4
    %s64 = int_to_ptr.vmem [resolvable:$true] %s63
    %66 = dma.hbm_to_vmem [thread:$0]  %s6, 15616, %s64, [#allocation8]
    %s67 = scalar_lea.sflag [#allocation8], 1
    %s69 = sshll.u32 1, 14
    %s70 = sxor.u32 4294967295, %s69
    %s72 = sld [smem:[#allocation0]]
    %s73 = sadd.s32 2, %s72
    %s75 = sshll.u32 7, 26
    %s76 = sxor.u32 4294967295, %s75
    %s77 = sand.u32 0, %s76
    %s78 = sshll.u32 %s73, 26
    %s79 = sor.u32 %s77, %s78
    %s80 = sshll.u32 [#allocation2], 4
    %s81 = int_to_ptr.vmem [resolvable:$true] %s80
    %84 = sst [smem:[#allocation20]] 512
    %s85 = scalar_lea.smem [#allocation20], 1
    %86 = sst [smem:[%s85]] 512
    %s87 = scalar_lea.smem [#allocation20], 2
    %88 = sst [smem:[%s87]] 4
    %s89 = scalar_lea.smem [#allocation20], 3
    %90 = sst [smem:[%s89]] 64
    %s91 = scalar_lea.smem [#allocation20], 4
    %92 = sst [smem:[%s91]] 128
    %s93 = scalar_lea.smem [#allocation20], 5
    %94 = sst [smem:[%s93]] 2
    %s95 = scalar_lea.smem [#allocation20], 6
    %96 = sst [smem:[%s95]] 256
    %s97 = scalar_lea.smem [#allocation20], 7
    %98 = sst [smem:[%s97]] 64
    %s99 = scalar_lea.smem [#allocation20], 8
    %100 = sst [smem:[%s99]] 4
    %102 = dma.general %s5, 4096, %s81, %s67, [#allocation19], [#allocation20], %s79, 0
    %s103 = scalar_lea.sflag [#allocation8], 2
    %s105 = sshll.u32 1, 14
    %s106 = sxor.u32 4294967295, %s105
    %s108 = sadd.s32 2, %s72
    %s110 = sshll.u32 7, 26
    %s111 = sxor.u32 4294967295, %s110
    %s112 = sand.u32 0, %s111
    %s113 = sshll.u32 %s108, 26
    %s114 = sor.u32 %s112, %s113
    %s115 = sshll.u32 [#allocation4], 4
    %s116 = int_to_ptr.vmem [resolvable:$true] %s115
    %119 = sst [smem:[#allocation22]] 512
    %s120 = scalar_lea.smem [#allocation22], 1
    %121 = sst [smem:[%s120]] 512
    %s122 = scalar_lea.smem [#allocation22], 2
    %123 = sst [smem:[%s122]] 4
    %s124 = scalar_lea.smem [#allocation22], 3
    %125 = sst [smem:[%s124]] 64
    %s126 = scalar_lea.smem [#allocation22], 4
    %127 = sst [smem:[%s126]] 128
    %s128 = scalar_lea.smem [#allocation22], 5
    %129 = sst [smem:[%s128]] 2
    %s130 = scalar_lea.smem [#allocation22], 6
    %131 = sst [smem:[%s130]] 256
    %s132 = scalar_lea.smem [#allocation22], 7
    %133 = sst [smem:[%s132]] 64
    %s134 = scalar_lea.smem [#allocation22], 8
    %135 = sst [smem:[%s134]] 4
    %137 = dma.general %s7, 16384, %s116, %s103, [#allocation21], [#allocation22], %s114, 0
    %s138 = scalar_lea.sflag [#allocation8], 3
    %s140 = sshll.u32 1, 14
    %s141 = sxor.u32 4294967295, %s140
    %s143 = sadd.s32 2, %s72
    %s145 = sshll.u32 7, 26
    %s146 = sxor.u32 4294967295, %s145
    %s147 = sand.u32 0, %s146
    %s148 = sshll.u32 %s143, 26
    %s149 = sor.u32 %s147, %s148
    %s150 = sshll.u32 [#allocation5], 4
    %s151 = int_to_ptr.vmem [resolvable:$true] %s150
    %154 = sst [smem:[#allocation24]] 512
    %s155 = scalar_lea.smem [#allocation24], 1
    %156 = sst [smem:[%s155]] 512
    %s157 = scalar_lea.smem [#allocation24], 2
    %158 = sst [smem:[%s157]] 4
    %s159 = scalar_lea.smem [#allocation24], 3
    %160 = sst [smem:[%s159]] 64
    %s161 = scalar_lea.smem [#allocation24], 4
    %162 = sst [smem:[%s161]] 128
    %s163 = scalar_lea.smem [#allocation24], 5
    %164 = sst [smem:[%s163]] 2
    %s165 = scalar_lea.smem [#allocation24], 6
    %166 = sst [smem:[%s165]] 256
    %s167 = scalar_lea.smem [#allocation24], 7
    %168 = sst [smem:[%s167]] 64
    %s169 = scalar_lea.smem [#allocation24], 8
    %170 = sst [smem:[%s169]] 4
    %172 = dma.general %s8, 16384, %s151, %s138, [#allocation23], [#allocation24], %s149, 0
    %s173 = scalar_lea.sflag [#allocation8], 4
    %s175 = sshll.u32 1, 14
    %s176 = sxor.u32 4294967295, %s175
    %s178 = sadd.s32 2, %s72
    %s180 = sshll.u32 7, 26
    %s181 = sxor.u32 4294967295, %s180
    %s182 = sand.u32 0, %s181
    %s183 = sshll.u32 %s178, 26
    %s184 = sor.u32 %s182, %s183
    %s185 = sshll.u32 [#allocation6], 4
    %s186 = int_to_ptr.vmem [resolvable:$true] %s185
    %189 = sst [smem:[#allocation26]] 512
    %s190 = scalar_lea.smem [#allocation26], 1
    %191 = sst [smem:[%s190]] 512
    %s192 = scalar_lea.smem [#allocation26], 2
    %193 = sst [smem:[%s192]] 4
    %s194 = scalar_lea.smem [#allocation26], 3
    %195 = sst [smem:[%s194]] 64
    %s196 = scalar_lea.smem [#allocation26], 4
    %197 = sst [smem:[%s196]] 128
    %s198 = scalar_lea.smem [#allocation26], 5
    %199 = sst [smem:[%s198]] 2
    %s200 = scalar_lea.smem [#allocation26], 6
    %201 = sst [smem:[%s200]] 256
    %s202 = scalar_lea.smem [#allocation26], 7
    %203 = sst [smem:[%s202]] 64
    %s204 = scalar_lea.smem [#allocation26], 8
    %205 = sst [smem:[%s204]] 4
    %207 = dma.general %s9, 16384, %s186, %s173, [#allocation25], [#allocation26], %s184, 0
    %s208 = scalar_lea.sflag [#allocation8], 5
    %s210 = sshll.u32 1, 14
    %s211 = sxor.u32 4294967295, %s210
    %s213 = sadd.s32 2, %s72
    %s215 = sshll.u32 7, 26
    %s216 = sxor.u32 4294967295, %s215
    %s217 = sand.u32 0, %s216
    %s218 = sshll.u32 %s213, 26
    %s219 = sor.u32 %s217, %s218
    %s220 = sshll.u32 [#allocation7], 4
    %s221 = int_to_ptr.vmem [resolvable:$true] %s220
    %224 = sst [smem:[#allocation28]] 512
    %s225 = scalar_lea.smem [#allocation28], 1
    %226 = sst [smem:[%s225]] 512
    %s227 = scalar_lea.smem [#allocation28], 2
    %228 = sst [smem:[%s227]] 4
    %s229 = scalar_lea.smem [#allocation28], 3
    %230 = sst [smem:[%s229]] 64
    %s231 = scalar_lea.smem [#allocation28], 4
    %232 = sst [smem:[%s231]] 128
    %s233 = scalar_lea.smem [#allocation28], 5
    %234 = sst [smem:[%s233]] 2
    %s235 = scalar_lea.smem [#allocation28], 6
    %236 = sst [smem:[%s235]] 256
    %s237 = scalar_lea.smem [#allocation28], 7
    %238 = sst [smem:[%s237]] 64
    %s239 = scalar_lea.smem [#allocation28], 8
    %240 = sst [smem:[%s239]] 4
    %242 = dma.general %s10, 16384, %s221, %s208, [#allocation27], [#allocation28], %s219, 0
    %v243 = vld [vmem:[#allocation12] sm:$0xff]
    %v244 = vld [vmem:[#allocation12 + $0x8] sm:$0xff]
    %v245 = vld [vmem:[#allocation12 + $0x10] sm:$0xff]
    %v246 = vld [vmem:[#allocation12 + $0x18] sm:$0xff]
    %v247 = vld [vmem:[#allocation9] sm:$0xff]
    %v248 = vld [vmem:[#allocation9 + $0x8] sm:$0xff]
    %v249 = vld [vmem:[#allocation9 + $0x10] sm:$0xff]
    %v250 = vld [vmem:[#allocation9 + $0x18] sm:$0xff]
    %v251 = vld [vmem:[#allocation9 + $0x20] sm:$0xff]
    %v252 = vld [vmem:[#allocation9 + $0x28] sm:$0xff]
    %v253 = vld [vmem:[#allocation9 + $0x30] sm:$0xff]
    %v254 = vld [vmem:[#allocation9 + $0x38] sm:$0xff]
    %v255 = vld [vmem:[#allocation9 + $0x40] sm:$0xff]
    %v256 = vld [vmem:[#allocation9 + $0x48] sm:$0xff]
    %v257 = vld [vmem:[#allocation9 + $0x50] sm:$0xff]
    %v258 = vld [vmem:[#allocation9 + $0x58] sm:$0xff]
    %v259 = vld [vmem:[#allocation9 + $0x60] sm:$0xff]
    %v260 = vld [vmem:[#allocation9 + $0x68] sm:$0xff]
    %v261 = vld [vmem:[#allocation9 + $0x70] sm:$0xff]
    %v262 = vld [vmem:[#allocation9 + $0x78] sm:$0xff]
    %v263 = vld [vmem:[#allocation9 + $0x80] sm:$0xff]
    %v264 = vld [vmem:[#allocation9 + $0x88] sm:$0xff]
    %v265 = vld [vmem:[#allocation9 + $0x90] sm:$0xff]
    %v266 = vld [vmem:[#allocation9 + $0x98] sm:$0xff]
    %v267 = vld [vmem:[#allocation9 + $0xa0] sm:$0xff]
    %v268 = vld [vmem:[#allocation9 + $0xa8] sm:$0xff]
    %v269 = vld [vmem:[#allocation9 + $0xb0] sm:$0xff]
    %v270 = vld [vmem:[#allocation9 + $0xb8] sm:$0xff]
    %v271 = vld [vmem:[#allocation9 + $0xc0] sm:$0xff]
    %v272 = vld [vmem:[#allocation9 + $0xc8] sm:$0xff]
    %v273 = vld [vmem:[#allocation9 + $0xd0] sm:$0xff]
    %v274 = vld [vmem:[#allocation9 + $0xd8] sm:$0xff]
    %v275 = vld [vmem:[#allocation9 + $0xe0] sm:$0xff]
    %v276 = vld [vmem:[#allocation9 + $0xe8] sm:$0xff]
    %v277 = vld [vmem:[#allocation9 + $0xf0] sm:$0xff]
    %v278 = vld [vmem:[#allocation9 + $0xf8] sm:$0xff]
    %v279 = vld [vmem:[#allocation9 + $0x100] sm:$0xff]
    %v280 = vld [vmem:[#allocation9 + $0x108] sm:$0xff]
    %v281 = vld [vmem:[#allocation9 + $0x110] sm:$0xff]
    %v282 = vld [vmem:[#allocation9 + $0x118] sm:$0xff]
    %v283 = vld [vmem:[#allocation9 + $0x120] sm:$0xff]
    %v284 = vld [vmem:[#allocation9 + $0x128] sm:$0xff]
    %v285 = vld [vmem:[#allocation9 + $0x130] sm:$0xff]
    %v286 = vld [vmem:[#allocation9 + $0x138] sm:$0xff]
    %v287 = vld [vmem:[#allocation9 + $0x140] sm:$0x11]
    %v288 = vld [vmem:[#allocation9 + $0x148] sm:$0x11]
    %v289 = vld [vmem:[%s0] sm:$0xff]
    %v290 = vld [vmem:[%s0 + $0x8] sm:$0xff]
    %v291 = vld [vmem:[%s0 + $0x10] sm:$0xff]
    %v292 = vld [vmem:[%s0 + $0x18] sm:$0xff]
    %v293 = vld [vmem:[%s0 + $0x20] sm:$0xff]
    %v294 = vld [vmem:[%s0 + $0x28] sm:$0xff]
    %v295 = vld [vmem:[%s0 + $0x30] sm:$0xff]
    %v296 = vld [vmem:[%s0 + $0x38] sm:$0xff]
    %v297 = vld [vmem:[%s0 + $0x40] sm:$0xff]
    %v298 = vld [vmem:[%s0 + $0x48] sm:$0xff]
    %v299 = vld [vmem:[%s0 + $0x50] sm:$0xff]
    %v300 = vld [vmem:[%s0 + $0x58] sm:$0xff]
    %v301 = vld [vmem:[%s0 + $0x60] sm:$0xff]
    %v302 = vld [vmem:[%s0 + $0x68] sm:$0xff]
    %v303 = vld [vmem:[%s0 + $0x70] sm:$0xff]
    %v304 = vld [vmem:[%s0 + $0x78] sm:$0xff]
    %v305 = vpack.c.bf16 %v291, %v289
    %v306 = vpack.c.bf16 %v292, %v290
    %v307 = vpack.c.bf16 %v295, %v293
    %v308 = vpack.c.bf16 %v296, %v294
    %v309 = vpack.c.bf16 %v299, %v297
    %v310 = vpack.c.bf16 %v300, %v298
    %v311 = vpack.c.bf16 %v303, %v301
    %v312 = vpack.c.bf16 %v304, %v302
    %v313 = vlaneseq
    %v314 = vshrl.u32 %v313, 7
    %v315 = vsub.s32 0, %v314
    %v316 = vrot.slane %v243, %v315
    %v317 = vlaneseq
    %v318 = vshrl.u32 %v317, 7
    %v319 = vsub.s32 0, %v318
    %v320 = vrot.slane %v244, %v319
    %v321 = vlaneseq
    %v322 = vshrl.u32 %v321, 7
    %v323 = vsub.s32 0, %v322
    %v324 = vrot.slane %v245, %v323
    %v325 = vlaneseq
    %v326 = vshrl.u32 %v325, 7
    %v327 = vsub.s32 0, %v326
    %v328 = vrot.slane %v246, %v327
    %v371 = vunpack.c.l.b16 %v247
    %v372 = vunpack.c.h.b16 %v247
    %v373 = vunpack.c.l.b16 %v248
    %v374 = vunpack.c.h.b16 %v248
    %v375 = vunpack.c.l.b16 %v249
    %v376 = vunpack.c.h.b16 %v249
    %v377 = vunpack.c.l.b16 %v250
    %v378 = vunpack.c.h.b16 %v250
    %v379 = vunpack.c.l.b16 %v251
    %v380 = vunpack.c.h.b16 %v251
    %v381 = vunpack.c.l.b16 %v252
    %v382 = vunpack.c.h.b16 %v252
    %v383 = vunpack.c.l.b16 %v253
    %v384 = vunpack.c.h.b16 %v253
    %v385 = vunpack.c.l.b16 %v254
    %v386 = vunpack.c.h.b16 %v254
    %v387 = vunpack.c.l.b16 %v255
    %v388 = vunpack.c.h.b16 %v255
    %v389 = vunpack.c.l.b16 %v256
    %v390 = vunpack.c.h.b16 %v256
    %v391 = vunpack.c.l.b16 %v257
    %v392 = vunpack.c.h.b16 %v257
    %v393 = vunpack.c.l.b16 %v258
    %v394 = vunpack.c.h.b16 %v258
    %v395 = vunpack.c.l.b16 %v259
    %v396 = vunpack.c.h.b16 %v259
    %v397 = vunpack.c.l.b16 %v260
    %v398 = vunpack.c.h.b16 %v260
    %v399 = vunpack.c.l.b16 %v261
    %v400 = vunpack.c.h.b16 %v261
    %v401 = vunpack.c.l.b16 %v262
    %v402 = vunpack.c.h.b16 %v262
    %v403 = vunpack.c.l.b16 %v263
    %v404 = vunpack.c.h.b16 %v263
    %v405 = vunpack.c.l.b16 %v264
    %v406 = vunpack.c.h.b16 %v264
    %v407 = vunpack.c.l.b16 %v265
    %v408 = vunpack.c.h.b16 %v265
    %v409 = vunpack.c.l.b16 %v266
    %v410 = vunpack.c.h.b16 %v266
    %v411 = vunpack.c.l.b16 %v267
    %v412 = vunpack.c.h.b16 %v267
    %v413 = vunpack.c.l.b16 %v268
    %v414 = vunpack.c.h.b16 %v268
    %v415 = vunpack.c.l.b16 %v269
    %v416 = vunpack.c.h.b16 %v269
    %v417 = vunpack.c.l.b16 %v270
    %v418 = vunpack.c.h.b16 %v270
    %v419 = vunpack.c.l.b16 %v271
    %v420 = vunpack.c.h.b16 %v271
    %v421 = vunpack.c.l.b16 %v272
    %v422 = vunpack.c.h.b16 %v272
    %v423 = vunpack.c.l.b16 %v273
    %v424 = vunpack.c.h.b16 %v273
    %v425 = vunpack.c.l.b16 %v274
    %v426 = vunpack.c.h.b16 %v274
    %v427 = vunpack.c.l.b16 %v275
    %v428 = vunpack.c.h.b16 %v275
    %v429 = vunpack.c.l.b16 %v276
    %v430 = vunpack.c.h.b16 %v276
    %v431 = vunpack.c.l.b16 %v277
    %v432 = vunpack.c.h.b16 %v277
    %v433 = vunpack.c.l.b16 %v278
    %v434 = vunpack.c.h.b16 %v278
    %v435 = vunpack.c.l.b16 %v279
    %v436 = vunpack.c.h.b16 %v279
    %v437 = vunpack.c.l.b16 %v280
    %v438 = vunpack.c.h.b16 %v280
    %v439 = vunpack.c.l.b16 %v281
    %v440 = vunpack.c.h.b16 %v281
    %v441 = vunpack.c.l.b16 %v282
    %v442 = vunpack.c.h.b16 %v282
    %v443 = vunpack.c.l.b16 %v283
    %v444 = vunpack.c.h.b16 %v283
    %v445 = vunpack.c.l.b16 %v284
    %v446 = vunpack.c.h.b16 %v284
    %v447 = vunpack.c.l.b16 %v285
    %v448 = vunpack.c.h.b16 %v285
    %v449 = vunpack.c.l.b16 %v286
    %v450 = vunpack.c.h.b16 %v286
    %v451 = vunpack.c.l.b16 %v287
    %v452 = vunpack.c.h.b16 %v287
    %v453 = vunpack.c.l.b16 %v288
    %v454 = vunpack.c.h.b16 %v288
    %v455 = vpack.c.b16 %v375, %v371
    %v456 = vpack.c.b16 %v376, %v372
    %v457 = vpack.c.b16 %v377, %v373
    %v458 = vpack.c.b16 %v378, %v374
    %v459 = vpack.c.b16 %v383, %v379
    %v460 = vpack.c.b16 %v384, %v380
    %v461 = vpack.c.b16 %v385, %v381
    %v462 = vpack.c.b16 %v386, %v382
    %v463 = vpack.c.b16 %v391, %v387
    %v464 = vpack.c.b16 %v392, %v388
    %v465 = vpack.c.b16 %v393, %v389
    %v466 = vpack.c.b16 %v394, %v390
    %v467 = vpack.c.b16 %v399, %v395
    %v468 = vpack.c.b16 %v400, %v396
    %v469 = vpack.c.b16 %v401, %v397
    %v470 = vpack.c.b16 %v402, %v398
    %v471 = vpack.c.b16 %v407, %v403
    %v472 = vpack.c.b16 %v408, %v404
    %v473 = vpack.c.b16 %v409, %v405
    %v474 = vpack.c.b16 %v410, %v406
    %v475 = vpack.c.b16 %v415, %v411
    %v476 = vpack.c.b16 %v416, %v412
    %v477 = vpack.c.b16 %v417, %v413
    %v478 = vpack.c.b16 %v418, %v414
    %v479 = vpack.c.b16 %v423, %v419
    %v480 = vpack.c.b16 %v424, %v420
    %v481 = vpack.c.b16 %v425, %v421
    %v482 = vpack.c.b16 %v426, %v422
    %v483 = vpack.c.b16 %v431, %v427
    %v484 = vpack.c.b16 %v432, %v428
    %v485 = vpack.c.b16 %v433, %v429
    %v486 = vpack.c.b16 %v434, %v430
    %v487 = vpack.c.b16 %v439, %v435
    %v488 = vpack.c.b16 %v440, %v436
    %v489 = vpack.c.b16 %v441, %v437
    %v490 = vpack.c.b16 %v442, %v438
    %v491 = vpack.c.b16 %v447, %v443
    %v492 = vpack.c.b16 %v448, %v444
    %v493 = vpack.c.b16 %v449, %v445
    %v494 = vpack.c.b16 %v450, %v446
    %v495 = vpack.c.b16 %v451, %v451
    %v496 = vpack.c.b16 %v452, %v452
    %v497 = vpack.c.b16 %v453, %v453
    %v498 = vpack.c.b16 %v454, %v454
    %vm539 = vcmask 277504
    %v541 = vsel %vm539, %v306, 0
    %v544 = vsel %vm539, %v308, 0
    %v547 = vsel %vm539, %v310, 0
    %v550 = vsel %vm539, %v312, 0
    %vm552 = vcmask 1040384
    %v554 = vsel %vm552, %v495, 0
    %v557 = vsel %vm552, %v496, 0
    %v560 = vsel %vm552, %v497, 0
    %v563 = vsel %vm552, %v498, 0
    %565 = vmatprep.subr.bf16.mxu0 %v456
    %566 = vmatpush1.bf16.msra.mxu0 %v455
    %567 = vmatprep.subr.bf16.mxu0 %v460
    %568 = vmatpush1.bf16.msra.mxu0 %v459
    %569 = vmatprep.subr.bf16.mxu0 %v464
    %570 = vmatpush1.bf16.msra.mxu0 %v463
    %571 = vmatprep.subr.bf16.mxu0 %v468
    %572 = vmatpush1.bf16.msra.mxu0 %v467
    %573 = vmatprep.subr.bf16.mxu0 %v472
    %574 = vmatpush1.bf16.msra.mxu0 %v471
    %575 = vmatprep.subr.bf16.mxu0 %v476
    %576 = vmatpush1.bf16.msra.mxu0 %v475
    %577 = vmatprep.subr.bf16.mxu0 %v480
    %578 = vmatpush1.bf16.msra.mxu0 %v479
    %579 = vmatprep.subr.bf16.mxu0 %v484
    %580 = vmatpush1.bf16.msra.mxu0 %v483
    %581 = vmatprep.subr.bf16.mxu0 %v488
    %582 = vmatpush1.bf16.msra.mxu0 %v487
    %583 = vmatprep.subr.bf16.mxu0 %v492
    %584 = vmatpush1.bf16.msra.mxu0 %v491
    %585 = vmatprep.subr.bf16.mxu0 %v557
    %586 = vmatpush1.bf16.msra.mxu0 %v554
    %587 = vmatprep.subr.bf16.mxu0 0
    %588 = vmatpush1.bf16.msra.mxu0 0
    %589 = vmatprep.subr.bf16.mxu0 0
    %590 = vmatpush1.bf16.msra.mxu0 0
    %591 = vmatprep.subr.bf16.mxu0 0
    %592 = vmatpush1.bf16.msra.mxu0 0
    %593 = vmatprep.subr.bf16.mxu0 0
    %594 = vmatpush1.bf16.msra.mxu0 0
    %595 = vmatprep.subr.bf16.mxu0 0
    %596 = vmatpush1.bf16.msra.mxu0 0
    %597 = vmatprep.mubr.bf16.mxu0 %v541
    %598 = vmatmul.mubr.bf16.gmra.mrb[0].mxu0 %v305
    %v599 = vpop.f32.mrb[0].mxu0
    %v600 = vadd.f32 %v316, %v599
    %v601 = vpop.f32.mrb[0].mxu0
    %v602 = vadd.f32 %v320, %v601
    %v603 = vpop.f32.mrb[0].mxu0
    %v604 = vadd.f32 %v316, %v603
    %v605 = vpop.f32.mrb[0].mxu0
    %v606 = vadd.f32 %v320, %v605
    %607 = vmatprep.mubr.bf16.mxu0 %v544
    %608 = vmatmul.mubr.bf16.gmra.mrb[0].mxu0 %v307
    %v609 = vpop.f32.mrb[0].mxu0
    %v610 = vadd.f32 %v316, %v609
    %v611 = vpop.f32.mrb[0].mxu0
    %v612 = vadd.f32 %v320, %v611
    %v613 = vpop.f32.mrb[0].mxu0
    %v614 = vadd.f32 %v316, %v613
    %v615 = vpop.f32.mrb[0].mxu0
    %v616 = vadd.f32 %v320, %v615
    %617 = vmatprep.mubr.bf16.mxu0 %v547
    %618 = vmatmul.mubr.bf16.gmra.mrb[0].mxu0 %v309
    %v619 = vpop.f32.mrb[0].mxu0
    %v620 = vadd.f32 %v316, %v619
    %v621 = vpop.f32.mrb[0].mxu0
    %v622 = vadd.f32 %v320, %v621
    %v623 = vpop.f32.mrb[0].mxu0
    %v624 = vadd.f32 %v316, %v623
    %v625 = vpop.f32.mrb[0].mxu0
    %v626 = vadd.f32 %v320, %v625
    %627 = vmatprep.mubr.bf16.mxu0 %v550
    %628 = vmatmul.mubr.bf16.gmra.mrb[0].mxu0 %v311
    %v629 = vpop.f32.mrb[0].mxu0
    %v630 = vadd.f32 %v316, %v629
    %v631 = vpop.f32.mrb[0].mxu0
    %v632 = vadd.f32 %v320, %v631
    %v633 = vpop.f32.mrb[0].mxu0
    %v634 = vadd.f32 %v316, %v633
    %v635 = vpop.f32.mrb[0].mxu0
    %v636 = vadd.f32 %v320, %v635
    %637 = vdwg.mxu0
    %638 = vmatprep.subr.bf16.mxu0 %v458
    %639 = vmatpush1.bf16.msra.mxu0 %v457
    %640 = vmatprep.subr.bf16.mxu0 %v462
    %641 = vmatpush1.bf16.msra.mxu0 %v461
    %642 = vmatprep.subr.bf16.mxu0 %v466
    %643 = vmatpush1.bf16.msra.mxu0 %v465
    %644 = vmatprep.subr.bf16.mxu0 %v470
    %645 = vmatpush1.bf16.msra.mxu0 %v469
    %646 = vmatprep.subr.bf16.mxu0 %v474
    %647 = vmatpush1.bf16.msra.mxu0 %v473
    %648 = vmatprep.subr.bf16.mxu0 %v478
    %649 = vmatpush1.bf16.msra.mxu0 %v477
    %650 = vmatprep.subr.bf16.mxu0 %v482
    %651 = vmatpush1.bf16.msra.mxu0 %v481
    %652 = vmatprep.subr.bf16.mxu0 %v486
    %653 = vmatpush1.bf16.msra.mxu0 %v485
    %654 = vmatprep.subr.bf16.mxu0 %v490
    %655 = vmatpush1.bf16.msra.mxu0 %v489
    %656 = vmatprep.subr.bf16.mxu0 %v494
    %657 = vmatpush1.bf16.msra.mxu0 %v493
    %658 = vmatprep.subr.bf16.mxu0 %v563
    %659 = vmatpush1.bf16.msra.mxu0 %v560
    %660 = vmatprep.subr.bf16.mxu0 0
    %661 = vmatpush1.bf16.msra.mxu0 0
    %662 = vmatprep.subr.bf16.mxu0 0
    %663 = vmatpush1.bf16.msra.mxu0 0
    %664 = vmatprep.subr.bf16.mxu0 0
    %665 = vmatpush1.bf16.msra.mxu0 0
    %666 = vmatprep.subr.bf16.mxu0 0
    %667 = vmatpush1.bf16.msra.mxu0 0
    %668 = vmatprep.subr.bf16.mxu0 0
    %669 = vmatpush1.bf16.msra.mxu0 0
    %670 = vmatprep.mubr.bf16.mxu0 %v541
    %671 = vmatmul.mubr.bf16.gmra.mrb[0].mxu0 %v305
    %v672 = vpop.f32.mrb[0].mxu0
    %v673 = vadd.f32 %v324, %v672
    %v674 = vpop.f32.mrb[0].mxu0
    %v675 = vadd.f32 %v328, %v674
    %v676 = vpop.f32.mrb[0].mxu0
    %v677 = vadd.f32 %v324, %v676
    %v678 = vpop.f32.mrb[0].mxu0
    %v679 = vadd.f32 %v328, %v678
    %680 = vmatprep.mubr.bf16.mxu0 %v544
    %681 = vmatmul.mubr.bf16.gmra.mrb[0].mxu0 %v307
    %v682 = vpop.f32.mrb[0].mxu0
    %v683 = vadd.f32 %v324, %v682
    %v684 = vpop.f32.mrb[0].mxu0
    %v685 = vadd.f32 %v328, %v684
    %v686 = vpop.f32.mrb[0].mxu0
    %v687 = vadd.f32 %v324, %v686
    %v688 = vpop.f32.mrb[0].mxu0
    %v689 = vadd.f32 %v328, %v688
    %690 = vmatprep.mubr.bf16.mxu0 %v547
    %691 = vmatmul.mubr.bf16.gmra.mrb[0].mxu0 %v309
    %v692 = vpop.f32.mrb[0].mxu0
    %v693 = vadd.f32 %v324, %v692
    %v694 = vpop.f32.mrb[0].mxu0
    %v695 = vadd.f32 %v328, %v694
    %v696 = vpop.f32.mrb[0].mxu0
    %v697 = vadd.f32 %v324, %v696
    %v698 = vpop.f32.mrb[0].mxu0
    %v699 = vadd.f32 %v328, %v698
    %700 = vmatprep.mubr.bf16.mxu0 %v550
    %701 = vmatmul.mubr.bf16.gmra.mrb[0].mxu0 %v311
    %v702 = vpop.f32.mrb[0].mxu0
    %v703 = vadd.f32 %v324, %v702
    %v704 = vpop.f32.mrb[0].mxu0
    %v705 = vadd.f32 %v328, %v704
    %v706 = vpop.f32.mrb[0].mxu0
    %v707 = vadd.f32 %v324, %v706
    %v708 = vpop.f32.mrb[0].mxu0
    %v709 = vadd.f32 %v328, %v708
    %710 = vdwg.mxu0
    %s711 = smul.u32 4, 61
    %s712 = smul.u32 %s711, 4
    %s713 = sshll.u32 %s712, 4
    %714 = dma.done [#allocation8], %s713
    %v715 = vld [vmem:[%s1] sm:$0xff]
    %v716 = vld [vmem:[%s1 + $0x8] sm:$0xff]
    %v717 = vld [vmem:[%s1 + $0x10] sm:$0xff]
    %v718 = vld [vmem:[%s1 + $0x18] sm:$0xff]
    %v719 = vpack.c.bf16 %v715, %v715
    %v720 = vpack.c.bf16 %v716, %v716
    %v721 = vpack.c.bf16 %v717, %v717
    %v722 = vpack.c.bf16 %v718, %v718
    %v723 = vld [vmem:[#allocation3] sm:$0xff]
    %v724 = vld [vmem:[#allocation3 + $0x8] sm:$0xff]
    %v725 = vld [vmem:[#allocation3 + $0x10] sm:$0xff]
    %v726 = vld [vmem:[#allocation3 + $0x18] sm:$0xff]
    %v727 = vld [vmem:[#allocation3 + $0x20] sm:$0xff]
    %v728 = vld [vmem:[#allocation3 + $0x28] sm:$0xff]
    %v729 = vld [vmem:[#allocation3 + $0x30] sm:$0xff]
    %v730 = vld [vmem:[#allocation3 + $0x38] sm:$0xff]
    %v731 = vld [vmem:[#allocation3 + $0x40] sm:$0xff]
    %v732 = vld [vmem:[#allocation3 + $0x48] sm:$0xff]
    %v733 = vld [vmem:[#allocation3 + $0x50] sm:$0xff]
    %v734 = vld [vmem:[#allocation3 + $0x58] sm:$0xff]
    %v735 = vld [vmem:[#allocation3 + $0x60] sm:$0xff]
    %v736 = vld [vmem:[#allocation3 + $0x68] sm:$0xff]
    %v737 = vld [vmem:[#allocation3 + $0x70] sm:$0xff]
    %v738 = vld [vmem:[#allocation3 + $0x78] sm:$0xff]
    %v739 = vld [vmem:[#allocation3 + $0x80] sm:$0xff]
    %v740 = vld [vmem:[#allocation3 + $0x88] sm:$0xff]
    %v741 = vld [vmem:[#allocation3 + $0x90] sm:$0xff]
    %v742 = vld [vmem:[#allocation3 + $0x98] sm:$0xff]
    %v743 = vld [vmem:[#allocation3 + $0xa0] sm:$0xff]
    %v744 = vld [vmem:[#allocation3 + $0xa8] sm:$0xff]
    %v745 = vld [vmem:[#allocation3 + $0xb0] sm:$0xff]
    %v746 = vld [vmem:[#allocation3 + $0xb8] sm:$0xff]
    %v747 = vld [vmem:[#allocation3 + $0xc0] sm:$0xff]
    %v748 = vld [vmem:[#allocation3 + $0xc8] sm:$0xff]
    %v749 = vld [vmem:[#allocation3 + $0xd0] sm:$0xff]
    %v750 = vld [vmem:[#allocation3 + $0xd8] sm:$0xff]
    %v751 = vld [vmem:[#allocation3 + $0xe0] sm:$0xff]
    %v752 = vld [vmem:[#allocation3 + $0xe8] sm:$0xff]
    %v753 = vld [vmem:[#allocation3 + $0xf0] sm:$0xff]
    %v754 = vld [vmem:[#allocation3 + $0xf8] sm:$0xff]
    %v755 = vld [vmem:[#allocation3 + $0x100] sm:$0xff]
    %v756 = vld [vmem:[#allocation3 + $0x108] sm:$0xff]
    %v757 = vld [vmem:[#allocation3 + $0x110] sm:$0xff]
    %v758 = vld [vmem:[#allocation3 + $0x118] sm:$0xff]
    %v759 = vld [vmem:[#allocation3 + $0x120] sm:$0xff]
    %v760 = vld [vmem:[#allocation3 + $0x128] sm:$0xff]
    %v761 = vld [vmem:[#allocation3 + $0x130] sm:$0xff]
    %v762 = vld [vmem:[#allocation3 + $0x138] sm:$0xff]
    %v763 = vld [vmem:[#allocation3 + $0x140] sm:$0xff]
    %v764 = vld [vmem:[#allocation3 + $0x148] sm:$0xff]
    %v765 = vld [vmem:[#allocation3 + $0x150] sm:$0xff]
    %v766 = vld [vmem:[#allocation3 + $0x158] sm:$0xff]
    %v767 = vld [vmem:[#allocation3 + $0x160] sm:$0xff]
    %v768 = vld [vmem:[#allocation3 + $0x168] sm:$0xff]
    %v769 = vld [vmem:[#allocation3 + $0x170] sm:$0xff]
    %v770 = vld [vmem:[#allocation3 + $0x178] sm:$0xff]
    %v771 = vld [vmem:[#allocation3 + $0x180] sm:$0xff]
    %v772 = vld [vmem:[#allocation3 + $0x188] sm:$0xff]
    %v773 = vld [vmem:[#allocation3 + $0x190] sm:$0xff]
    %v774 = vld [vmem:[#allocation3 + $0x198] sm:$0xff]
    %v775 = vld [vmem:[#allocation3 + $0x1a0] sm:$0xff]
    %v776 = vld [vmem:[#allocation3 + $0x1a8] sm:$0xff]
    %v777 = vld [vmem:[#allocation3 + $0x1b0] sm:$0xff]
    %v778 = vld [vmem:[#allocation3 + $0x1b8] sm:$0xff]
    %v779 = vld [vmem:[#allocation3 + $0x1c0] sm:$0xff]
    %v780 = vld [vmem:[#allocation3 + $0x1c8] sm:$0xff]
    %v781 = vld [vmem:[#allocation3 + $0x1d0] sm:$0xff]
    %v782 = vld [vmem:[#allocation3 + $0x1d8] sm:$0xff]
    %v783 = vld [vmem:[#allocation3 + $0x1e0] sm:$0xff]
    %v784 = vld [vmem:[#allocation3 + $0x1e8] sm:$0xff]
    %v785 = vld [vmem:[#allocation3 + $0x1f0] sm:$0xff]
    %v786 = vld [vmem:[#allocation3 + $0x1f8] sm:$0xff]
    %v787 = vld [vmem:[#allocation3 + $0x200] sm:$0xff]
    %v788 = vld [vmem:[#allocation3 + $0x208] sm:$0xff]
    %v789 = vld [vmem:[#allocation3 + $0x210] sm:$0xff]
    %v790 = vld [vmem:[#allocation3 + $0x218] sm:$0xff]
    %v791 = vld [vmem:[#allocation3 + $0x220] sm:$0xff]
    %v792 = vld [vmem:[#allocation3 + $0x228] sm:$0xff]
    %v793 = vld [vmem:[#allocation3 + $0x230] sm:$0xff]
    %v794 = vld [vmem:[#allocation3 + $0x238] sm:$0xff]
    %v795 = vld [vmem:[#allocation3 + $0x240] sm:$0xff]
    %v796 = vld [vmem:[#allocation3 + $0x248] sm:$0xff]
    %v797 = vld [vmem:[#allocation3 + $0x250] sm:$0xff]
    %v798 = vld [vmem:[#allocation3 + $0x258] sm:$0xff]
    %v799 = vld [vmem:[#allocation3 + $0x260] sm:$0xff]
    %v800 = vld [vmem:[#allocation3 + $0x268] sm:$0xff]
    %v801 = vld [vmem:[#allocation3 + $0x270] sm:$0xff]
    %v802 = vld [vmem:[#allocation3 + $0x278] sm:$0xff]
    %v803 = vld [vmem:[#allocation3 + $0x280] sm:$0xff]
    %v804 = vld [vmem:[#allocation3 + $0x288] sm:$0xff]
    %v805 = vld [vmem:[#allocation3 + $0x290] sm:$0xff]
    %v806 = vld [vmem:[#allocation3 + $0x298] sm:$0xff]
    %v807 = vld [vmem:[#allocation3 + $0x2a0] sm:$0xff]
    %v808 = vld [vmem:[#allocation3 + $0x2a8] sm:$0xff]
    %v809 = vld [vmem:[#allocation3 + $0x2b0] sm:$0xff]
    %v810 = vld [vmem:[#allocation3 + $0x2b8] sm:$0xff]
    %v811 = vld [vmem:[#allocation3 + $0x2c0] sm:$0xff]
    %v812 = vld [vmem:[#allocation3 + $0x2c8] sm:$0xff]
    %v813 = vld [vmem:[#allocation3 + $0x2d0] sm:$0xff]
    %v814 = vld [vmem:[#allocation3 + $0x2d8] sm:$0xff]
    %v815 = vld [vmem:[#allocation3 + $0x2e0] sm:$0xff]
    %v816 = vld [vmem:[#allocation3 + $0x2e8] sm:$0xff]
    %v817 = vld [vmem:[#allocation3 + $0x2f0] sm:$0xff]
    %v818 = vld [vmem:[#allocation3 + $0x2f8] sm:$0xff]
    %v819 = vld [vmem:[#allocation3 + $0x300] sm:$0xff]
    %v820 = vld [vmem:[#allocation3 + $0x308] sm:$0xff]
    %v821 = vld [vmem:[#allocation3 + $0x310] sm:$0xff]
    %v822 = vld [vmem:[#allocation3 + $0x318] sm:$0xff]
    %v823 = vld [vmem:[#allocation3 + $0x320] sm:$0xff]
    %v824 = vld [vmem:[#allocation3 + $0x328] sm:$0xff]
    %v825 = vld [vmem:[#allocation3 + $0x330] sm:$0xff]
    %v826 = vld [vmem:[#allocation3 + $0x338] sm:$0xff]
    %v827 = vld [vmem:[#allocation3 + $0x340] sm:$0xff]
    %v828 = vld [vmem:[#allocation3 + $0x348] sm:$0xff]
    %v829 = vld [vmem:[#allocation3 + $0x350] sm:$0xff]
    %v830 = vld [vmem:[#allocation3 + $0x358] sm:$0xff]
    %v831 = vld [vmem:[#allocation3 + $0x360] sm:$0xff]
    %v832 = vld [vmem:[#allocation3 + $0x368] sm:$0xff]
    %v833 = vld [vmem:[#allocation3 + $0x370] sm:$0xff]
    %v834 = vld [vmem:[#allocation3 + $0x378] sm:$0xff]
    %v835 = vld [vmem:[#allocation3 + $0x380] sm:$0xff]
    %v836 = vld [vmem:[#allocation3 + $0x388] sm:$0xff]
    %v837 = vld [vmem:[#allocation3 + $0x390] sm:$0xff]
    %v838 = vld [vmem:[#allocation3 + $0x398] sm:$0xff]
    %v839 = vld [vmem:[#allocation3 + $0x3a0] sm:$0xff]
    %v840 = vld [vmem:[#allocation3 + $0x3a8] sm:$0xff]
    %v841 = vld [vmem:[#allocation3 + $0x3b0] sm:$0xff]
    %v842 = vld [vmem:[#allocation3 + $0x3b8] sm:$0xff]
    %v843 = vld [vmem:[#allocation3 + $0x3c0] sm:$0x33]
    %v844 = vld [vmem:[#allocation3 + $0x3c8] sm:$0x33]
    %v845 = vld [vmem:[%s3] sm:$0xff]
    %v846 = vld [vmem:[%s3 + $0x8] sm:$0xff]
    %v847 = vld [vmem:[%s3 + $0x10] sm:$0xff]
    %v848 = vld [vmem:[%s3 + $0x18] sm:$0xff]
    %v849 = vld [vmem:[%s3 + $0x20] sm:$0xff]
    %v850 = vld [vmem:[%s3 + $0x28] sm:$0xff]
    %v851 = vld [vmem:[%s3 + $0x30] sm:$0xff]
    %v852 = vld [vmem:[%s3 + $0x38] sm:$0xff]
    %v853 = vld [vmem:[%s3 + $0x40] sm:$0xff]
    %v854 = vld [vmem:[%s3 + $0x48] sm:$0xff]
    %v855 = vld [vmem:[%s3 + $0x50] sm:$0xff]
    %v856 = vld [vmem:[%s3 + $0x58] sm:$0xff]
    %v857 = vld [vmem:[%s3 + $0x60] sm:$0xff]
    %v858 = vld [vmem:[%s3 + $0x68] sm:$0xff]
    %v859 = vld [vmem:[%s3 + $0x70] sm:$0xff]
    %v860 = vld [vmem:[%s3 + $0x78] sm:$0xff]
    %v861 = vld [vmem:[%s3 + $0x80] sm:$0xff]
    %v862 = vld [vmem:[%s3 + $0x88] sm:$0xff]
    %v863 = vld [vmem:[%s3 + $0x90] sm:$0xff]
    %v864 = vld [vmem:[%s3 + $0x98] sm:$0xff]
    %v865 = vld [vmem:[%s3 + $0xa0] sm:$0xff]
    %v866 = vld [vmem:[%s3 + $0xa8] sm:$0xff]
    %v867 = vld [vmem:[%s3 + $0xb0] sm:$0xff]
    %v868 = vld [vmem:[%s3 + $0xb8] sm:$0xff]
    %v869 = vld [vmem:[%s3 + $0xc0] sm:$0xff]
    %v870 = vld [vmem:[%s3 + $0xc8] sm:$0xff]
    %v871 = vld [vmem:[%s3 + $0xd0] sm:$0xff]
    %v872 = vld [vmem:[%s3 + $0xd8] sm:$0xff]
    %v873 = vld [vmem:[%s3 + $0xe0] sm:$0xff]
    %v874 = vld [vmem:[%s3 + $0xe8] sm:$0xff]
    %v875 = vld [vmem:[%s3 + $0xf0] sm:$0xff]
    %v876 = vld [vmem:[%s3 + $0xf8] sm:$0xff]
    %v909 = vunpack.c.l.b16 %v845
    %v910 = vunpack.c.h.b16 %v845
    %v911 = vunpack.c.l.b16 %v846
    %v912 = vunpack.c.h.b16 %v846
    %v913 = vunpack.c.l.b16 %v847
    %v914 = vunpack.c.h.b16 %v847
    %v915 = vunpack.c.l.b16 %v848
    %v916 = vunpack.c.h.b16 %v848
    %v917 = vunpack.c.l.b16 %v849
    %v918 = vunpack.c.h.b16 %v849
    %v919 = vunpack.c.l.b16 %v850
    %v920 = vunpack.c.h.b16 %v850
    %v921 = vunpack.c.l.b16 %v851
    %v922 = vunpack.c.h.b16 %v851
    %v923 = vunpack.c.l.b16 %v852
    %v924 = vunpack.c.h.b16 %v852
    %v925 = vunpack.c.l.b16 %v853
    %v926 = vunpack.c.h.b16 %v853
    %v927 = vunpack.c.l.b16 %v854
    %v928 = vunpack.c.h.b16 %v854
    %v929 = vunpack.c.l.b16 %v855
    %v930 = vunpack.c.h.b16 %v855
    %v931 = vunpack.c.l.b16 %v856
    %v932 = vunpack.c.h.b16 %v856
    %v933 = vunpack.c.l.b16 %v857
    %v934 = vunpack.c.h.b16 %v857
    %v935 = vunpack.c.l.b16 %v858
    %v936 = vunpack.c.h.b16 %v858
    %v937 = vunpack.c.l.b16 %v859
    %v938 = vunpack.c.h.b16 %v859
    %v939 = vunpack.c.l.b16 %v860
    %v940 = vunpack.c.h.b16 %v860
    %v941 = vunpack.c.l.b16 %v861
    %v942 = vunpack.c.h.b16 %v861
    %v943 = vunpack.c.l.b16 %v862
    %v944 = vunpack.c.h.b16 %v862
    %v945 = vunpack.c.l.b16 %v863
    %v946 = vunpack.c.h.b16 %v863
    %v947 = vunpack.c.l.b16 %v864
    %v948 = vunpack.c.h.b16 %v864
    %v949 = vunpack.c.l.b16 %v865
    %v950 = vunpack.c.h.b16 %v865
    %v951 = vunpack.c.l.b16 %v866
    %v952 = vunpack.c.h.b16 %v866
    %v953 = vunpack.c.l.b16 %v867
    %v954 = vunpack.c.h.b16 %v867
    %v955 = vunpack.c.l.b16 %v868
    %v956 = vunpack.c.h.b16 %v868
    %v957 = vunpack.c.l.b16 %v869
    %v958 = vunpack.c.h.b16 %v869
    %v959 = vunpack.c.l.b16 %v870
    %v960 = vunpack.c.h.b16 %v870
    %v961 = vunpack.c.l.b16 %v871
    %v962 = vunpack.c.h.b16 %v871
    %v963 = vunpack.c.l.b16 %v872
    %v964 = vunpack.c.h.b16 %v872
    %v965 = vunpack.c.l.b16 %v873
    %v966 = vunpack.c.h.b16 %v873
    %v967 = vunpack.c.l.b16 %v874
    %v968 = vunpack.c.h.b16 %v874
    %v969 = vunpack.c.l.b16 %v875
    %v970 = vunpack.c.h.b16 %v875
    %v971 = vunpack.c.l.b16 %v876
    %v972 = vunpack.c.h.b16 %v876
    %v973 = vpack.c.b16 %v913, %v909
    %v974 = vpack.c.b16 %v914, %v910
    %v975 = vpack.c.b16 %v915, %v911
    %v976 = vpack.c.b16 %v916, %v912
    %v977 = vpack.c.b16 %v921, %v917
    %v978 = vpack.c.b16 %v922, %v918
    %v979 = vpack.c.b16 %v923, %v919
    %v980 = vpack.c.b16 %v924, %v920
    %v981 = vpack.c.b16 %v929, %v925
    %v982 = vpack.c.b16 %v930, %v926
    %v983 = vpack.c.b16 %v931, %v927
    %v984 = vpack.c.b16 %v932, %v928
    %v985 = vpack.c.b16 %v937, %v933
    %v986 = vpack.c.b16 %v938, %v934
    %v987 = vpack.c.b16 %v939, %v935
    %v988 = vpack.c.b16 %v940, %v936
    %v989 = vpack.c.b16 %v945, %v941
    %v990 = vpack.c.b16 %v946, %v942
    %v991 = vpack.c.b16 %v947, %v943
    %v992 = vpack.c.b16 %v948, %v944
    %v993 = vpack.c.b16 %v953, %v949
    %v994 = vpack.c.b16 %v954, %v950
    %v995 = vpack.c.b16 %v955, %v951
    %v996 = vpack.c.b16 %v956, %v952
    %v997 = vpack.c.b16 %v961, %v957
    %v998 = vpack.c.b16 %v962, %v958
    %v999 = vpack.c.b16 %v963, %v959
    %v1000 = vpack.c.b16 %v964, %v960
    %v1001 = vpack.c.b16 %v969, %v965
    %v1002 = vpack.c.b16 %v970, %v966
    %v1003 = vpack.c.b16 %v971, %v967
    %v1004 = vpack.c.b16 %v972, %v968
    %1037 = vmatprep.subr.bf16.mxu0 %v974
    %1038 = vmatpush1.bf16.msra.mxu0 %v973
    %1039 = vmatprep.subr.bf16.mxu0 %v978
    %1040 = vmatpush1.bf16.msra.mxu0 %v977
    %1041 = vmatprep.subr.bf16.mxu0 %v982
    %1042 = vmatpush1.bf16.msra.mxu0 %v981
    %1043 = vmatprep.subr.bf16.mxu0 %v986
    %1044 = vmatpush1.bf16.msra.mxu0 %v985
    %1045 = vmatprep.subr.bf16.mxu0 %v990
    %1046 = vmatpush1.bf16.msra.mxu0 %v989
    %1047 = vmatprep.subr.bf16.mxu0 %v994
    %1048 = vmatpush1.bf16.msra.mxu0 %v993
    %1049 = vmatprep.subr.bf16.mxu0 %v998
    %1050 = vmatpush1.bf16.msra.mxu0 %v997
    %1051 = vmatprep.subr.bf16.mxu0 %v1002
    %1052 = vmatpush1.bf16.msra.mxu0 %v1001
    %1053 = vmatprep.subr.bf16.mxu0 0
    %1054 = vmatpush1.bf16.msra.mxu0 0
    %1055 = vmatprep.subr.bf16.mxu0 0
    %1056 = vmatpush1.bf16.msra.mxu0 0
    %1057 = vmatprep.subr.bf16.mxu0 0
    %1058 = vmatpush1.bf16.msra.mxu0 0
    %1059 = vmatprep.subr.bf16.mxu0 0
    %1060 = vmatpush1.bf16.msra.mxu0 0
    %1061 = vmatprep.subr.bf16.mxu0 0
    %1062 = vmatpush1.bf16.msra.mxu0 0
    %1063 = vmatprep.subr.bf16.mxu0 0
    %1064 = vmatpush1.bf16.msra.mxu0 0
    %1065 = vmatprep.subr.bf16.mxu0 0
    %1066 = vmatpush1.bf16.msra.mxu0 0
    %1067 = vmatprep.subr.bf16.mxu0 0
    %1068 = vmatpush1.bf16.msra.mxu0 0
    %1069 = vmatprep.mubr.bf16.mxu0 0
    %1070 = vmatmul.mubr.bf16.gmra.mrb[0].mxu0 0
    %v1071 = vpop.f32.mrb[0].mxu0
    %v1072 = vadd.f32 0.0, %v1071
    %v1073 = vpop.f32.mrb[0].mxu0
    %v1074 = vadd.f32 0.0, %v1073
    %v1075 = vpop.f32.mrb[0].mxu0
    %v1076 = vpop.f32.mrb[0].mxu0
    %1077 = vdwg.mxu0
    %1078 = vmatprep.subr.bf16.mxu0 %v976
    %1079 = vmatpush1.bf16.msra.mxu0 %v975
    %1080 = vmatprep.subr.bf16.mxu0 %v980
    %1081 = vmatpush1.bf16.msra.mxu0 %v979
    %1082 = vmatprep.subr.bf16.mxu0 %v984
    %1083 = vmatpush1.bf16.msra.mxu0 %v983
    %1084 = vmatprep.subr.bf16.mxu0 %v988
    %1085 = vmatpush1.bf16.msra.mxu0 %v987
    %1086 = vmatprep.subr.bf16.mxu0 %v992
    %1087 = vmatpush1.bf16.msra.mxu0 %v991
    %1088 = vmatprep.subr.bf16.mxu0 %v996
    %1089 = vmatpush1.bf16.msra.mxu0 %v995
    %1090 = vmatprep.subr.bf16.mxu0 %v1000
    %1091 = vmatpush1.bf16.msra.mxu0 %v999
    %1092 = vmatprep.subr.bf16.mxu0 %v1004
    %1093 = vmatpush1.bf16.msra.mxu0 %v1003
    %1094 = vmatprep.subr.bf16.mxu0 0
    %1095 = vmatpush1.bf16.msra.mxu0 0
    %1096 = vmatprep.subr.bf16.mxu0 0
    %1097 = vmatpush1.bf16.msra.mxu0 0
    %1098 = vmatprep.subr.bf16.mxu0 0
    %1099 = vmatpush1.bf16.msra.mxu0 0
    %1100 = vmatprep.subr.bf16.mxu0 0
    %1101 = vmatpush1.bf16.msra.mxu0 0
    %1102 = vmatprep.subr.bf16.mxu0 0
    %1103 = vmatpush1.bf16.msra.mxu0 0
    %1104 = vmatprep.subr.bf16.mxu0 0
    %1105 = vmatpush1.bf16.msra.mxu0 0
    %1106 = vmatprep.subr.bf16.mxu0 0
    %1107 = vmatpush1.bf16.msra.mxu0 0
    %1108 = vmatprep.subr.bf16.mxu0 0
    %1109 = vmatpush1.bf16.msra.mxu0 0
    %1110 = vmatprep.mubr.bf16.mxu0 0
    %1111 = vmatmul.mubr.bf16.gmra.mrb[0].mxu0 0
    %v1112 = vpop.f32.mrb[0].mxu0
    %v1113 = vadd.f32 0.0, %v1112
    %v1114 = vpop.f32.mrb[0].mxu0
    %v1115 = vadd.f32 0.0, %v1114
    %v1116 = vpop.f32.mrb[0].mxu0
    %v1117 = vpop.f32.mrb[0].mxu0
    %1118 = vdwg.mxu0
    %v1119 = vadd.f32 %v600, %v1072
    %v1120 = vadd.f32 %v602, %v1074
    %v1121 = vadd.f32 %v673, %v1113
    %v1122 = vadd.f32 %v675, %v1115
    %v1123 = vxor.u32 %v1119, 2147483648
    %v1124 = vmul.f32 %v1123, 1.442695
    %v1125 = vpow.pop %v1124
    %v1126 = vadd.f32 %v1125, 1.0
    %v1127 = vrcp.pop %v1126
    %v1128 = vmul.f32 1.0, %v1127
    %v1129 = vxor.u32 %v1120, 2147483648
    %v1130 = vmul.f32 %v1129, 1.442695
    %v1131 = vpow.pop %v1130
    %v1132 = vadd.f32 %v1131, 1.0
    %v1133 = vrcp.pop %v1132
    %v1134 = vmul.f32 1.0, %v1133
    %v1135 = vtanh.pop %v1121
    %v1136 = vxor.u32 %v1122, 2147483648
    %v1137 = vmul.f32 %v1136, 1.442695
    %v1138 = vpow.pop %v1137
    %v1139 = vadd.f32 %v1138, 1.0
    %v1140 = vrcp.pop %v1139
    %v1141 = vmul.f32 1.0, %v1140
    %v1142 = vmul.f32 %v1134, 0.0
    %v1143 = vmul.f32 %v1128, %v1135
    %v1144 = vadd.f32 %v1142, %v1143
    %v1145 = vtanh.pop %v1144
    %v1146 = vmul.f32 %v1141, %v1145
    %v1147 = vpack.c.bf16 %v1146, %v1146
    %1148 = vmatprep.subr.bf16.mxu0 %v974
    %1149 = vmatpush1.bf16.msra.mxu0 %v973
    %1150 = vmatprep.subr.bf16.mxu0 %v978
    %1151 = vmatpush1.bf16.msra.mxu0 %v977
    %1152 = vmatprep.subr.bf16.mxu0 %v982
    %1153 = vmatpush1.bf16.msra.mxu0 %v981
    %1154 = vmatprep.subr.bf16.mxu0 %v986
    %1155 = vmatpush1.bf16.msra.mxu0 %v985
    %1156 = vmatprep.subr.bf16.mxu0 %v990
    %1157 = vmatpush1.bf16.msra.mxu0 %v989
    %1158 = vmatprep.subr.bf16.mxu0 %v994
    %1159 = vmatpush1.bf16.msra.mxu0 %v993
    %1160 = vmatprep.subr.bf16.mxu0 %v998
    %1161 = vmatpush1.bf16.msra.mxu0 %v997
    %1162 = vmatprep.subr.bf16.mxu0 %v1002
    %1163 = vmatpush1.bf16.msra.mxu0 %v1001
    %1164 = vmatprep.subr.bf16.mxu0 0
    %1165 = vmatpush1.bf16.msra.mxu0 0
    %1166 = vmatprep.subr.bf16.mxu0 0
    %1167 = vmatpush1.bf16.msra.mxu0 0
    %1168 = vmatprep.subr.bf16.mxu0 0
    %1169 = vmatpush1.bf16.msra.mxu0 0
    %1170 = vmatprep.subr.bf16.mxu0 0
    %1171 = vmatpush1.bf16.msra.mxu0 0
    %1172 = vmatprep.subr.bf16.mxu0 0
    %1173 = vmatpush1.bf16.msra.mxu0 0
    %1174 = vmatprep.subr.bf16.mxu0 0
    %1175 = vmatpush1.bf16.msra.mxu0 0
    %1176 = vmatprep.subr.bf16.mxu0 0
    %1177 = vmatpush1.bf16.msra.mxu0 0
    %1178 = vmatprep.subr.bf16.mxu0 0
    %1179 = vmatpush1.bf16.msra.mxu0 0
    %1180 = vmatprep.mubr.bf16.mxu0 0
    %1181 = vmatmul.mubr.bf16.gmra.mrb[0].mxu0 %v1147
    %v1182 = vpop.f32.mrb[0].mxu0
    %v1183 = vadd.f32 0.0, %v1182
    %v1184 = vpop.f32.mrb[0].mxu0
    %v1185 = vadd.f32 0.0, %v1184
    %v1186 = vpop.f32.mrb[0].mxu0
    %v1187 = vpop.f32.mrb[0].mxu0
    %1188 = vdwg.mxu0
    %1189 = vmatprep.subr.bf16.mxu0 %v976
    %1190 = vmatpush1.bf16.msra.mxu0 %v975
    %1191 = vmatprep.subr.bf16.mxu0 %v980
    %1192 = vmatpush1.bf16.msra.mxu0 %v979
    %1193 = vmatprep.subr.bf16.mxu0 %v984
    %1194 = vmatpush1.bf16.msra.mxu0 %v983
    %1195 = vmatprep.subr.bf16.mxu0 %v988
    %1196 = vmatpush1.bf16.msra.mxu0 %v987
    %1197 = vmatprep.subr.bf16.mxu0 %v992
    %1198 = vmatpush1.bf16.msra.mxu0 %v991
    %1199 = vmatprep.subr.bf16.mxu0 %v996
    %1200 = vmatpush1.bf16.msra.mxu0 %v995
    %1201 = vmatprep.subr.bf16.mxu0 %v1000
    %1202 = vmatpush1.bf16.msra.mxu0 %v999
    %1203 = vmatprep.subr.bf16.mxu0 %v1004
    %1204 = vmatpush1.bf16.msra.mxu0 %v1003
    %1205 = vmatprep.subr.bf16.mxu0 0
    %1206 = vmatpush1.bf16.msra.mxu0 0
    %1207 = vmatprep.subr.bf16.mxu0 0
    %1208 = vmatpush1.bf16.msra.mxu0 0
    %1209 = vmatprep.subr.bf16.mxu0 0
    %1210 = vmatpush1.bf16.msra.mxu0 0
    %1211 = vmatprep.subr.bf16.mxu0 0
    %1212 = vmatpush1.bf16.msra.mxu0 0
    %1213 = vmatprep.subr.bf16.mxu0 0
    %1214 = vmatpush1.bf16.msra.mxu0 0
    %1215 = vmatprep.subr.bf16.mxu0 0
    %1216 = vmatpush1.bf16.msra.mxu0 0
    %1217 = vmatprep.subr.bf16.mxu0 0
    %1218 = vmatpush1.bf16.msra.mxu0 0
    %1219 = vmatprep.subr.bf16.mxu0 0
    %1220 = vmatpush1.bf16.msra.mxu0 0
    %1221 = vmatprep.mubr.bf16.mxu0 0
    %1222 = vmatmul.mubr.bf16.gmra.mrb[0].mxu0 %v1147
    %v1223 = vpop.f32.mrb[0].mxu0
    %v1224 = vadd.f32 0.0, %v1223
    %v1225 = vpop.f32.mrb[0].mxu0
    %v1226 = vadd.f32 0.0, %v1225
    %v1227 = vpop.f32.mrb[0].mxu0
    %v1228 = vpop.f32.mrb[0].mxu0
    %1229 = vdwg.mxu0
    %v1230 = vadd.f32 %v604, %v1183
    %v1231 = vadd.f32 %v606, %v1185
    %v1232 = vadd.f32 %v677, %v1224
    %v1233 = vadd.f32 %v679, %v1226
    %v1234 = vxor.u32 %v1230, 2147483648
    %v1235 = vmul.f32 %v1234, 1.442695
    %v1236 = vpow.pop %v1235
    %v1237 = vadd.f32 %v1236, 1.0
    %v1238 = vrcp.pop %v1237
    %v1239 = vmul.f32 1.0, %v1238
    %v1240 = vxor.u32 %v1231, 2147483648
    %v1241 = vmul.f32 %v1240, 1.442695
    %v1242 = vpow.pop %v1241
    %v1243 = vadd.f32 %v1242, 1.0
    %v1244 = vrcp.pop %v1243
    %v1245 = vmul.f32 1.0, %v1244
    %v1246 = vtanh.pop %v1232
    %v1247 = vxor.u32 %v1233, 2147483648
    %v1248 = vmul.f32 %v1247, 1.442695
    %v1249 = vpow.pop %v1248
    %v1250 = vadd.f32 %v1249, 1.0
    %v1251 = vrcp.pop %v1250
    %v1252 = vmul.f32 1.0, %v1251
    %v1253 = vmul.f32 %v1245, %v1144
    %v1254 = vmul.f32 %v1239, %v1246
    %v1255 = vadd.f32 %v1253, %v1254
    %v1256 = vtanh.pop %v1255
    %v1257 = vmul.f32 %v1252, %v1256
    %v1258 = vpack.c.bf16 %v1257, %v1257
    %1259 = vmatprep.subr.bf16.mxu0 %v974
    %1260 = vmatpush1.bf16.msra.mxu0 %v973
    %1261 = vmatprep.subr.bf16.mxu0 %v978
    %1262 = vmatpush1.bf16.msra.mxu0 %v977
    %1263 = vmatprep.subr.bf16.mxu0 %v982
    %1264 = vmatpush1.bf16.msra.mxu0 %v981
    %1265 = vmatprep.subr.bf16.mxu0 %v986
    %1266 = vmatpush1.bf16.msra.mxu0 %v985
    %1267 = vmatprep.subr.bf16.mxu0 %v990
    %1268 = vmatpush1.bf16.msra.mxu0 %v989
    %1269 = vmatprep.subr.bf16.mxu0 %v994
    %1270 = vmatpush1.bf16.msra.mxu0 %v993
    %1271 = vmatprep.subr.bf16.mxu0 %v998
    %1272 = vmatpush1.bf16.msra.mxu0 %v997
    %1273 = vmatprep.subr.bf16.mxu0 %v1002
    %1274 = vmatpush1.bf16.msra.mxu0 %v1001
    %1275 = vmatprep.subr.bf16.mxu0 0
    %1276 = vmatpush1.bf16.msra.mxu0 0
    %1277 = vmatprep.subr.bf16.mxu0 0
    %1278 = vmatpush1.bf16.msra.mxu0 0
    %1279 = vmatprep.subr.bf16.mxu0 0
    %1280 = vmatpush1.bf16.msra.mxu0 0
    %1281 = vmatprep.subr.bf16.mxu0 0
    %1282 = vmatpush1.bf16.msra.mxu0 0
    %1283 = vmatprep.subr.bf16.mxu0 0
    %1284 = vmatpush1.bf16.msra.mxu0 0
    %1285 = vmatprep.subr.bf16.mxu0 0
    %1286 = vmatpush1.bf16.msra.mxu0 0
    %1287 = vmatprep.subr.bf16.mxu0 0
    %1288 = vmatpush1.bf16.msra.mxu0 0
    %1289 = vmatprep.subr.bf16.mxu0 0
    %1290 = vmatpush1.bf16.msra.mxu0 0
    %1291 = vmatprep.mubr.bf16.mxu0 0
    %1292 = vmatmul.mubr.bf16.gmra.mrb[0].mxu0 %v1258
    %v1293 = vpop.f32.mrb[0].mxu0
    %v1294 = vadd.f32 0.0, %v1293
    %v1295 = vpop.f32.mrb[0].mxu0
    %v1296 = vadd.f32 0.0, %v1295
    %v1297 = vpop.f32.mrb[0].mxu0
    %v1298 = vpop.f32.mrb[0].mxu0
    %1299 = vdwg.mxu0
    %1300 = vmatprep.subr.bf16.mxu0 %v976
    %1301 = vmatpush1.bf16.msra.mxu0 %v975
    %1302 = vmatprep.subr.bf16.mxu0 %v980
    %1303 = vmatpush1.bf16.msra.mxu0 %v979
    %1304 = vmatprep.subr.bf16.mxu0 %v984
    %1305 = vmatpush1.bf16.msra.mxu0 %v983
    %1306 = vmatprep.subr.bf16.mxu0 %v988
    %1307 = vmatpush1.bf16.msra.mxu0 %v987
    %1308 = vmatprep.subr.bf16.mxu0 %v992
    %1309 = vmatpush1.bf16.msra.mxu0 %v991
    %1310 = vmatprep.subr.bf16.mxu0 %v996
    %1311 = vmatpush1.bf16.msra.mxu0 %v995
    %1312 = vmatprep.subr.bf16.mxu0 %v1000
    %1313 = vmatpush1.bf16.msra.mxu0 %v999
    %1314 = vmatprep.subr.bf16.mxu0 %v1004
    %1315 = vmatpush1.bf16.msra.mxu0 %v1003
    %1316 = vmatprep.subr.bf16.mxu0 0
    %1317 = vmatpush1.bf16.msra.mxu0 0
    %1318 = vmatprep.subr.bf16.mxu0 0
    %1319 = vmatpush1.bf16.msra.mxu0 0
    %1320 = vmatprep.subr.bf16.mxu0 0
    %1321 = vmatpush1.bf16.msra.mxu0 0
    %1322 = vmatprep.subr.bf16.mxu0 0
    %1323 = vmatpush1.bf16.msra.mxu0 0
    %1324 = vmatprep.subr.bf16.mxu0 0
    %1325 = vmatpush1.bf16.msra.mxu0 0
    %1326 = vmatprep.subr.bf16.mxu0 0
    %1327 = vmatpush1.bf16.msra.mxu0 0
    %1328 = vmatprep.subr.bf16.mxu0 0
    %1329 = vmatpush1.bf16.msra.mxu0 0
    %1330 = vmatprep.subr.bf16.mxu0 0
    %1331 = vmatpush1.bf16.msra.mxu0 0
    %1332 = vmatprep.mubr.bf16.mxu0 0
    %1333 = vmatmul.mubr.bf16.gmra.mrb[0].mxu0 %v1258
    %v1334 = vpop.f32.mrb[0].mxu0
    %v1335 = vadd.f32 0.0, %v1334
    %v1336 = vpop.f32.mrb[0].mxu0
    %v1337 = vadd.f32 0.0, %v1336
    %v1338 = vpop.f32.mrb[0].mxu0
    %v1339 = vpop.f32.mrb[0].mxu0
    %1340 = vdwg.mxu0
    %v1341 = vadd.f32 %v610, %v1294
    %v1342 = vadd.f32 %v612, %v1296
    %v1343 = vadd.f32 %v683, %v1335
    %v1344 = vadd.f32 %v685, %v1337
    %v1345 = vxor.u32 %v1341, 2147483648
    %v1346 = vmul.f32 %v1345, 1.442695
    %v1347 = vpow.pop %v1346
    %v1348 = vadd.f32 %v1347, 1.0
    %v1349 = vrcp.pop %v1348
    %v1350 = vmul.f32 1.0, %v1349
    %v1351 = vxor.u32 %v1342, 2147483648
    %v1352 = vmul.f32 %v1351, 1.442695
    %v1353 = vpow.pop %v1352
    %v1354 = vadd.f32 %v1353, 1.0
    %v1355 = vrcp.pop %v1354
    %v1356 = vmul.f32 1.0, %v1355
    %v1357 = vtanh.pop %v1343
    %v1358 = vxor.u32 %v1344, 2147483648
    %v1359 = vmul.f32 %v1358, 1.442695
    %v1360 = vpow.pop %v1359
    %v1361 = vadd.f32 %v1360, 1.0
    %v1362 = vrcp.pop %v1361
    %v1363 = vmul.f32 1.0, %v1362
    %v1364 = vmul.f32 %v1356, %v1255
    %v1365 = vmul.f32 %v1350, %v1357
    %v1366 = vadd.f32 %v1364, %v1365
    %v1367 = vtanh.pop %v1366
    %v1368 = vmul.f32 %v1363, %v1367
    %v1369 = vpack.c.bf16 %v1368, %v1368
    %1370 = vmatprep.subr.bf16.mxu0 %v974
    %1371 = vmatpush1.bf16.msra.mxu0 %v973
    %1372 = vmatprep.subr.bf16.mxu0 %v978
    %1373 = vmatpush1.bf16.msra.mxu0 %v977
    %1374 = vmatprep.subr.bf16.mxu0 %v982
    %1375 = vmatpush1.bf16.msra.mxu0 %v981
    %1376 = vmatprep.subr.bf16.mxu0 %v986
    %1377 = vmatpush1.bf16.msra.mxu0 %v985
    %1378 = vmatprep.subr.bf16.mxu0 %v990
    %1379 = vmatpush1.bf16.msra.mxu0 %v989
    %1380 = vmatprep.subr.bf16.mxu0 %v994
    %1381 = vmatpush1.bf16.msra.mxu0 %v993
    %1382 = vmatprep.subr.bf16.mxu0 %v998
    %1383 = vmatpush1.bf16.msra.mxu0 %v997
    %1384 = vmatprep.subr.bf16.mxu0 %v1002
    %1385 = vmatpush1.bf16.msra.mxu0 %v1001
    %1386 = vmatprep.subr.bf16.mxu0 0
    %1387 = vmatpush1.bf16.msra.mxu0 0
    %1388 = vmatprep.subr.bf16.mxu0 0
    %1389 = vmatpush1.bf16.msra.mxu0 0
    %1390 = vmatprep.subr.bf16.mxu0 0
    %1391 = vmatpush1.bf16.msra.mxu0 0
    %1392 = vmatprep.subr.bf16.mxu0 0
    %1393 = vmatpush1.bf16.msra.mxu0 0
    %1394 = vmatprep.subr.bf16.mxu0 0
    %1395 = vmatpush1.bf16.msra.mxu0 0
    %1396 = vmatprep.subr.bf16.mxu0 0
    %1397 = vmatpush1.bf16.msra.mxu0 0
    %1398 = vmatprep.subr.bf16.mxu0 0
    %1399 = vmatpush1.bf16.msra.mxu0 0
    %1400 = vmatprep.subr.bf16.mxu0 0
    %1401 = vmatpush1.bf16.msra.mxu0 0
    %1402 = vmatprep.mubr.bf16.mxu0 0
    %1403 = vmatmul.mubr.bf16.gmra.mrb[0].mxu0 %v1369
    %v1404 = vpop.f32.mrb[0].mxu0
    %v1405 = vadd.f32 0.0, %v1404
    %v1406 = vpop.f32.mrb[0].mxu0
    %v1407 = vadd.f32 0.0, %v1406
    %v1408 = vpop.f32.mrb[0].mxu0
    %v1409 = vpop.f32.mrb[0].mxu0
    %1410 = vdwg.mxu0
    %1411 = vmatprep.subr.bf16.mxu0 %v976
    %1412 = vmatpush1.bf16.msra.mxu0 %v975
    %1413 = vmatprep.subr.bf16.mxu0 %v980
    %1414 = vmatpush1.bf16.msra.mxu0 %v979
    %1415 = vmatprep.subr.bf16.mxu0 %v984
    %1416 = vmatpush1.bf16.msra.mxu0 %v983
    %1417 = vmatprep.subr.bf16.mxu0 %v988
    %1418 = vmatpush1.bf16.msra.mxu0 %v987
    %1419 = vmatprep.subr.bf16.mxu0 %v992
    %1420 = vmatpush1.bf16.msra.mxu0 %v991
    %1421 = vmatprep.subr.bf16.mxu0 %v996
    %1422 = vmatpush1.bf16.msra.mxu0 %v995
    %1423 = vmatprep.subr.bf16.mxu0 %v1000
    %1424 = vmatpush1.bf16.msra.mxu0 %v999
    %1425 = vmatprep.subr.bf16.mxu0 %v1004
    %1426 = vmatpush1.bf16.msra.mxu0 %v1003
    %1427 = vmatprep.subr.bf16.mxu0 0
    %1428 = vmatpush1.bf16.msra.mxu0 0
    %1429 = vmatprep.subr.bf16.mxu0 0
    %1430 = vmatpush1.bf16.msra.mxu0 0
    %1431 = vmatprep.subr.bf16.mxu0 0
    %1432 = vmatpush1.bf16.msra.mxu0 0
    %1433 = vmatprep.subr.bf16.mxu0 0
    %1434 = vmatpush1.bf16.msra.mxu0 0
    %1435 = vmatprep.subr.bf16.mxu0 0
    %1436 = vmatpush1.bf16.msra.mxu0 0
    %1437 = vmatprep.subr.bf16.mxu0 0
    %1438 = vmatpush1.bf16.msra.mxu0 0
    %1439 = vmatprep.subr.bf16.mxu0 0
    %1440 = vmatpush1.bf16.msra.mxu0 0
    %1441 = vmatprep.subr.bf16.mxu0 0
    %1442 = vmatpush1.bf16.msra.mxu0 0
    %1443 = vmatprep.mubr.bf16.mxu0 0
    %1444 = vmatmul.mubr.bf16.gmra.mrb[0].mxu0 %v1369
    %v1445 = vpop.f32.mrb[0].mxu0
    %v1446 = vadd.f32 0.0, %v1445
    %v1447 = vpop.f32.mrb[0].mxu0
    %v1448 = vadd.f32 0.0, %v1447
    %v1449 = vpop.f32.mrb[0].mxu0
    %v1450 = vpop.f32.mrb[0].mxu0
    %1451 = vdwg.mxu0
    %v1452 = vadd.f32 %v614, %v1405
    %v1453 = vadd.f32 %v616, %v1407
    %v1454 = vadd.f32 %v687, %v1446
    %v1455 = vadd.f32 %v689, %v1448
    %v1456 = vxor.u32 %v1452, 2147483648
    %v1457 = vmul.f32 %v1456, 1.442695
    %v1458 = vpow.pop %v1457
    %v1459 = vadd.f32 %v1458, 1.0
    %v1460 = vrcp.pop %v1459
    %v1461 = vmul.f32 1.0, %v1460
    %v1462 = vxor.u32 %v1453, 2147483648
    %v1463 = vmul.f32 %v1462, 1.442695
    %v1464 = vpow.pop %v1463
    %v1465 = vadd.f32 %v1464, 1.0
    %v1466 = vrcp.pop %v1465
    %v1467 = vmul.f32 1.0, %v1466
    %v1468 = vtanh.pop %v1454
    %v1469 = vxor.u32 %v1455, 2147483648
    %v1470 = vmul.f32 %v1469, 1.442695
    %v1471 = vpow.pop %v1470
    %v1472 = vadd.f32 %v1471, 1.0
    %v1473 = vrcp.pop %v1472
    %v1474 = vmul.f32 1.0, %v1473
    %v1475 = vmul.f32 %v1467, %v1366
    %v1476 = vmul.f32 %v1461, %v1468
    %v1477 = vadd.f32 %v1475, %v1476
    %v1478 = vtanh.pop %v1477
    %v1479 = vmul.f32 %v1474, %v1478
    %v1480 = vpack.c.bf16 %v1479, %v1479
    %1481 = vmatprep.subr.bf16.mxu0 %v974
    %1482 = vmatpush1.bf16.msra.mxu0 %v973
    %1483 = vmatprep.subr.bf16.mxu0 %v978
    %1484 = vmatpush1.bf16.msra.mxu0 %v977
    %1485 = vmatprep.subr.bf16.mxu0 %v982
    %1486 = vmatpush1.bf16.msra.mxu0 %v981
    %1487 = vmatprep.subr.bf16.mxu0 %v986
    %1488 = vmatpush1.bf16.msra.mxu0 %v985
    %1489 = vmatprep.subr.bf16.mxu0 %v990
    %1490 = vmatpush1.bf16.msra.mxu0 %v989
    %1491 = vmatprep.subr.bf16.mxu0 %v994
    %1492 = vmatpush1.bf16.msra.mxu0 %v993
    %1493 = vmatprep.subr.bf16.mxu0 %v998
    %1494 = vmatpush1.bf16.msra.mxu0 %v997
    %1495 = vmatprep.subr.bf16.mxu0 %v1002
    %1496 = vmatpush1.bf16.msra.mxu0 %v1001
    %1497 = vmatprep.subr.bf16.mxu0 0
    %1498 = vmatpush1.bf16.msra.mxu0 0
    %1499 = vmatprep.subr.bf16.mxu0 0
    %1500 = vmatpush1.bf16.msra.mxu0 0
    %1501 = vmatprep.subr.bf16.mxu0 0
    %1502 = vmatpush1.bf16.msra.mxu0 0
    %1503 = vmatprep.subr.bf16.mxu0 0
    %1504 = vmatpush1.bf16.msra.mxu0 0
    %1505 = vmatprep.subr.bf16.mxu0 0
    %1506 = vmatpush1.bf16.msra.mxu0 0
    %1507 = vmatprep.subr.bf16.mxu0 0
    %1508 = vmatpush1.bf16.msra.mxu0 0
    %1509 = vmatprep.subr.bf16.mxu0 0
    %1510 = vmatpush1.bf16.msra.mxu0 0
    %1511 = vmatprep.subr.bf16.mxu0 0
    %1512 = vmatpush1.bf16.msra.mxu0 0
    %1513 = vmatprep.mubr.bf16.mxu0 0
    %1514 = vmatmul.mubr.bf16.gmra.mrb[0].mxu0 %v1480
    %v1515 = vpop.f32.mrb[0].mxu0
    %v1516 = vadd.f32 0.0, %v1515
    %v1517 = vpop.f32.mrb[0].mxu0
    %v1518 = vadd.f32 0.0, %v1517
    %v1519 = vpop.f32.mrb[0].mxu0
    %v1520 = vpop.f32.mrb[0].mxu0
    %1521 = vdwg.mxu0
    %1522 = vmatprep.subr.bf16.mxu0 %v976
    %1523 = vmatpush1.bf16.msra.mxu0 %v975
    %1524 = vmatprep.subr.bf16.mxu0 %v980
    %1525 = vmatpush1.bf16.msra.mxu0 %v979
    %1526 = vmatprep.subr.bf16.mxu0 %v984
    %1527 = vmatpush1.bf16.msra.mxu0 %v983
    %1528 = vmatprep.subr.bf16.mxu0 %v988
    %1529 = vmatpush1.bf16.msra.mxu0 %v987
    %1530 = vmatprep.subr.bf16.mxu0 %v992
    %1531 = vmatpush1.bf16.msra.mxu0 %v991
    %1532 = vmatprep.subr.bf16.mxu0 %v996
    %1533 = vmatpush1.bf16.msra.mxu0 %v995
    %1534 = vmatprep.subr.bf16.mxu0 %v1000
    %1535 = vmatpush1.bf16.msra.mxu0 %v999
    %1536 = vmatprep.subr.bf16.mxu0 %v1004
    %1537 = vmatpush1.bf16.msra.mxu0 %v1003
    %1538 = vmatprep.subr.bf16.mxu0 0
    %1539 = vmatpush1.bf16.msra.mxu0 0
    %1540 = vmatprep.subr.bf16.mxu0 0
    %1541 = vmatpush1.bf16.msra.mxu0 0
    %1542 = vmatprep.subr.bf16.mxu0 0
    %1543 = vmatpush1.bf16.msra.mxu0 0
    %1544 = vmatprep.subr.bf16.mxu0 0
    %1545 = vmatpush1.bf16.msra.mxu0 0
    %1546 = vmatprep.subr.bf16.mxu0 0
    %1547 = vmatpush1.bf16.msra.mxu0 0
    %1548 = vmatprep.subr.bf16.mxu0 0
    %1549 = vmatpush1.bf16.msra.mxu0 0
    %1550 = vmatprep.subr.bf16.mxu0 0
    %1551 = vmatpush1.bf16.msra.mxu0 0
    %1552 = vmatprep.subr.bf16.mxu0 0
    %1553 = vmatpush1.bf16.msra.mxu0 0
    %1554 = vmatprep.mubr.bf16.mxu0 0
    %1555 = vmatmul.mubr.bf16.gmra.mrb[0].mxu0 %v1480
    %v1556 = vpop.f32.mrb[0].mxu0
    %v1557 = vadd.f32 0.0, %v1556
    %v1558 = vpop.f32.mrb[0].mxu0
    %v1559 = vadd.f32 0.0, %v1558
    %v1560 = vpop.f32.mrb[0].mxu0
    %v1561 = vpop.f32.mrb[0].mxu0
    %1562 = vdwg.mxu0
    %v1563 = vadd.f32 %v620, %v1516
    %v1564 = vadd.f32 %v622, %v1518
    %v1565 = vadd.f32 %v693, %v1557
    %v1566 = vadd.f32 %v695, %v1559
    %v1567 = vxor.u32 %v1563, 2147483648
    %v1568 = vmul.f32 %v1567, 1.442695
    %v1569 = vpow.pop %v1568
    %v1570 = vadd.f32 %v1569, 1.0
    %v1571 = vrcp.pop %v1570
    %v1572 = vmul.f32 1.0, %v1571
    %v1573 = vxor.u32 %v1564, 2147483648
    %v1574 = vmul.f32 %v1573, 1.442695
    %v1575 = vpow.pop %v1574
    %v1576 = vadd.f32 %v1575, 1.0
    %v1577 = vrcp.pop %v1576
    %v1578 = vmul.f32 1.0, %v1577
    %v1579 = vtanh.pop %v1565
    %v1580 = vxor.u32 %v1566, 2147483648
    %v1581 = vmul.f32 %v1580, 1.442695
    %v1582 = vpow.pop %v1581
    %v1583 = vadd.f32 %v1582, 1.0
    %v1584 = vrcp.pop %v1583
    %v1585 = vmul.f32 1.0, %v1584
    %v1586 = vmul.f32 %v1578, %v1477
    %v1587 = vmul.f32 %v1572, %v1579
    %v1588 = vadd.f32 %v1586, %v1587
    %v1589 = vtanh.pop %v1588
    %v1590 = vmul.f32 %v1585, %v1589
    %v1591 = vpack.c.bf16 %v1590, %v1590
    %1592 = vmatprep.subr.bf16.mxu0 %v974
    %1593 = vmatpush1.bf16.msra.mxu0 %v973
    %1594 = vmatprep.subr.bf16.mxu0 %v978
    %1595 = vmatpush1.bf16.msra.mxu0 %v977
    %1596 = vmatprep.subr.bf16.mxu0 %v982
    %1597 = vmatpush1.bf16.msra.mxu0 %v981
    %1598 = vmatprep.subr.bf16.mxu0 %v986
    %1599 = vmatpush1.bf16.msra.mxu0 %v985
    %1600 = vmatprep.subr.bf16.mxu0 %v990
    %1601 = vmatpush1.bf16.msra.mxu0 %v989
    %1602 = vmatprep.subr.bf16.mxu0 %v994
    %1603 = vmatpush1.bf16.msra.mxu0 %v993
    %1604 = vmatprep.subr.bf16.mxu0 %v998
    %1605 = vmatpush1.bf16.msra.mxu0 %v997
    %1606 = vmatprep.subr.bf16.mxu0 %v1002
    %1607 = vmatpush1.bf16.msra.mxu0 %v1001
    %1608 = vmatprep.subr.bf16.mxu0 0
    %1609 = vmatpush1.bf16.msra.mxu0 0
    %1610 = vmatprep.subr.bf16.mxu0 0
    %1611 = vmatpush1.bf16.msra.mxu0 0
    %1612 = vmatprep.subr.bf16.mxu0 0
    %1613 = vmatpush1.bf16.msra.mxu0 0
    %1614 = vmatprep.subr.bf16.mxu0 0
    %1615 = vmatpush1.bf16.msra.mxu0 0
    %1616 = vmatprep.subr.bf16.mxu0 0
    %1617 = vmatpush1.bf16.msra.mxu0 0
    %1618 = vmatprep.subr.bf16.mxu0 0
    %1619 = vmatpush1.bf16.msra.mxu0 0
    %1620 = vmatprep.subr.bf16.mxu0 0
    %1621 = vmatpush1.bf16.msra.mxu0 0
    %1622 = vmatprep.subr.bf16.mxu0 0
    %1623 = vmatpush1.bf16.msra.mxu0 0
    %1624 = vmatprep.mubr.bf16.mxu0 0
    %1625 = vmatmul.mubr.bf16.gmra.mrb[0].mxu0 %v1591
    %v1626 = vpop.f32.mrb[0].mxu0
    %v1627 = vadd.f32 0.0, %v1626
    %v1628 = vpop.f32.mrb[0].mxu0
    %v1629 = vadd.f32 0.0, %v1628
    %v1630 = vpop.f32.mrb[0].mxu0
    %v1631 = vpop.f32.mrb[0].mxu0
    %1632 = vdwg.mxu0
    %1633 = vmatprep.subr.bf16.mxu0 %v976
    %1634 = vmatpush1.bf16.msra.mxu0 %v975
    %1635 = vmatprep.subr.bf16.mxu0 %v980
    %1636 = vmatpush1.bf16.msra.mxu0 %v979
    %1637 = vmatprep.subr.bf16.mxu0 %v984
    %1638 = vmatpush1.bf16.msra.mxu0 %v983
    %1639 = vmatprep.subr.bf16.mxu0 %v988
    %1640 = vmatpush1.bf16.msra.mxu0 %v987
    %1641 = vmatprep.subr.bf16.mxu0 %v992
    %1642 = vmatpush1.bf16.msra.mxu0 %v991
    %1643 = vmatprep.subr.bf16.mxu0 %v996
    %1644 = vmatpush1.bf16.msra.mxu0 %v995
    %1645 = vmatprep.subr.bf16.mxu0 %v1000
    %1646 = vmatpush1.bf16.msra.mxu0 %v999
    %1647 = vmatprep.subr.bf16.mxu0 %v1004
    %1648 = vmatpush1.bf16.msra.mxu0 %v1003
    %1649 = vmatprep.subr.bf16.mxu0 0
    %1650 = vmatpush1.bf16.msra.mxu0 0
    %1651 = vmatprep.subr.bf16.mxu0 0
    %1652 = vmatpush1.bf16.msra.mxu0 0
    %1653 = vmatprep.subr.bf16.mxu0 0
    %1654 = vmatpush1.bf16.msra.mxu0 0
    %1655 = vmatprep.subr.bf16.mxu0 0
    %1656 = vmatpush1.bf16.msra.mxu0 0
    %1657 = vmatprep.subr.bf16.mxu0 0
    %1658 = vmatpush1.bf16.msra.mxu0 0
    %1659 = vmatprep.subr.bf16.mxu0 0
    %1660 = vmatpush1.bf16.msra.mxu0 0
    %1661 = vmatprep.subr.bf16.mxu0 0
    %1662 = vmatpush1.bf16.msra.mxu0 0
    %1663 = vmatprep.subr.bf16.mxu0 0
    %1664 = vmatpush1.bf16.msra.mxu0 0
    %1665 = vmatprep.mubr.bf16.mxu0 0
    %1666 = vmatmul.mubr.bf16.gmra.mrb[0].mxu0 %v1591
    %v1667 = vpop.f32.mrb[0].mxu0
    %v1668 = vadd.f32 0.0, %v1667
    %v1669 = vpop.f32.mrb[0].mxu0
    %v1670 = vadd.f32 0.0, %v1669
    %v1671 = vpop.f32.mrb[0].mxu0
    %v1672 = vpop.f32.mrb[0].mxu0
    %1673 = vdwg.mxu0
    %v1674 = vadd.f32 %v624, %v1627
    %v1675 = vadd.f32 %v626, %v1629
    %v1676 = vadd.f32 %v697, %v1668
    %v1677 = vadd.f32 %v699, %v1670
    %v1678 = vxor.u32 %v1674, 2147483648
    %v1679 = vmul.f32 %v1678, 1.442695
    %v1680 = vpow.pop %v1679
    %v1681 = vadd.f32 %v1680, 1.0
    %v1682 = vrcp.pop %v1681
    %v1683 = vmul.f32 1.0, %v1682
    %v1684 = vxor.u32 %v1675, 2147483648
    %v1685 = vmul.f32 %v1684, 1.442695
    %v1686 = vpow.pop %v1685
    %v1687 = vadd.f32 %v1686, 1.0
    %v1688 = vrcp.pop %v1687
    %v1689 = vmul.f32 1.0, %v1688
    %v1690 = vtanh.pop %v1676
    %v1691 = vxor.u32 %v1677, 2147483648
    %v1692 = vmul.f32 %v1691, 1.442695
    %v1693 = vpow.pop %v1692
    %v1694 = vadd.f32 %v1693, 1.0
    %v1695 = vrcp.pop %v1694
    %v1696 = vmul.f32 1.0, %v1695
    %v1697 = vmul.f32 %v1689, %v1588
    %v1698 = vmul.f32 %v1683, %v1690
    %v1699 = vadd.f32 %v1697, %v1698
    %v1700 = vtanh.pop %v1699
    %v1701 = vmul.f32 %v1696, %v1700
    %v1702 = vpack.c.bf16 %v1701, %v1701
    %1703 = vmatprep.subr.bf16.mxu0 %v974
    %1704 = vmatpush1.bf16.msra.mxu0 %v973
    %1705 = vmatprep.subr.bf16.mxu0 %v978
    %1706 = vmatpush1.bf16.msra.mxu0 %v977
    %1707 = vmatprep.subr.bf16.mxu0 %v982
    %1708 = vmatpush1.bf16.msra.mxu0 %v981
    %1709 = vmatprep.subr.bf16.mxu0 %v986
    %1710 = vmatpush1.bf16.msra.mxu0 %v985
    %1711 = vmatprep.subr.bf16.mxu0 %v990
    %1712 = vmatpush1.bf16.msra.mxu0 %v989
    %1713 = vmatprep.subr.bf16.mxu0 %v994
    %1714 = vmatpush1.bf16.msra.mxu0 %v993
    %1715 = vmatprep.subr.bf16.mxu0 %v998
    %1716 = vmatpush1.bf16.msra.mxu0 %v997
    %1717 = vmatprep.subr.bf16.mxu0 %v1002
    %1718 = vmatpush1.bf16.msra.mxu0 %v1001
    %1719 = vmatprep.subr.bf16.mxu0 0
    %1720 = vmatpush1.bf16.msra.mxu0 0
    %1721 = vmatprep.subr.bf16.mxu0 0
    %1722 = vmatpush1.bf16.msra.mxu0 0
    %1723 = vmatprep.subr.bf16.mxu0 0
    %1724 = vmatpush1.bf16.msra.mxu0 0
    %1725 = vmatprep.subr.bf16.mxu0 0
    %1726 = vmatpush1.bf16.msra.mxu0 0
    %1727 = vmatprep.subr.bf16.mxu0 0
    %1728 = vmatpush1.bf16.msra.mxu0 0
    %1729 = vmatprep.subr.bf16.mxu0 0
    %1730 = vmatpush1.bf16.msra.mxu0 0
    %1731 = vmatprep.subr.bf16.mxu0 0
    %1732 = vmatpush1.bf16.msra.mxu0 0
    %1733 = vmatprep.subr.bf16.mxu0 0
    %1734 = vmatpush1.bf16.msra.mxu0 0
    %1735 = vmatprep.mubr.bf16.mxu0 0
    %1736 = vmatmul.mubr.bf16.gmra.mrb[0].mxu0 %v1702
    %v1737 = vpop.f32.mrb[0].mxu0
    %v1738 = vadd.f32 0.0, %v1737
    %v1739 = vpop.f32.mrb[0].mxu0
    %v1740 = vadd.f32 0.0, %v1739
    %v1741 = vpop.f32.mrb[0].mxu0
    %v1742 = vpop.f32.mrb[0].mxu0
    %1743 = vdwg.mxu0
    %1744 = vmatprep.subr.bf16.mxu0 %v976
    %1745 = vmatpush1.bf16.msra.mxu0 %v975
    %1746 = vmatprep.subr.bf16.mxu0 %v980
    %1747 = vmatpush1.bf16.msra.mxu0 %v979
    %1748 = vmatprep.subr.bf16.mxu0 %v984
    %1749 = vmatpush1.bf16.msra.mxu0 %v983
    %1750 = vmatprep.subr.bf16.mxu0 %v988
    %1751 = vmatpush1.bf16.msra.mxu0 %v987
    %1752 = vmatprep.subr.bf16.mxu0 %v992
    %1753 = vmatpush1.bf16.msra.mxu0 %v991
    %1754 = vmatprep.subr.bf16.mxu0 %v996
    %1755 = vmatpush1.bf16.msra.mxu0 %v995
    %1756 = vmatprep.subr.bf16.mxu0 %v1000
    %1757 = vmatpush1.bf16.msra.mxu0 %v999
    %1758 = vmatprep.subr.bf16.mxu0 %v1004
    %1759 = vmatpush1.bf16.msra.mxu0 %v1003
    %1760 = vmatprep.subr.bf16.mxu0 0
    %1761 = vmatpush1.bf16.msra.mxu0 0
    %1762 = vmatprep.subr.bf16.mxu0 0
    %1763 = vmatpush1.bf16.msra.mxu0 0
    %1764 = vmatprep.subr.bf16.mxu0 0
    %1765 = vmatpush1.bf16.msra.mxu0 0
    %1766 = vmatprep.subr.bf16.mxu0 0
    %1767 = vmatpush1.bf16.msra.mxu0 0
    %1768 = vmatprep.subr.bf16.mxu0 0
    %1769 = vmatpush1.bf16.msra.mxu0 0
    %1770 = vmatprep.subr.bf16.mxu0 0
    %1771 = vmatpush1.bf16.msra.mxu0 0
    %1772 = vmatprep.subr.bf16.mxu0 0
    %1773 = vmatpush1.bf16.msra.mxu0 0
    %1774 = vmatprep.subr.bf16.mxu0 0
    %1775 = vmatpush1.bf16.msra.mxu0 0
    %1776 = vmatprep.mubr.bf16.mxu0 0
    %1777 = vmatmul.mubr.bf16.gmra.mrb[0].mxu0 %v1702
    %v1778 = vpop.f32.mrb[0].mxu0
    %v1779 = vadd.f32 0.0, %v1778
    %v1780 = vpop.f32.mrb[0].mxu0
    %v1781 = vadd.f32 0.0, %v1780
    %v1782 = vpop.f32.mrb[0].mxu0
    %v1783 = vpop.f32.mrb[0].mxu0
    %1784 = vdwg.mxu0
    %v1785 = vadd.f32 %v630, %v1738
    %v1786 = vadd.f32 %v632, %v1740
    %v1787 = vadd.f32 %v703, %v1779
    %v1788 = vadd.f32 %v705, %v1781
    %v1789 = vxor.u32 %v1785, 2147483648
    %v1790 = vmul.f32 %v1789, 1.442695
    %v1791 = vpow.pop %v1790
    %v1792 = vadd.f32 %v1791, 1.0
    %v1793 = vrcp.pop %v1792
    %v1794 = vmul.f32 1.0, %v1793
    %v1795 = vxor.u32 %v1786, 2147483648
    %v1796 = vmul.f32 %v1795, 1.442695
    %v1797 = vpow.pop %v1796
    %v1798 = vadd.f32 %v1797, 1.0
    %v1799 = vrcp.pop %v1798
    %v1800 = vmul.f32 1.0, %v1799
    %v1801 = vtanh.pop %v1787
    %v1802 = vxor.u32 %v1788, 2147483648
    %v1803 = vmul.f32 %v1802, 1.442695
    %v1804 = vpow.pop %v1803
    %v1805 = vadd.f32 %v1804, 1.0
    %v1806 = vrcp.pop %v1805
    %v1807 = vmul.f32 1.0, %v1806
    %v1808 = vmul.f32 %v1800, %v1699
    %v1809 = vmul.f32 %v1794, %v1801
    %v1810 = vadd.f32 %v1808, %v1809
    %v1811 = vtanh.pop %v1810
    %v1812 = vmul.f32 %v1807, %v1811
    %v1813 = vpack.c.bf16 %v1812, %v1812
    %1814 = vmatprep.subr.bf16.mxu0 %v974
    %1815 = vmatpush1.bf16.msra.mxu0 %v973
    %1816 = vmatprep.subr.bf16.mxu0 %v978
    %1817 = vmatpush1.bf16.msra.mxu0 %v977
    %1818 = vmatprep.subr.bf16.mxu0 %v982
    %1819 = vmatpush1.bf16.msra.mxu0 %v981
    %1820 = vmatprep.subr.bf16.mxu0 %v986
    %1821 = vmatpush1.bf16.msra.mxu0 %v985
    %1822 = vmatprep.subr.bf16.mxu0 %v990
    %1823 = vmatpush1.bf16.msra.mxu0 %v989
    %1824 = vmatprep.subr.bf16.mxu0 %v994
    %1825 = vmatpush1.bf16.msra.mxu0 %v993
    %1826 = vmatprep.subr.bf16.mxu0 %v998
    %1827 = vmatpush1.bf16.msra.mxu0 %v997
    %1828 = vmatprep.subr.bf16.mxu0 %v1002
    %1829 = vmatpush1.bf16.msra.mxu0 %v1001
    %1830 = vmatprep.subr.bf16.mxu0 0
    %1831 = vmatpush1.bf16.msra.mxu0 0
    %1832 = vmatprep.subr.bf16.mxu0 0
    %1833 = vmatpush1.bf16.msra.mxu0 0
    %1834 = vmatprep.subr.bf16.mxu0 0
    %1835 = vmatpush1.bf16.msra.mxu0 0
    %1836 = vmatprep.subr.bf16.mxu0 0
    %1837 = vmatpush1.bf16.msra.mxu0 0
    %1838 = vmatprep.subr.bf16.mxu0 0
    %1839 = vmatpush1.bf16.msra.mxu0 0
    %1840 = vmatprep.subr.bf16.mxu0 0
    %1841 = vmatpush1.bf16.msra.mxu0 0
    %1842 = vmatprep.subr.bf16.mxu0 0
    %1843 = vmatpush1.bf16.msra.mxu0 0
    %1844 = vmatprep.subr.bf16.mxu0 0
    %1845 = vmatpush1.bf16.msra.mxu0 0
    %1846 = vmatprep.mubr.bf16.mxu0 0
    %1847 = vmatmul.mubr.bf16.gmra.mrb[0].mxu0 %v1813
    %v1848 = vpop.f32.mrb[0].mxu0
    %v1849 = vadd.f32 0.0, %v1848
    %v1850 = vpop.f32.mrb[0].mxu0
    %v1851 = vadd.f32 0.0, %v1850
    %v1852 = vpop.f32.mrb[0].mxu0
    %v1853 = vpop.f32.mrb[0].mxu0
    %1854 = vdwg.mxu0
    %1855 = vmatprep.subr.bf16.mxu0 %v976
    %1856 = vmatpush1.bf16.msra.mxu0 %v975
    %1857 = vmatprep.subr.bf16.mxu0 %v980
    %1858 = vmatpush1.bf16.msra.mxu0 %v979
    %1859 = vmatprep.subr.bf16.mxu0 %v984
    %1860 = vmatpush1.bf16.msra.mxu0 %v983
    %1861 = vmatprep.subr.bf16.mxu0 %v988
    %1862 = vmatpush1.bf16.msra.mxu0 %v987
    %1863 = vmatprep.subr.bf16.mxu0 %v992
    %1864 = vmatpush1.bf16.msra.mxu0 %v991
    %1865 = vmatprep.subr.bf16.mxu0 %v996
    %1866 = vmatpush1.bf16.msra.mxu0 %v995
    %1867 = vmatprep.subr.bf16.mxu0 %v1000
    %1868 = vmatpush1.bf16.msra.mxu0 %v999
    %1869 = vmatprep.subr.bf16.mxu0 %v1004
    %1870 = vmatpush1.bf16.msra.mxu0 %v1003
    %1871 = vmatprep.subr.bf16.mxu0 0
    %1872 = vmatpush1.bf16.msra.mxu0 0
    %1873 = vmatprep.subr.bf16.mxu0 0
    %1874 = vmatpush1.bf16.msra.mxu0 0
    %1875 = vmatprep.subr.bf16.mxu0 0
    %1876 = vmatpush1.bf16.msra.mxu0 0
    %1877 = vmatprep.subr.bf16.mxu0 0
    %1878 = vmatpush1.bf16.msra.mxu0 0
    %1879 = vmatprep.subr.bf16.mxu0 0
    %1880 = vmatpush1.bf16.msra.mxu0 0
    %1881 = vmatprep.subr.bf16.mxu0 0
    %1882 = vmatpush1.bf16.msra.mxu0 0
    %1883 = vmatprep.subr.bf16.mxu0 0
    %1884 = vmatpush1.bf16.msra.mxu0 0
    %1885 = vmatprep.subr.bf16.mxu0 0
    %1886 = vmatpush1.bf16.msra.mxu0 0
    %1887 = vmatprep.mubr.bf16.mxu0 0
    %1888 = vmatmul.mubr.bf16.gmra.mrb[0].mxu0 %v1813
    %v1889 = vpop.f32.mrb[0].mxu0
    %v1890 = vadd.f32 0.0, %v1889
    %v1891 = vpop.f32.mrb[0].mxu0
    %v1892 = vadd.f32 0.0, %v1891
    %v1893 = vpop.f32.mrb[0].mxu0
    %v1894 = vpop.f32.mrb[0].mxu0
    %1895 = vdwg.mxu0
    %v1896 = vadd.f32 %v634, %v1849
    %v1897 = vadd.f32 %v636, %v1851
    %v1898 = vadd.f32 %v707, %v1890
    %v1899 = vadd.f32 %v709, %v1892
    %v1900 = vxor.u32 %v1896, 2147483648
    %v1901 = vmul.f32 %v1900, 1.442695
    %v1902 = vpow.pop %v1901
    %v1903 = vadd.f32 %v1902, 1.0
    %v1904 = vrcp.pop %v1903
    %v1905 = vmul.f32 1.0, %v1904
    %v1906 = vxor.u32 %v1897, 2147483648
    %v1907 = vmul.f32 %v1906, 1.442695
    %v1908 = vpow.pop %v1907
    %v1909 = vadd.f32 %v1908, 1.0
    %v1910 = vrcp.pop %v1909
    %v1911 = vmul.f32 1.0, %v1910
    %v1912 = vtanh.pop %v1898
    %v1913 = vxor.u32 %v1899, 2147483648
    %v1914 = vmul.f32 %v1913, 1.442695
    %v1915 = vpow.pop %v1914
    %v1916 = vadd.f32 %v1915, 1.0
    %v1917 = vrcp.pop %v1916
    %v1918 = vmul.f32 1.0, %v1917
    %v1919 = vmul.f32 %v1911, %v1810
    %v1920 = vmul.f32 %v1905, %v1912
    %v1921 = vadd.f32 %v1919, %v1920
    %v1922 = vtanh.pop %v1921
    %v1923 = vmul.f32 %v1918, %v1922
    %s1924 = smul.u32 4, 16
    %s1925 = smul.u32 %s1924, 4
    %s1926 = sshll.u32 %s1925, 4
    %1927 = dma.done %s67, %s1926
    %v1928 = vpack.c.bf16 %v1923, %v1923
    %v1929 = vld [vmem:[#allocation2] sm:$0xff]
    %v1930 = vld [vmem:[#allocation2 + $0x8] sm:$0xff]
    %v1931 = vld [vmem:[#allocation2 + $0x10] sm:$0xff]
    %v1932 = vld [vmem:[#allocation2 + $0x18] sm:$0xff]
    %v1933 = vld [vmem:[#allocation2 + $0x20] sm:$0xff]
    %v1934 = vld [vmem:[#allocation2 + $0x28] sm:$0xff]
    %v1935 = vld [vmem:[#allocation2 + $0x30] sm:$0xff]
    %v1936 = vld [vmem:[#allocation2 + $0x38] sm:$0xff]
    %v1937 = vld [vmem:[#allocation2 + $0x40] sm:$0xff]
    %v1938 = vld [vmem:[#allocation2 + $0x48] sm:$0xff]
    %v1939 = vld [vmem:[#allocation2 + $0x50] sm:$0xff]
    %v1940 = vld [vmem:[#allocation2 + $0x58] sm:$0xff]
    %v1941 = vld [vmem:[#allocation2 + $0x60] sm:$0xff]
    %v1942 = vld [vmem:[#allocation2 + $0x68] sm:$0xff]
    %v1943 = vld [vmem:[#allocation2 + $0x70] sm:$0xff]
    %v1944 = vld [vmem:[#allocation2 + $0x78] sm:$0xff]
    %v1945 = vld [vmem:[#allocation2 + $0x80] sm:$0xff]
    %v1946 = vld [vmem:[#allocation2 + $0x88] sm:$0xff]
    %v1947 = vld [vmem:[#allocation2 + $0x90] sm:$0xff]
    %v1948 = vld [vmem:[#allocation2 + $0x98] sm:$0xff]
    %v1949 = vld [vmem:[#allocation2 + $0xa0] sm:$0xff]
    %v1950 = vld [vmem:[#allocation2 + $0xa8] sm:$0xff]
    %v1951 = vld [vmem:[#allocation2 + $0xb0] sm:$0xff]
    %v1952 = vld [vmem:[#allocation2 + $0xb8] sm:$0xff]
    %v1953 = vld [vmem:[#allocation2 + $0xc0] sm:$0xff]
    %v1954 = vld [vmem:[#allocation2 + $0xc8] sm:$0xff]
    %v1955 = vld [vmem:[#allocation2 + $0xd0] sm:$0xff]
    %v1956 = vld [vmem:[#allocation2 + $0xd8] sm:$0xff]
    %v1957 = vld [vmem:[#allocation2 + $0xe0] sm:$0xff]
    %v1958 = vld [vmem:[#allocation2 + $0xe8] sm:$0xff]
    %v1959 = vld [vmem:[#allocation2 + $0xf0] sm:$0xff]
    %v1960 = vld [vmem:[#allocation2 + $0xf8] sm:$0xff]
    %1961 = vmatprep.subr.bf16.mxu0 %v1930
    %1962 = vmatpush1.bf16.msra.mxu0 %v1929
    %1963 = vmatprep.subr.bf16.mxu0 %v1934
    %1964 = vmatpush1.bf16.msra.mxu0 %v1933
    %1965 = vmatprep.subr.bf16.mxu0 %v1938
    %1966 = vmatpush1.bf16.msra.mxu0 %v1937
    %1967 = vmatprep.subr.bf16.mxu0 %v1942
    %1968 = vmatpush1.bf16.msra.mxu0 %v1941
    %1969 = vmatprep.subr.bf16.mxu0 %v1946
    %1970 = vmatpush1.bf16.msra.mxu0 %v1945
    %1971 = vmatprep.subr.bf16.mxu0 %v1950
    %1972 = vmatpush1.bf16.msra.mxu0 %v1949
    %1973 = vmatprep.subr.bf16.mxu0 %v1954
    %1974 = vmatpush1.bf16.msra.mxu0 %v1953
    %1975 = vmatprep.subr.bf16.mxu0 %v1958
    %1976 = vmatpush1.bf16.msra.mxu0 %v1957
    %1977 = vmatprep.subr.bf16.mxu0 0
    %1978 = vmatpush1.bf16.msra.mxu0 0
    %1979 = vmatprep.subr.bf16.mxu0 0
    %1980 = vmatpush1.bf16.msra.mxu0 0
    %1981 = vmatprep.subr.bf16.mxu0 0
    %1982 = vmatpush1.bf16.msra.mxu0 0
    %1983 = vmatprep.subr.bf16.mxu0 0
    %1984 = vmatpush1.bf16.msra.mxu0 0
    %1985 = vmatprep.subr.bf16.mxu0 0
    %1986 = vmatpush1.bf16.msra.mxu0 0
    %1987 = vmatprep.subr.bf16.mxu0 0
    %1988 = vmatpush1.bf16.msra.mxu0 0
    %1989 = vmatprep.subr.bf16.mxu0 0
    %1990 = vmatpush1.bf16.msra.mxu0 0
    %1991 = vmatprep.subr.bf16.mxu0 0
    %1992 = vmatpush1.bf16.msra.mxu0 0
    %1993 = vmatprep.mubr.bf16.mxu0 0
    %1994 = vmatmul.mubr.bf16.gmra.mrb[0].mxu0 %v1928
    %v1995 = vpop.f32.mrb[0].mxu0
    %v1996 = vadd.f32 0.0, %v1995
    %v1997 = vpop.f32.mrb[0].mxu0
    %v1998 = vadd.f32 0.0, %v1997
    %v1999 = vpop.f32.mrb[0].mxu0
    %v2000 = vpop.f32.mrb[0].mxu0
    %2001 = vdwg.mxu0
    %2002 = vmatprep.subr.bf16.mxu0 %v1932
    %2003 = vmatpush1.bf16.msra.mxu0 %v1931
    %2004 = vmatprep.subr.bf16.mxu0 %v1936
    %2005 = vmatpush1.bf16.msra.mxu0 %v1935
    %2006 = vmatprep.subr.bf16.mxu0 %v1940
    %2007 = vmatpush1.bf16.msra.mxu0 %v1939
    %2008 = vmatprep.subr.bf16.mxu0 %v1944
    %2009 = vmatpush1.bf16.msra.mxu0 %v1943
    %2010 = vmatprep.subr.bf16.mxu0 %v1948
    %2011 = vmatpush1.bf16.msra.mxu0 %v1947
    %2012 = vmatprep.subr.bf16.mxu0 %v1952
    %2013 = vmatpush1.bf16.msra.mxu0 %v1951
    %2014 = vmatprep.subr.bf16.mxu0 %v1956
    %2015 = vmatpush1.bf16.msra.mxu0 %v1955
    %2016 = vmatprep.subr.bf16.mxu0 %v1960
    %2017 = vmatpush1.bf16.msra.mxu0 %v1959
    %2018 = vmatprep.subr.bf16.mxu0 0
    %2019 = vmatpush1.bf16.msra.mxu0 0
    %2020 = vmatprep.subr.bf16.mxu0 0
    %2021 = vmatpush1.bf16.msra.mxu0 0
    %2022 = vmatprep.subr.bf16.mxu0 0
    %2023 = vmatpush1.bf16.msra.mxu0 0
    %2024 = vmatprep.subr.bf16.mxu0 0
    %2025 = vmatpush1.bf16.msra.mxu0 0
    %2026 = vmatprep.subr.bf16.mxu0 0
    %2027 = vmatpush1.bf16.msra.mxu0 0
    %2028 = vmatprep.subr.bf16.mxu0 0
    %2029 = vmatpush1.bf16.msra.mxu0 0
    %2030 = vmatprep.subr.bf16.mxu0 0
    %2031 = vmatpush1.bf16.msra.mxu0 0
    %2032 = vmatprep.subr.bf16.mxu0 0
    %2033 = vmatpush1.bf16.msra.mxu0 0
    %2034 = vmatprep.mubr.bf16.mxu0 0
    %2035 = vmatmul.mubr.bf16.gmra.mrb[0].mxu0 %v1928
    %v2036 = vpop.f32.mrb[0].mxu0
    %v2037 = vadd.f32 0.0, %v2036
    %v2038 = vpop.f32.mrb[0].mxu0
    %v2039 = vadd.f32 0.0, %v2038
    %v2040 = vpop.f32.mrb[0].mxu0
    %v2041 = vpop.f32.mrb[0].mxu0
    %2042 = vdwg.mxu0
    %v2165 = vunpack.c.l.b16 %v723
    %v2166 = vunpack.c.h.b16 %v723
    %v2167 = vunpack.c.l.b16 %v724
    %v2168 = vunpack.c.h.b16 %v724
    %v2169 = vunpack.c.l.b16 %v725
    %v2170 = vunpack.c.h.b16 %v725
    %v2171 = vunpack.c.l.b16 %v726
    %v2172 = vunpack.c.h.b16 %v726
    %v2173 = vunpack.c.l.b16 %v727
    %v2174 = vunpack.c.h.b16 %v727
    %v2175 = vunpack.c.l.b16 %v728
    %v2176 = vunpack.c.h.b16 %v728
    %v2177 = vunpack.c.l.b16 %v729
    %v2178 = vunpack.c.h.b16 %v729
    %v2179 = vunpack.c.l.b16 %v730
    %v2180 = vunpack.c.h.b16 %v730
    %v2181 = vunpack.c.l.b16 %v731
    %v2182 = vunpack.c.h.b16 %v731
    %v2183 = vunpack.c.l.b16 %v732
    %v2184 = vunpack.c.h.b16 %v732
    %v2185 = vunpack.c.l.b16 %v733
    %v2186 = vunpack.c.h.b16 %v733
    %v2187 = vunpack.c.l.b16 %v734
    %v2188 = vunpack.c.h.b16 %v734
    %v2189 = vunpack.c.l.b16 %v735
    %v2190 = vunpack.c.h.b16 %v735
    %v2191 = vunpack.c.l.b16 %v736
    %v2192 = vunpack.c.h.b16 %v736
    %v2193 = vunpack.c.l.b16 %v737
    %v2194 = vunpack.c.h.b16 %v737
    %v2195 = vunpack.c.l.b16 %v738
    %v2196 = vunpack.c.h.b16 %v738
    %v2197 = vunpack.c.l.b16 %v739
    %v2198 = vunpack.c.h.b16 %v739
    %v2199 = vunpack.c.l.b16 %v740
    %v2200 = vunpack.c.h.b16 %v740
    %v2201 = vunpack.c.l.b16 %v741
    %v2202 = vunpack.c.h.b16 %v741
    %v2203 = vunpack.c.l.b16 %v742
    %v2204 = vunpack.c.h.b16 %v742
    %v2205 = vunpack.c.l.b16 %v743
    %v2206 = vunpack.c.h.b16 %v743
    %v2207 = vunpack.c.l.b16 %v744
    %v2208 = vunpack.c.h.b16 %v744
    %v2209 = vunpack.c.l.b16 %v745
    %v2210 = vunpack.c.h.b16 %v745
    %v2211 = vunpack.c.l.b16 %v746
    %v2212 = vunpack.c.h.b16 %v746
    %v2213 = vunpack.c.l.b16 %v747
    %v2214 = vunpack.c.h.b16 %v747
    %v2215 = vunpack.c.l.b16 %v748
    %v2216 = vunpack.c.h.b16 %v748
    %v2217 = vunpack.c.l.b16 %v749
    %v2218 = vunpack.c.h.b16 %v749
    %v2219 = vunpack.c.l.b16 %v750
    %v2220 = vunpack.c.h.b16 %v750
    %v2221 = vunpack.c.l.b16 %v751
    %v2222 = vunpack.c.h.b16 %v751
    %v2223 = vunpack.c.l.b16 %v752
    %v2224 = vunpack.c.h.b16 %v752
    %v2225 = vunpack.c.l.b16 %v753
    %v2226 = vunpack.c.h.b16 %v753
    %v2227 = vunpack.c.l.b16 %v754
    %v2228 = vunpack.c.h.b16 %v754
    %v2229 = vunpack.c.l.b16 %v755
    %v2230 = vunpack.c.h.b16 %v755
    %v2231 = vunpack.c.l.b16 %v756
    %v2232 = vunpack.c.h.b16 %v756
    %v2233 = vunpack.c.l.b16 %v757
    %v2234 = vunpack.c.h.b16 %v757
    %v2235 = vunpack.c.l.b16 %v758
    %v2236 = vunpack.c.h.b16 %v758
    %v2237 = vunpack.c.l.b16 %v759
    %v2238 = vunpack.c.h.b16 %v759
    %v2239 = vunpack.c.l.b16 %v760
    %v2240 = vunpack.c.h.b16 %v760
    %v2241 = vunpack.c.l.b16 %v761
    %v2242 = vunpack.c.h.b16 %v761
    %v2243 = vunpack.c.l.b16 %v762
    %v2244 = vunpack.c.h.b16 %v762
    %v2245 = vunpack.c.l.b16 %v763
    %v2246 = vunpack.c.h.b16 %v763
    %v2247 = vunpack.c.l.b16 %v764
    %v2248 = vunpack.c.h.b16 %v764
    %v2249 = vunpack.c.l.b16 %v765
    %v2250 = vunpack.c.h.b16 %v765
    %v2251 = vunpack.c.l.b16 %v766
    %v2252 = vunpack.c.h.b16 %v766
    %v2253 = vunpack.c.l.b16 %v767
    %v2254 = vunpack.c.h.b16 %v767
    %v2255 = vunpack.c.l.b16 %v768
    %v2256 = vunpack.c.h.b16 %v768
    %v2257 = vunpack.c.l.b16 %v769
    %v2258 = vunpack.c.h.b16 %v769
    %v2259 = vunpack.c.l.b16 %v770
    %v2260 = vunpack.c.h.b16 %v770
    %v2261 = vunpack.c.l.b16 %v771
    %v2262 = vunpack.c.h.b16 %v771
    %v2263 = vunpack.c.l.b16 %v772
    %v2264 = vunpack.c.h.b16 %v772
    %v2265 = vunpack.c.l.b16 %v773
    %v2266 = vunpack.c.h.b16 %v773
    %v2267 = vunpack.c.l.b16 %v774
    %v2268 = vunpack.c.h.b16 %v774
    %v2269 = vunpack.c.l.b16 %v775
    %v2270 = vunpack.c.h.b16 %v775
    %v2271 = vunpack.c.l.b16 %v776
    %v2272 = vunpack.c.h.b16 %v776
    %v2273 = vunpack.c.l.b16 %v777
    %v2274 = vunpack.c.h.b16 %v777
    %v2275 = vunpack.c.l.b16 %v778
    %v2276 = vunpack.c.h.b16 %v778
    %v2277 = vunpack.c.l.b16 %v779
    %v2278 = vunpack.c.h.b16 %v779
    %v2279 = vunpack.c.l.b16 %v780
    %v2280 = vunpack.c.h.b16 %v780
    %v2281 = vunpack.c.l.b16 %v781
    %v2282 = vunpack.c.h.b16 %v781
    %v2283 = vunpack.c.l.b16 %v782
    %v2284 = vunpack.c.h.b16 %v782
    %v2285 = vunpack.c.l.b16 %v783
    %v2286 = vunpack.c.h.b16 %v783
    %v2287 = vunpack.c.l.b16 %v784
    %v2288 = vunpack.c.h.b16 %v784
    %v2289 = vunpack.c.l.b16 %v785
    %v2290 = vunpack.c.h.b16 %v785
    %v2291 = vunpack.c.l.b16 %v786
    %v2292 = vunpack.c.h.b16 %v786
    %v2293 = vunpack.c.l.b16 %v787
    %v2294 = vunpack.c.h.b16 %v787
    %v2295 = vunpack.c.l.b16 %v788
    %v2296 = vunpack.c.h.b16 %v788
    %v2297 = vunpack.c.l.b16 %v789
    %v2298 = vunpack.c.h.b16 %v789
    %v2299 = vunpack.c.l.b16 %v790
    %v2300 = vunpack.c.h.b16 %v790
    %v2301 = vunpack.c.l.b16 %v791
    %v2302 = vunpack.c.h.b16 %v791
    %v2303 = vunpack.c.l.b16 %v792
    %v2304 = vunpack.c.h.b16 %v792
    %v2305 = vunpack.c.l.b16 %v793
    %v2306 = vunpack.c.h.b16 %v793
    %v2307 = vunpack.c.l.b16 %v794
    %v2308 = vunpack.c.h.b16 %v794
    %v2309 = vunpack.c.l.b16 %v795
    %v2310 = vunpack.c.h.b16 %v795
    %v2311 = vunpack.c.l.b16 %v796
    %v2312 = vunpack.c.h.b16 %v796
    %v2313 = vunpack.c.l.b16 %v797
    %v2314 = vunpack.c.h.b16 %v797
    %v2315 = vunpack.c.l.b16 %v798
    %v2316 = vunpack.c.h.b16 %v798
    %v2317 = vunpack.c.l.b16 %v799
    %v2318 = vunpack.c.h.b16 %v799
    %v2319 = vunpack.c.l.b16 %v800
    %v2320 = vunpack.c.h.b16 %v800
    %v2321 = vunpack.c.l.b16 %v801
    %v2322 = vunpack.c.h.b16 %v801
    %v2323 = vunpack.c.l.b16 %v802
    %v2324 = vunpack.c.h.b16 %v802
    %v2325 = vunpack.c.l.b16 %v803
    %v2326 = vunpack.c.h.b16 %v803
    %v2327 = vunpack.c.l.b16 %v804
    %v2328 = vunpack.c.h.b16 %v804
    %v2329 = vunpack.c.l.b16 %v805
    %v2330 = vunpack.c.h.b16 %v805
    %v2331 = vunpack.c.l.b16 %v806
    %v2332 = vunpack.c.h.b16 %v806
    %v2333 = vunpack.c.l.b16 %v807
    %v2334 = vunpack.c.h.b16 %v807
    %v2335 = vunpack.c.l.b16 %v808
    %v2336 = vunpack.c.h.b16 %v808
    %v2337 = vunpack.c.l.b16 %v809
    %v2338 = vunpack.c.h.b16 %v809
    %v2339 = vunpack.c.l.b16 %v810
    %v2340 = vunpack.c.h.b16 %v810
    %v2341 = vunpack.c.l.b16 %v811
    %v2342 = vunpack.c.h.b16 %v811
    %v2343 = vunpack.c.l.b16 %v812
    %v2344 = vunpack.c.h.b16 %v812
    %v2345 = vunpack.c.l.b16 %v813
    %v2346 = vunpack.c.h.b16 %v813
    %v2347 = vunpack.c.l.b16 %v814
    %v2348 = vunpack.c.h.b16 %v814
    %v2349 = vunpack.c.l.b16 %v815
    %v2350 = vunpack.c.h.b16 %v815
    %v2351 = vunpack.c.l.b16 %v816
    %v2352 = vunpack.c.h.b16 %v816
    %v2353 = vunpack.c.l.b16 %v817
    %v2354 = vunpack.c.h.b16 %v817
    %v2355 = vunpack.c.l.b16 %v818
    %v2356 = vunpack.c.h.b16 %v818
    %v2357 = vunpack.c.l.b16 %v819
    %v2358 = vunpack.c.h.b16 %v819
    %v2359 = vunpack.c.l.b16 %v820
    %v2360 = vunpack.c.h.b16 %v820
    %v2361 = vunpack.c.l.b16 %v821
    %v2362 = vunpack.c.h.b16 %v821
    %v2363 = vunpack.c.l.b16 %v822
    %v2364 = vunpack.c.h.b16 %v822
    %v2365 = vunpack.c.l.b16 %v823
    %v2366 = vunpack.c.h.b16 %v823
    %v2367 = vunpack.c.l.b16 %v824
    %v2368 = vunpack.c.h.b16 %v824
    %v2369 = vunpack.c.l.b16 %v825
    %v2370 = vunpack.c.h.b16 %v825
    %v2371 = vunpack.c.l.b16 %v826
    %v2372 = vunpack.c.h.b16 %v826
    %v2373 = vunpack.c.l.b16 %v827
    %v2374 = vunpack.c.h.b16 %v827
    %v2375 = vunpack.c.l.b16 %v828
    %v2376 = vunpack.c.h.b16 %v828
    %v2377 = vunpack.c.l.b16 %v829
    %v2378 = vunpack.c.h.b16 %v829
    %v2379 = vunpack.c.l.b16 %v830
    %v2380 = vunpack.c.h.b16 %v830
    %v2381 = vunpack.c.l.b16 %v831
    %v2382 = vunpack.c.h.b16 %v831
    %v2383 = vunpack.c.l.b16 %v832
    %v2384 = vunpack.c.h.b16 %v832
    %v2385 = vunpack.c.l.b16 %v833
    %v2386 = vunpack.c.h.b16 %v833
    %v2387 = vunpack.c.l.b16 %v834
    %v2388 = vunpack.c.h.b16 %v834
    %v2389 = vunpack.c.l.b16 %v835
    %v2390 = vunpack.c.h.b16 %v835
    %v2391 = vunpack.c.l.b16 %v836
    %v2392 = vunpack.c.h.b16 %v836
    %v2393 = vunpack.c.l.b16 %v837
    %v2394 = vunpack.c.h.b16 %v837
    %v2395 = vunpack.c.l.b16 %v838
    %v2396 = vunpack.c.h.b16 %v838
    %v2397 = vunpack.c.l.b16 %v839
    %v2398 = vunpack.c.h.b16 %v839
    %v2399 = vunpack.c.l.b16 %v840
    %v2400 = vunpack.c.h.b16 %v840
    %v2401 = vunpack.c.l.b16 %v841
    %v2402 = vunpack.c.h.b16 %v841
    %v2403 = vunpack.c.l.b16 %v842
    %v2404 = vunpack.c.h.b16 %v842
    %v2405 = vunpack.c.l.b16 %v843
    %v2406 = vunpack.c.h.b16 %v843
    %v2407 = vunpack.c.l.b16 %v844
    %v2408 = vunpack.c.h.b16 %v844
    %v2409 = vpack.c.b16 %v2169, %v2165
    %v2410 = vpack.c.b16 %v2170, %v2166
    %v2411 = vpack.c.b16 %v2171, %v2167
    %v2412 = vpack.c.b16 %v2172, %v2168
    %v2413 = vpack.c.b16 %v2177, %v2173
    %v2414 = vpack.c.b16 %v2178, %v2174
    %v2415 = vpack.c.b16 %v2179, %v2175
    %v2416 = vpack.c.b16 %v2180, %v2176
    %v2417 = vpack.c.b16 %v2185, %v2181
    %v2418 = vpack.c.b16 %v2186, %v2182
    %v2419 = vpack.c.b16 %v2187, %v2183
    %v2420 = vpack.c.b16 %v2188, %v2184
    %v2421 = vpack.c.b16 %v2193, %v2189
    %v2422 = vpack.c.b16 %v2194, %v2190
    %v2423 = vpack.c.b16 %v2195, %v2191
    %v2424 = vpack.c.b16 %v2196, %v2192
    %v2425 = vpack.c.b16 %v2201, %v2197
    %v2426 = vpack.c.b16 %v2202, %v2198
    %v2427 = vpack.c.b16 %v2203, %v2199
    %v2428 = vpack.c.b16 %v2204, %v2200
    %v2429 = vpack.c.b16 %v2209, %v2205
    %v2430 = vpack.c.b16 %v2210, %v2206
    %v2431 = vpack.c.b16 %v2211, %v2207
    %v2432 = vpack.c.b16 %v2212, %v2208
    %v2433 = vpack.c.b16 %v2217, %v2213
    %v2434 = vpack.c.b16 %v2218, %v2214
    %v2435 = vpack.c.b16 %v2219, %v2215
    %v2436 = vpack.c.b16 %v2220, %v2216
    %v2437 = vpack.c.b16 %v2225, %v2221
    %v2438 = vpack.c.b16 %v2226, %v2222
    %v2439 = vpack.c.b16 %v2227, %v2223
    %v2440 = vpack.c.b16 %v2228, %v2224
    %v2441 = vpack.c.b16 %v2233, %v2229
    %v2442 = vpack.c.b16 %v2234, %v2230
    %v2443 = vpack.c.b16 %v2235, %v2231
    %v2444 = vpack.c.b16 %v2236, %v2232
    %v2445 = vpack.c.b16 %v2241, %v2237
    %v2446 = vpack.c.b16 %v2242, %v2238
    %v2447 = vpack.c.b16 %v2243, %v2239
    %v2448 = vpack.c.b16 %v2244, %v2240
    %v2449 = vpack.c.b16 %v2249, %v2245
    %v2450 = vpack.c.b16 %v2250, %v2246
    %v2451 = vpack.c.b16 %v2251, %v2247
    %v2452 = vpack.c.b16 %v2252, %v2248
    %v2453 = vpack.c.b16 %v2257, %v2253
    %v2454 = vpack.c.b16 %v2258, %v2254
    %v2455 = vpack.c.b16 %v2259, %v2255
    %v2456 = vpack.c.b16 %v2260, %v2256
    %v2457 = vpack.c.b16 %v2265, %v2261
    %v2458 = vpack.c.b16 %v2266, %v2262
    %v2459 = vpack.c.b16 %v2267, %v2263
    %v2460 = vpack.c.b16 %v2268, %v2264
    %v2461 = vpack.c.b16 %v2273, %v2269
    %v2462 = vpack.c.b16 %v2274, %v2270
    %v2463 = vpack.c.b16 %v2275, %v2271
    %v2464 = vpack.c.b16 %v2276, %v2272
    %v2465 = vpack.c.b16 %v2281, %v2277
    %v2466 = vpack.c.b16 %v2282, %v2278
    %v2467 = vpack.c.b16 %v2283, %v2279
    %v2468 = vpack.c.b16 %v2284, %v2280
    %v2469 = vpack.c.b16 %v2289, %v2285
    %v2470 = vpack.c.b16 %v2290, %v2286
    %v2471 = vpack.c.b16 %v2291, %v2287
    %v2472 = vpack.c.b16 %v2292, %v2288
    %v2473 = vpack.c.b16 %v2297, %v2293
    %v2474 = vpack.c.b16 %v2298, %v2294
    %v2475 = vpack.c.b16 %v2299, %v2295
    %v2476 = vpack.c.b16 %v2300, %v2296
    %v2477 = vpack.c.b16 %v2305, %v2301
    %v2478 = vpack.c.b16 %v2306, %v2302
    %v2479 = vpack.c.b16 %v2307, %v2303
    %v2480 = vpack.c.b16 %v2308, %v2304
    %v2481 = vpack.c.b16 %v2313, %v2309
    %v2482 = vpack.c.b16 %v2314, %v2310
    %v2483 = vpack.c.b16 %v2315, %v2311
    %v2484 = vpack.c.b16 %v2316, %v2312
    %v2485 = vpack.c.b16 %v2321, %v2317
    %v2486 = vpack.c.b16 %v2322, %v2318
    %v2487 = vpack.c.b16 %v2323, %v2319
    %v2488 = vpack.c.b16 %v2324, %v2320
    %v2489 = vpack.c.b16 %v2329, %v2325
    %v2490 = vpack.c.b16 %v2330, %v2326
    %v2491 = vpack.c.b16 %v2331, %v2327
    %v2492 = vpack.c.b16 %v2332, %v2328
    %v2493 = vpack.c.b16 %v2337, %v2333
    %v2494 = vpack.c.b16 %v2338, %v2334
    %v2495 = vpack.c.b16 %v2339, %v2335
    %v2496 = vpack.c.b16 %v2340, %v2336
    %v2497 = vpack.c.b16 %v2345, %v2341
    %v2498 = vpack.c.b16 %v2346, %v2342
    %v2499 = vpack.c.b16 %v2347, %v2343
    %v2500 = vpack.c.b16 %v2348, %v2344
    %v2501 = vpack.c.b16 %v2353, %v2349
    %v2502 = vpack.c.b16 %v2354, %v2350
    %v2503 = vpack.c.b16 %v2355, %v2351
    %v2504 = vpack.c.b16 %v2356, %v2352
    %v2505 = vpack.c.b16 %v2361, %v2357
    %v2506 = vpack.c.b16 %v2362, %v2358
    %v2507 = vpack.c.b16 %v2363, %v2359
    %v2508 = vpack.c.b16 %v2364, %v2360
    %v2509 = vpack.c.b16 %v2369, %v2365
    %v2510 = vpack.c.b16 %v2370, %v2366
    %v2511 = vpack.c.b16 %v2371, %v2367
    %v2512 = vpack.c.b16 %v2372, %v2368
    %v2513 = vpack.c.b16 %v2377, %v2373
    %v2514 = vpack.c.b16 %v2378, %v2374
    %v2515 = vpack.c.b16 %v2379, %v2375
    %v2516 = vpack.c.b16 %v2380, %v2376
    %v2517 = vpack.c.b16 %v2385, %v2381
    %v2518 = vpack.c.b16 %v2386, %v2382
    %v2519 = vpack.c.b16 %v2387, %v2383
    %v2520 = vpack.c.b16 %v2388, %v2384
    %v2521 = vpack.c.b16 %v2393, %v2389
    %v2522 = vpack.c.b16 %v2394, %v2390
    %v2523 = vpack.c.b16 %v2395, %v2391
    %v2524 = vpack.c.b16 %v2396, %v2392
    %v2525 = vpack.c.b16 %v2401, %v2397
    %v2526 = vpack.c.b16 %v2402, %v2398
    %v2527 = vpack.c.b16 %v2403, %v2399
    %v2528 = vpack.c.b16 %v2404, %v2400
    %v2529 = vpack.c.b16 %v2405, %v2405
    %v2530 = vpack.c.b16 %v2406, %v2406
    %v2531 = vpack.c.b16 %v2407, %v2407
    %v2532 = vpack.c.b16 %v2408, %v2408
    %vm2653 = vcmask 818176
    %v2655 = vsel %vm2653, %v722, 0
    %vm2657 = vcmask 1041408
    %v2659 = vsel %vm2657, %v2529, 0
    %v2662 = vsel %vm2657, %v2530, 0
    %v2665 = vsel %vm2657, %v2531, 0
    %v2668 = vsel %vm2657, %v2532, 0
    %2670 = vmatprep.subr.bf16.mxu0 %v2410
    %2671 = vmatpush1.bf16.msra.mxu0 %v2409
    %2672 = vmatprep.subr.bf16.mxu0 %v2414
    %2673 = vmatpush1.bf16.msra.mxu0 %v2413
    %2674 = vmatprep.subr.bf16.mxu0 %v2418
    %2675 = vmatpush1.bf16.msra.mxu0 %v2417
    %2676 = vmatprep.subr.bf16.mxu0 %v2422
    %2677 = vmatpush1.bf16.msra.mxu0 %v2421
    %2678 = vmatprep.subr.bf16.mxu0 %v2426
    %2679 = vmatpush1.bf16.msra.mxu0 %v2425
    %2680 = vmatprep.subr.bf16.mxu0 %v2430
    %2681 = vmatpush1.bf16.msra.mxu0 %v2429
    %2682 = vmatprep.subr.bf16.mxu0 %v2434
    %2683 = vmatpush1.bf16.msra.mxu0 %v2433
    %2684 = vmatprep.subr.bf16.mxu0 %v2438
    %2685 = vmatpush1.bf16.msra.mxu0 %v2437
    %2686 = vmatprep.subr.bf16.mxu0 %v2442
    %2687 = vmatpush1.bf16.msra.mxu0 %v2441
    %2688 = vmatprep.subr.bf16.mxu0 %v2446
    %2689 = vmatpush1.bf16.msra.mxu0 %v2445
    %2690 = vmatprep.subr.bf16.mxu0 %v2450
    %2691 = vmatpush1.bf16.msra.mxu0 %v2449
    %2692 = vmatprep.subr.bf16.mxu0 %v2454
    %2693 = vmatpush1.bf16.msra.mxu0 %v2453
    %2694 = vmatprep.subr.bf16.mxu0 %v2458
    %2695 = vmatpush1.bf16.msra.mxu0 %v2457
    %2696 = vmatprep.subr.bf16.mxu0 %v2462
    %2697 = vmatpush1.bf16.msra.mxu0 %v2461
    %2698 = vmatprep.subr.bf16.mxu0 %v2466
    %2699 = vmatpush1.bf16.msra.mxu0 %v2465
    %2700 = vmatprep.subr.bf16.mxu0 %v2470
    %2701 = vmatpush1.bf16.msra.mxu0 %v2469
    %2702 = vmatprep.mubr.bf16.mxu0 %v720
    %2703 = vmatmul.mubr.bf16.gmra.mrb[0].mxu0 %v719
    %v2704 = vpop.f32.mrb[0].mxu0
    %v2705 = vadd.f32 %v1996, %v2704
    %v2706 = vpop.f32.mrb[0].mxu0
    %v2707 = vadd.f32 %v1998, %v2706
    %v2708 = vpop.f32.mrb[0].mxu0
    %v2709 = vpop.f32.mrb[0].mxu0
    %2710 = vdwg.mxu0
    %2711 = vmatprep.subr.bf16.mxu0 %v2474
    %2712 = vmatpush1.bf16.msra.mxu0 %v2473
    %2713 = vmatprep.subr.bf16.mxu0 %v2478
    %2714 = vmatpush1.bf16.msra.mxu0 %v2477
    %2715 = vmatprep.subr.bf16.mxu0 %v2482
    %2716 = vmatpush1.bf16.msra.mxu0 %v2481
    %2717 = vmatprep.subr.bf16.mxu0 %v2486
    %2718 = vmatpush1.bf16.msra.mxu0 %v2485
    %2719 = vmatprep.subr.bf16.mxu0 %v2490
    %2720 = vmatpush1.bf16.msra.mxu0 %v2489
    %2721 = vmatprep.subr.bf16.mxu0 %v2494
    %2722 = vmatpush1.bf16.msra.mxu0 %v2493
    %2723 = vmatprep.subr.bf16.mxu0 %v2498
    %2724 = vmatpush1.bf16.msra.mxu0 %v2497
    %2725 = vmatprep.subr.bf16.mxu0 %v2502
    %2726 = vmatpush1.bf16.msra.mxu0 %v2501
    %2727 = vmatprep.subr.bf16.mxu0 %v2506
    %2728 = vmatpush1.bf16.msra.mxu0 %v2505
    %2729 = vmatprep.subr.bf16.mxu0 %v2510
    %2730 = vmatpush1.bf16.msra.mxu0 %v2509
    %2731 = vmatprep.subr.bf16.mxu0 %v2514
    %2732 = vmatpush1.bf16.msra.mxu0 %v2513
    %2733 = vmatprep.subr.bf16.mxu0 %v2518
    %2734 = vmatpush1.bf16.msra.mxu0 %v2517
    %2735 = vmatprep.subr.bf16.mxu0 %v2522
    %2736 = vmatpush1.bf16.msra.mxu0 %v2521
    %2737 = vmatprep.subr.bf16.mxu0 %v2526
    %2738 = vmatpush1.bf16.msra.mxu0 %v2525
    %2739 = vmatprep.subr.bf16.mxu0 %v2662
    %2740 = vmatpush1.bf16.msra.mxu0 %v2659
    %2741 = vmatprep.subr.bf16.mxu0 0
    %2742 = vmatpush1.bf16.msra.mxu0 0
    %2743 = vmatprep.mubr.bf16.mxu0 %v2655
    %2744 = vmatmul.mubr.bf16.gmra.mrb[0].mxu0 %v721
    %v2745 = vpop.f32.mrb[0].mxu0
    %v2746 = vadd.f32 %v2705, %v2745
    %v2747 = vpop.f32.mrb[0].mxu0
    %v2748 = vadd.f32 %v2707, %v2747
    %v2749 = vpop.f32.mrb[0].mxu0
    %v2750 = vpop.f32.mrb[0].mxu0
    %2751 = vdwg.mxu0
    %2752 = vmatprep.subr.bf16.mxu0 %v2412
    %2753 = vmatpush1.bf16.msra.mxu0 %v2411
    %2754 = vmatprep.subr.bf16.mxu0 %v2416
    %2755 = vmatpush1.bf16.msra.mxu0 %v2415
    %2756 = vmatprep.subr.bf16.mxu0 %v2420
    %2757 = vmatpush1.bf16.msra.mxu0 %v2419
    %2758 = vmatprep.subr.bf16.mxu0 %v2424
    %2759 = vmatpush1.bf16.msra.mxu0 %v2423
    %2760 = vmatprep.subr.bf16.mxu0 %v2428
    %2761 = vmatpush1.bf16.msra.mxu0 %v2427
    %2762 = vmatprep.subr.bf16.mxu0 %v2432
    %2763 = vmatpush1.bf16.msra.mxu0 %v2431
    %2764 = vmatprep.subr.bf16.mxu0 %v2436
    %2765 = vmatpush1.bf16.msra.mxu0 %v2435
    %2766 = vmatprep.subr.bf16.mxu0 %v2440
    %2767 = vmatpush1.bf16.msra.mxu0 %v2439
    %2768 = vmatprep.subr.bf16.mxu0 %v2444
    %2769 = vmatpush1.bf16.msra.mxu0 %v2443
    %2770 = vmatprep.subr.bf16.mxu0 %v2448
    %2771 = vmatpush1.bf16.msra.mxu0 %v2447
    %2772 = vmatprep.subr.bf16.mxu0 %v2452
    %2773 = vmatpush1.bf16.msra.mxu0 %v2451
    %2774 = vmatprep.subr.bf16.mxu0 %v2456
    %2775 = vmatpush1.bf16.msra.mxu0 %v2455
    %2776 = vmatprep.subr.bf16.mxu0 %v2460
    %2777 = vmatpush1.bf16.msra.mxu0 %v2459
    %2778 = vmatprep.subr.bf16.mxu0 %v2464
    %2779 = vmatpush1.bf16.msra.mxu0 %v2463
    %2780 = vmatprep.subr.bf16.mxu0 %v2468
    %2781 = vmatpush1.bf16.msra.mxu0 %v2467
    %2782 = vmatprep.subr.bf16.mxu0 %v2472
    %2783 = vmatpush1.bf16.msra.mxu0 %v2471
    %2784 = vmatprep.mubr.bf16.mxu0 %v720
    %2785 = vmatmul.mubr.bf16.gmra.mrb[0].mxu0 %v719
    %v2786 = vpop.f32.mrb[0].mxu0
    %v2787 = vadd.f32 %v2037, %v2786
    %v2788 = vpop.f32.mrb[0].mxu0
    %v2789 = vadd.f32 %v2039, %v2788
    %v2790 = vpop.f32.mrb[0].mxu0
    %v2791 = vpop.f32.mrb[0].mxu0
    %2792 = vdwg.mxu0
    %2793 = vmatprep.subr.bf16.mxu0 %v2476
    %2794 = vmatpush1.bf16.msra.mxu0 %v2475
    %2795 = vmatprep.subr.bf16.mxu0 %v2480
    %2796 = vmatpush1.bf16.msra.mxu0 %v2479
    %2797 = vmatprep.subr.bf16.mxu0 %v2484
    %2798 = vmatpush1.bf16.msra.mxu0 %v2483
    %2799 = vmatprep.subr.bf16.mxu0 %v2488
    %2800 = vmatpush1.bf16.msra.mxu0 %v2487
    %2801 = vmatprep.subr.bf16.mxu0 %v2492
    %2802 = vmatpush1.bf16.msra.mxu0 %v2491
    %2803 = vmatprep.subr.bf16.mxu0 %v2496
    %2804 = vmatpush1.bf16.msra.mxu0 %v2495
    %2805 = vmatprep.subr.bf16.mxu0 %v2500
    %2806 = vmatpush1.bf16.msra.mxu0 %v2499
    %2807 = vmatprep.subr.bf16.mxu0 %v2504
    %2808 = vmatpush1.bf16.msra.mxu0 %v2503
    %2809 = vmatprep.subr.bf16.mxu0 %v2508
    %2810 = vmatpush1.bf16.msra.mxu0 %v2507
    %2811 = vmatprep.subr.bf16.mxu0 %v2512
    %2812 = vmatpush1.bf16.msra.mxu0 %v2511
    %2813 = vmatprep.subr.bf16.mxu0 %v2516
    %2814 = vmatpush1.bf16.msra.mxu0 %v2515
    %2815 = vmatprep.subr.bf16.mxu0 %v2520
    %2816 = vmatpush1.bf16.msra.mxu0 %v2519
    %2817 = vmatprep.subr.bf16.mxu0 %v2524
    %2818 = vmatpush1.bf16.msra.mxu0 %v2523
    %2819 = vmatprep.subr.bf16.mxu0 %v2528
    %2820 = vmatpush1.bf16.msra.mxu0 %v2527
    %2821 = vmatprep.subr.bf16.mxu0 %v2668
    %2822 = vmatpush1.bf16.msra.mxu0 %v2665
    %2823 = vmatprep.subr.bf16.mxu0 0
    %2824 = vmatpush1.bf16.msra.mxu0 0
    %2825 = vmatprep.mubr.bf16.mxu0 %v2655
    %2826 = vmatmul.mubr.bf16.gmra.mrb[0].mxu0 %v721
    %v2827 = vpop.f32.mrb[0].mxu0
    %v2828 = vadd.f32 %v2787, %v2827
    %v2829 = vpop.f32.mrb[0].mxu0
    %v2830 = vadd.f32 %v2789, %v2829
    %v2831 = vpop.f32.mrb[0].mxu0
    %v2832 = vpop.f32.mrb[0].mxu0
    %2833 = vdwg.mxu0
    %v2834 = vlaneseq
    %v2835 = vshrl.u32 %v2834, 7
    %v2836 = vsub.s32 1, %v2835
    %v2837 = vrot.slane %v243, %v2836
    %v2838 = vlaneseq
    %v2839 = vshrl.u32 %v2838, 7
    %v2840 = vsub.s32 1, %v2839
    %v2841 = vrot.slane %v244, %v2840
    %v2842 = vlaneseq
    %v2843 = vshrl.u32 %v2842, 7
    %v2844 = vsub.s32 1, %v2843
    %v2845 = vrot.slane %v245, %v2844
    %v2846 = vlaneseq
    %v2847 = vshrl.u32 %v2846, 7
    %v2848 = vsub.s32 1, %v2847
    %v2849 = vrot.slane %v246, %v2848
    %v2850 = vadd.f32 %v2746, %v2837
    %v2851 = vadd.f32 %v2748, %v2841
    %v2852 = vadd.f32 %v2828, %v2845
    %v2853 = vadd.f32 %v2830, %v2849
    %v2854 = vmax.f32 %v2850, 0.0
    %v2855 = vmax.f32 %v2851, 0.0
    %v2856 = vmax.f32 %v2852, 0.0
    %v2857 = vmax.f32 %v2853, 0.0
    %s2858 = smul.u32 4, 64
    %s2859 = smul.u32 %s2858, 4
    %s2860 = sshll.u32 %s2859, 4
    %2861 = dma.done %s103, %s2860
    %v2862 = vpack.c.bf16 %v2854, %v2854
    %v2863 = vpack.c.bf16 %v2855, %v2855
    %v2864 = vpack.c.bf16 %v2856, %v2856
    %v2865 = vpack.c.bf16 %v2857, %v2857
    %v2866 = vld [vmem:[#allocation4] sm:$0xff]
    %v2867 = vld [vmem:[#allocation4 + $0x8] sm:$0xff]
    %v2868 = vld [vmem:[#allocation4 + $0x10] sm:$0xff]
    %v2869 = vld [vmem:[#allocation4 + $0x18] sm:$0xff]
    %v2870 = vld [vmem:[#allocation4 + $0x20] sm:$0xff]
    %v2871 = vld [vmem:[#allocation4 + $0x28] sm:$0xff]
    %v2872 = vld [vmem:[#allocation4 + $0x30] sm:$0xff]
    %v2873 = vld [vmem:[#allocation4 + $0x38] sm:$0xff]
    %v2874 = vld [vmem:[#allocation4 + $0x40] sm:$0xff]
    %v2875 = vld [vmem:[#allocation4 + $0x48] sm:$0xff]
    %v2876 = vld [vmem:[#allocation4 + $0x50] sm:$0xff]
    %v2877 = vld [vmem:[#allocation4 + $0x58] sm:$0xff]
    %v2878 = vld [vmem:[#allocation4 + $0x60] sm:$0xff]
    %v2879 = vld [vmem:[#allocation4 + $0x68] sm:$0xff]
    %v2880 = vld [vmem:[#allocation4 + $0x70] sm:$0xff]
    %v2881 = vld [vmem:[#allocation4 + $0x78] sm:$0xff]
    %v2882 = vld [vmem:[#allocation4 + $0x80] sm:$0xff]
    %v2883 = vld [vmem:[#allocation4 + $0x88] sm:$0xff]
    %v2884 = vld [vmem:[#allocation4 + $0x90] sm:$0xff]
    %v2885 = vld [vmem:[#allocation4 + $0x98] sm:$0xff]
    %v2886 = vld [vmem:[#allocation4 + $0xa0] sm:$0xff]
    %v2887 = vld [vmem:[#allocation4 + $0xa8] sm:$0xff]
    %v2888 = vld [vmem:[#allocation4 + $0xb0] sm:$0xff]
    %v2889 = vld [vmem:[#allocation4 + $0xb8] sm:$0xff]
    %v2890 = vld [vmem:[#allocation4 + $0xc0] sm:$0xff]
    %v2891 = vld [vmem:[#allocation4 + $0xc8] sm:$0xff]
    %v2892 = vld [vmem:[#allocation4 + $0xd0] sm:$0xff]
    %v2893 = vld [vmem:[#allocation4 + $0xd8] sm:$0xff]
    %v2894 = vld [vmem:[#allocation4 + $0xe0] sm:$0xff]
    %v2895 = vld [vmem:[#allocation4 + $0xe8] sm:$0xff]
    %v2896 = vld [vmem:[#allocation4 + $0xf0] sm:$0xff]
    %v2897 = vld [vmem:[#allocation4 + $0xf8] sm:$0xff]
    %v2898 = vld [vmem:[#allocation4 + $0x100] sm:$0xff]
    %v2899 = vld [vmem:[#allocation4 + $0x108] sm:$0xff]
    %v2900 = vld [vmem:[#allocation4 + $0x110] sm:$0xff]
    %v2901 = vld [vmem:[#allocation4 + $0x118] sm:$0xff]
    %v2902 = vld [vmem:[#allocation4 + $0x120] sm:$0xff]
    %v2903 = vld [vmem:[#allocation4 + $0x128] sm:$0xff]
    %v2904 = vld [vmem:[#allocation4 + $0x130] sm:$0xff]
    %v2905 = vld [vmem:[#allocation4 + $0x138] sm:$0xff]
    %v2906 = vld [vmem:[#allocation4 + $0x140] sm:$0xff]
    %v2907 = vld [vmem:[#allocation4 + $0x148] sm:$0xff]
    %v2908 = vld [vmem:[#allocation4 + $0x150] sm:$0xff]
    %v2909 = vld [vmem:[#allocation4 + $0x158] sm:$0xff]
    %v2910 = vld [vmem:[#allocation4 + $0x160] sm:$0xff]
    %v2911 = vld [vmem:[#allocation4 + $0x168] sm:$0xff]
    %v2912 = vld [vmem:[#allocation4 + $0x170] sm:$0xff]
    %v2913 = vld [vmem:[#allocation4 + $0x178] sm:$0xff]
    %v2914 = vld [vmem:[#allocation4 + $0x180] sm:$0xff]
    %v2915 = vld [vmem:[#allocation4 + $0x188] sm:$0xff]
    %v2916 = vld [vmem:[#allocation4 + $0x190] sm:$0xff]
    %v2917 = vld [vmem:[#allocation4 + $0x198] sm:$0xff]
    %v2918 = vld [vmem:[#allocation4 + $0x1a0] sm:$0xff]
    %v2919 = vld [vmem:[#allocation4 + $0x1a8] sm:$0xff]
    %v2920 = vld [vmem:[#allocation4 + $0x1b0] sm:$0xff]
    %v2921 = vld [vmem:[#allocation4 + $0x1b8] sm:$0xff]
    %v2922 = vld [vmem:[#allocation4 + $0x1c0] sm:$0xff]
    %v2923 = vld [vmem:[#allocation4 + $0x1c8] sm:$0xff]
    %v2924 = vld [vmem:[#allocation4 + $0x1d0] sm:$0xff]
    %v2925 = vld [vmem:[#allocation4 + $0x1d8] sm:$0xff]
    %v2926 = vld [vmem:[#allocation4 + $0x1e0] sm:$0xff]
    %v2927 = vld [vmem:[#allocation4 + $0x1e8] sm:$0xff]
    %v2928 = vld [vmem:[#allocation4 + $0x1f0] sm:$0xff]
    %v2929 = vld [vmem:[#allocation4 + $0x1f8] sm:$0xff]
    %v2930 = vld [vmem:[#allocation4 + $0x200] sm:$0xff]
    %v2931 = vld [vmem:[#allocation4 + $0x208] sm:$0xff]
    %v2932 = vld [vmem:[#allocation4 + $0x210] sm:$0xff]
    %v2933 = vld [vmem:[#allocation4 + $0x218] sm:$0xff]
    %v2934 = vld [vmem:[#allocation4 + $0x220] sm:$0xff]
    %v2935 = vld [vmem:[#allocation4 + $0x228] sm:$0xff]
    %v2936 = vld [vmem:[#allocation4 + $0x230] sm:$0xff]
    %v2937 = vld [vmem:[#allocation4 + $0x238] sm:$0xff]
    %v2938 = vld [vmem:[#allocation4 + $0x240] sm:$0xff]
    %v2939 = vld [vmem:[#allocation4 + $0x248] sm:$0xff]
    %v2940 = vld [vmem:[#allocation4 + $0x250] sm:$0xff]
    %v2941 = vld [vmem:[#allocation4 + $0x258] sm:$0xff]
    %v2942 = vld [vmem:[#allocation4 + $0x260] sm:$0xff]
    %v2943 = vld [vmem:[#allocation4 + $0x268] sm:$0xff]
    %v2944 = vld [vmem:[#allocation4 + $0x270] sm:$0xff]
    %v2945 = vld [vmem:[#allocation4 + $0x278] sm:$0xff]
    %v2946 = vld [vmem:[#allocation4 + $0x280] sm:$0xff]
    %v2947 = vld [vmem:[#allocation4 + $0x288] sm:$0xff]
    %v2948 = vld [vmem:[#allocation4 + $0x290] sm:$0xff]
    %v2949 = vld [vmem:[#allocation4 + $0x298] sm:$0xff]
    %v2950 = vld [vmem:[#allocation4 + $0x2a0] sm:$0xff]
    %v2951 = vld [vmem:[#allocation4 + $0x2a8] sm:$0xff]
    %v2952 = vld [vmem:[#allocation4 + $0x2b0] sm:$0xff]
    %v2953 = vld [vmem:[#allocation4 + $0x2b8] sm:$0xff]
    %v2954 = vld [vmem:[#allocation4 + $0x2c0] sm:$0xff]
    %v2955 = vld [vmem:[#allocation4 + $0x2c8] sm:$0xff]
    %v2956 = vld [vmem:[#allocation4 + $0x2d0] sm:$0xff]
    %v2957 = vld [vmem:[#allocation4 + $0x2d8] sm:$0xff]
    %v2958 = vld [vmem:[#allocation4 + $0x2e0] sm:$0xff]
    %v2959 = vld [vmem:[#allocation4 + $0x2e8] sm:$0xff]
    %v2960 = vld [vmem:[#allocation4 + $0x2f0] sm:$0xff]
    %v2961 = vld [vmem:[#allocation4 + $0x2f8] sm:$0xff]
    %v2962 = vld [vmem:[#allocation4 + $0x300] sm:$0xff]
    %v2963 = vld [vmem:[#allocation4 + $0x308] sm:$0xff]
    %v2964 = vld [vmem:[#allocation4 + $0x310] sm:$0xff]
    %v2965 = vld [vmem:[#allocation4 + $0x318] sm:$0xff]
    %v2966 = vld [vmem:[#allocation4 + $0x320] sm:$0xff]
    %v2967 = vld [vmem:[#allocation4 + $0x328] sm:$0xff]
    %v2968 = vld [vmem:[#allocation4 + $0x330] sm:$0xff]
    %v2969 = vld [vmem:[#allocation4 + $0x338] sm:$0xff]
    %v2970 = vld [vmem:[#allocation4 + $0x340] sm:$0xff]
    %v2971 = vld [vmem:[#allocation4 + $0x348] sm:$0xff]
    %v2972 = vld [vmem:[#allocation4 + $0x350] sm:$0xff]
    %v2973 = vld [vmem:[#allocation4 + $0x358] sm:$0xff]
    %v2974 = vld [vmem:[#allocation4 + $0x360] sm:$0xff]
    %v2975 = vld [vmem:[#allocation4 + $0x368] sm:$0xff]
    %v2976 = vld [vmem:[#allocation4 + $0x370] sm:$0xff]
    %v2977 = vld [vmem:[#allocation4 + $0x378] sm:$0xff]
    %v2978 = vld [vmem:[#allocation4 + $0x380] sm:$0xff]
    %v2979 = vld [vmem:[#allocation4 + $0x388] sm:$0xff]
    %v2980 = vld [vmem:[#allocation4 + $0x390] sm:$0xff]
    %v2981 = vld [vmem:[#allocation4 + $0x398] sm:$0xff]
    %v2982 = vld [vmem:[#allocation4 + $0x3a0] sm:$0xff]
    %v2983 = vld [vmem:[#allocation4 + $0x3a8] sm:$0xff]
    %v2984 = vld [vmem:[#allocation4 + $0x3b0] sm:$0xff]
    %v2985 = vld [vmem:[#allocation4 + $0x3b8] sm:$0xff]
    %v2986 = vld [vmem:[#allocation4 + $0x3c0] sm:$0xff]
    %v2987 = vld [vmem:[#allocation4 + $0x3c8] sm:$0xff]
    %v2988 = vld [vmem:[#allocation4 + $0x3d0] sm:$0xff]
    %v2989 = vld [vmem:[#allocation4 + $0x3d8] sm:$0xff]
    %v2990 = vld [vmem:[#allocation4 + $0x3e0] sm:$0xff]
    %v2991 = vld [vmem:[#allocation4 + $0x3e8] sm:$0xff]
    %v2992 = vld [vmem:[#allocation4 + $0x3f0] sm:$0xff]
    %v2993 = vld [vmem:[#allocation4 + $0x3f8] sm:$0xff]
    %v2994 = vlaneseq
    %v2995 = vshrl.u32 %v2994, 7
    %v2996 = vsub.s32 2, %v2995
    %v2997 = vrot.slane %v243, %v2996
    %v2998 = vlaneseq
    %v2999 = vshrl.u32 %v2998, 7
    %v3000 = vsub.s32 2, %v2999
    %v3001 = vrot.slane %v244, %v3000
    %v3002 = vlaneseq
    %v3003 = vshrl.u32 %v3002, 7
    %v3004 = vsub.s32 2, %v3003
    %v3005 = vrot.slane %v245, %v3004
    %v3006 = vlaneseq
    %v3007 = vshrl.u32 %v3006, 7
    %v3008 = vsub.s32 2, %v3007
    %v3009 = vrot.slane %v246, %v3008
    %3010 = vmatprep.subr.bf16.mxu0 %v2867
    %3011 = vmatpush1.bf16.msra.mxu0 %v2866
    %3012 = vmatprep.subr.bf16.mxu0 %v2871
    %3013 = vmatpush1.bf16.msra.mxu0 %v2870
    %3014 = vmatprep.subr.bf16.mxu0 %v2875
    %3015 = vmatpush1.bf16.msra.mxu0 %v2874
    %3016 = vmatprep.subr.bf16.mxu0 %v2879
    %3017 = vmatpush1.bf16.msra.mxu0 %v2878
    %3018 = vmatprep.subr.bf16.mxu0 %v2883
    %3019 = vmatpush1.bf16.msra.mxu0 %v2882
    %3020 = vmatprep.subr.bf16.mxu0 %v2887
    %3021 = vmatpush1.bf16.msra.mxu0 %v2886
    %3022 = vmatprep.subr.bf16.mxu0 %v2891
    %3023 = vmatpush1.bf16.msra.mxu0 %v2890
    %3024 = vmatprep.subr.bf16.mxu0 %v2895
    %3025 = vmatpush1.bf16.msra.mxu0 %v2894
    %3026 = vmatprep.subr.bf16.mxu0 %v2899
    %3027 = vmatpush1.bf16.msra.mxu0 %v2898
    %3028 = vmatprep.subr.bf16.mxu0 %v2903
    %3029 = vmatpush1.bf16.msra.mxu0 %v2902
    %3030 = vmatprep.subr.bf16.mxu0 %v2907
    %3031 = vmatpush1.bf16.msra.mxu0 %v2906
    %3032 = vmatprep.subr.bf16.mxu0 %v2911
    %3033 = vmatpush1.bf16.msra.mxu0 %v2910
    %3034 = vmatprep.subr.bf16.mxu0 %v2915
    %3035 = vmatpush1.bf16.msra.mxu0 %v2914
    %3036 = vmatprep.subr.bf16.mxu0 %v2919
    %3037 = vmatpush1.bf16.msra.mxu0 %v2918
    %3038 = vmatprep.subr.bf16.mxu0 %v2923
    %3039 = vmatpush1.bf16.msra.mxu0 %v2922
    %3040 = vmatprep.subr.bf16.mxu0 %v2927
    %3041 = vmatpush1.bf16.msra.mxu0 %v2926
    %3042 = vmatprep.mubr.bf16.mxu0 %v2863
    %3043 = vmatmul.mubr.bf16.gmra.mrb[0].mxu0 %v2862
    %v3044 = vpop.f32.mrb[0].mxu0
    %v3045 = vadd.f32 %v2997, %v3044
    %v3046 = vpop.f32.mrb[0].mxu0
    %v3047 = vadd.f32 %v3001, %v3046
    %v3048 = vpop.f32.mrb[0].mxu0
    %v3049 = vpop.f32.mrb[0].mxu0
    %3050 = vdwg.mxu0
    %3051 = vmatprep.subr.bf16.mxu0 %v2931
    %3052 = vmatpush1.bf16.msra.mxu0 %v2930
    %3053 = vmatprep.subr.bf16.mxu0 %v2935
    %3054 = vmatpush1.bf16.msra.mxu0 %v2934
    %3055 = vmatprep.subr.bf16.mxu0 %v2939
    %3056 = vmatpush1.bf16.msra.mxu0 %v2938
    %3057 = vmatprep.subr.bf16.mxu0 %v2943
    %3058 = vmatpush1.bf16.msra.mxu0 %v2942
    %3059 = vmatprep.subr.bf16.mxu0 %v2947
    %3060 = vmatpush1.bf16.msra.mxu0 %v2946
    %3061 = vmatprep.subr.bf16.mxu0 %v2951
    %3062 = vmatpush1.bf16.msra.mxu0 %v2950
    %3063 = vmatprep.subr.bf16.mxu0 %v2955
    %3064 = vmatpush1.bf16.msra.mxu0 %v2954
    %3065 = vmatprep.subr.bf16.mxu0 %v2959
    %3066 = vmatpush1.bf16.msra.mxu0 %v2958
    %3067 = vmatprep.subr.bf16.mxu0 %v2963
    %3068 = vmatpush1.bf16.msra.mxu0 %v2962
    %3069 = vmatprep.subr.bf16.mxu0 %v2967
    %3070 = vmatpush1.bf16.msra.mxu0 %v2966
    %3071 = vmatprep.subr.bf16.mxu0 %v2971
    %3072 = vmatpush1.bf16.msra.mxu0 %v2970
    %3073 = vmatprep.subr.bf16.mxu0 %v2975
    %3074 = vmatpush1.bf16.msra.mxu0 %v2974
    %3075 = vmatprep.subr.bf16.mxu0 %v2979
    %3076 = vmatpush1.bf16.msra.mxu0 %v2978
    %3077 = vmatprep.subr.bf16.mxu0 %v2983
    %3078 = vmatpush1.bf16.msra.mxu0 %v2982
    %3079 = vmatprep.subr.bf16.mxu0 %v2987
    %3080 = vmatpush1.bf16.msra.mxu0 %v2986
    %3081 = vmatprep.subr.bf16.mxu0 %v2991
    %3082 = vmatpush1.bf16.msra.mxu0 %v2990
    %3083 = vmatprep.mubr.bf16.mxu0 %v2865
    %3084 = vmatmul.mubr.bf16.gmra.mrb[0].mxu0 %v2864
    %v3085 = vpop.f32.mrb[0].mxu0
    %v3086 = vadd.f32 %v3045, %v3085
    %v3087 = vpop.f32.mrb[0].mxu0
    %v3088 = vadd.f32 %v3047, %v3087
    %v3089 = vpop.f32.mrb[0].mxu0
    %v3090 = vpop.f32.mrb[0].mxu0
    %3091 = vdwg.mxu0
    %3092 = vmatprep.subr.bf16.mxu0 %v2869
    %3093 = vmatpush1.bf16.msra.mxu0 %v2868
    %3094 = vmatprep.subr.bf16.mxu0 %v2873
    %3095 = vmatpush1.bf16.msra.mxu0 %v2872
    %3096 = vmatprep.subr.bf16.mxu0 %v2877
    %3097 = vmatpush1.bf16.msra.mxu0 %v2876
    %3098 = vmatprep.subr.bf16.mxu0 %v2881
    %3099 = vmatpush1.bf16.msra.mxu0 %v2880
    %3100 = vmatprep.subr.bf16.mxu0 %v2885
    %3101 = vmatpush1.bf16.msra.mxu0 %v2884
    %3102 = vmatprep.subr.bf16.mxu0 %v2889
    %3103 = vmatpush1.bf16.msra.mxu0 %v2888
    %3104 = vmatprep.subr.bf16.mxu0 %v2893
    %3105 = vmatpush1.bf16.msra.mxu0 %v2892
    %3106 = vmatprep.subr.bf16.mxu0 %v2897
    %3107 = vmatpush1.bf16.msra.mxu0 %v2896
    %3108 = vmatprep.subr.bf16.mxu0 %v2901
    %3109 = vmatpush1.bf16.msra.mxu0 %v2900
    %3110 = vmatprep.subr.bf16.mxu0 %v2905
    %3111 = vmatpush1.bf16.msra.mxu0 %v2904
    %3112 = vmatprep.subr.bf16.mxu0 %v2909
    %3113 = vmatpush1.bf16.msra.mxu0 %v2908
    %3114 = vmatprep.subr.bf16.mxu0 %v2913
    %3115 = vmatpush1.bf16.msra.mxu0 %v2912
    %3116 = vmatprep.subr.bf16.mxu0 %v2917
    %3117 = vmatpush1.bf16.msra.mxu0 %v2916
    %3118 = vmatprep.subr.bf16.mxu0 %v2921
    %3119 = vmatpush1.bf16.msra.mxu0 %v2920
    %3120 = vmatprep.subr.bf16.mxu0 %v2925
    %3121 = vmatpush1.bf16.msra.mxu0 %v2924
    %3122 = vmatprep.subr.bf16.mxu0 %v2929
    %3123 = vmatpush1.bf16.msra.mxu0 %v2928
    %3124 = vmatprep.mubr.bf16.mxu0 %v2863
    %3125 = vmatmul.mubr.bf16.gmra.mrb[0].mxu0 %v2862
    %v3126 = vpop.f32.mrb[0].mxu0
    %v3127 = vadd.f32 %v3005, %v3126
    %v3128 = vpop.f32.mrb[0].mxu0
    %v3129 = vadd.f32 %v3009, %v3128
    %v3130 = vpop.f32.mrb[0].mxu0
    %v3131 = vpop.f32.mrb[0].mxu0
    %3132 = vdwg.mxu0
    %3133 = vmatprep.subr.bf16.mxu0 %v2933
    %3134 = vmatpush1.bf16.msra.mxu0 %v2932
    %3135 = vmatprep.subr.bf16.mxu0 %v2937
    %3136 = vmatpush1.bf16.msra.mxu0 %v2936
    %3137 = vmatprep.subr.bf16.mxu0 %v2941
    %3138 = vmatpush1.bf16.msra.mxu0 %v2940
    %3139 = vmatprep.subr.bf16.mxu0 %v2945
    %3140 = vmatpush1.bf16.msra.mxu0 %v2944
    %3141 = vmatprep.subr.bf16.mxu0 %v2949
    %3142 = vmatpush1.bf16.msra.mxu0 %v2948
    %3143 = vmatprep.subr.bf16.mxu0 %v2953
    %3144 = vmatpush1.bf16.msra.mxu0 %v2952
    %3145 = vmatprep.subr.bf16.mxu0 %v2957
    %3146 = vmatpush1.bf16.msra.mxu0 %v2956
    %3147 = vmatprep.subr.bf16.mxu0 %v2961
    %3148 = vmatpush1.bf16.msra.mxu0 %v2960
    %3149 = vmatprep.subr.bf16.mxu0 %v2965
    %3150 = vmatpush1.bf16.msra.mxu0 %v2964
    %3151 = vmatprep.subr.bf16.mxu0 %v2969
    %3152 = vmatpush1.bf16.msra.mxu0 %v2968
    %3153 = vmatprep.subr.bf16.mxu0 %v2973
    %3154 = vmatpush1.bf16.msra.mxu0 %v2972
    %3155 = vmatprep.subr.bf16.mxu0 %v2977
    %3156 = vmatpush1.bf16.msra.mxu0 %v2976
    %3157 = vmatprep.subr.bf16.mxu0 %v2981
    %3158 = vmatpush1.bf16.msra.mxu0 %v2980
    %3159 = vmatprep.subr.bf16.mxu0 %v2985
    %3160 = vmatpush1.bf16.msra.mxu0 %v2984
    %3161 = vmatprep.subr.bf16.mxu0 %v2989
    %3162 = vmatpush1.bf16.msra.mxu0 %v2988
    %3163 = vmatprep.subr.bf16.mxu0 %v2993
    %3164 = vmatpush1.bf16.msra.mxu0 %v2992
    %3165 = vmatprep.mubr.bf16.mxu0 %v2865
    %3166 = vmatmul.mubr.bf16.gmra.mrb[0].mxu0 %v2864
    %v3167 = vpop.f32.mrb[0].mxu0
    %v3168 = vadd.f32 %v3127, %v3167
    %v3169 = vpop.f32.mrb[0].mxu0
    %v3170 = vadd.f32 %v3129, %v3169
    %v3171 = vpop.f32.mrb[0].mxu0
    %v3172 = vpop.f32.mrb[0].mxu0
    %3173 = vdwg.mxu0
    %v3174 = vmax.f32 %v3086, 0.0
    %v3175 = vmax.f32 %v3088, 0.0
    %v3176 = vmax.f32 %v3168, 0.0
    %v3177 = vmax.f32 %v3170, 0.0
    %s3178 = sshll.u32 %s2859, 4
    %3179 = dma.done %s138, %s3178
    %v3180 = vpack.c.bf16 %v3174, %v3174
    %v3181 = vpack.c.bf16 %v3175, %v3175
    %v3182 = vpack.c.bf16 %v3176, %v3176
    %v3183 = vpack.c.bf16 %v3177, %v3177
    %v3184 = vld [vmem:[#allocation5] sm:$0xff]
    %v3185 = vld [vmem:[#allocation5 + $0x8] sm:$0xff]
    %v3186 = vld [vmem:[#allocation5 + $0x10] sm:$0xff]
    %v3187 = vld [vmem:[#allocation5 + $0x18] sm:$0xff]
    %v3188 = vld [vmem:[#allocation5 + $0x20] sm:$0xff]
    %v3189 = vld [vmem:[#allocation5 + $0x28] sm:$0xff]
    %v3190 = vld [vmem:[#allocation5 + $0x30] sm:$0xff]
    %v3191 = vld [vmem:[#allocation5 + $0x38] sm:$0xff]
    %v3192 = vld [vmem:[#allocation5 + $0x40] sm:$0xff]
    %v3193 = vld [vmem:[#allocation5 + $0x48] sm:$0xff]
    %v3194 = vld [vmem:[#allocation5 + $0x50] sm:$0xff]
    %v3195 = vld [vmem:[#allocation5 + $0x58] sm:$0xff]
    %v3196 = vld [vmem:[#allocation5 + $0x60] sm:$0xff]
    %v3197 = vld [vmem:[#allocation5 + $0x68] sm:$0xff]
    %v3198 = vld [vmem:[#allocation5 + $0x70] sm:$0xff]
    %v3199 = vld [vmem:[#allocation5 + $0x78] sm:$0xff]
    %v3200 = vld [vmem:[#allocation5 + $0x80] sm:$0xff]
    %v3201 = vld [vmem:[#allocation5 + $0x88] sm:$0xff]
    %v3202 = vld [vmem:[#allocation5 + $0x90] sm:$0xff]
    %v3203 = vld [vmem:[#allocation5 + $0x98] sm:$0xff]
    %v3204 = vld [vmem:[#allocation5 + $0xa0] sm:$0xff]
    %v3205 = vld [vmem:[#allocation5 + $0xa8] sm:$0xff]
    %v3206 = vld [vmem:[#allocation5 + $0xb0] sm:$0xff]
    %v3207 = vld [vmem:[#allocation5 + $0xb8] sm:$0xff]
    %v3208 = vld [vmem:[#allocation5 + $0xc0] sm:$0xff]
    %v3209 = vld [vmem:[#allocation5 + $0xc8] sm:$0xff]
    %v3210 = vld [vmem:[#allocation5 + $0xd0] sm:$0xff]
    %v3211 = vld [vmem:[#allocation5 + $0xd8] sm:$0xff]
    %v3212 = vld [vmem:[#allocation5 + $0xe0] sm:$0xff]
    %v3213 = vld [vmem:[#allocation5 + $0xe8] sm:$0xff]
    %v3214 = vld [vmem:[#allocation5 + $0xf0] sm:$0xff]
    %v3215 = vld [vmem:[#allocation5 + $0xf8] sm:$0xff]
    %v3216 = vld [vmem:[#allocation5 + $0x100] sm:$0xff]
    %v3217 = vld [vmem:[#allocation5 + $0x108] sm:$0xff]
    %v3218 = vld [vmem:[#allocation5 + $0x110] sm:$0xff]
    %v3219 = vld [vmem:[#allocation5 + $0x118] sm:$0xff]
    %v3220 = vld [vmem:[#allocation5 + $0x120] sm:$0xff]
    %v3221 = vld [vmem:[#allocation5 + $0x128] sm:$0xff]
    %v3222 = vld [vmem:[#allocation5 + $0x130] sm:$0xff]
    %v3223 = vld [vmem:[#allocation5 + $0x138] sm:$0xff]
    %v3224 = vld [vmem:[#allocation5 + $0x140] sm:$0xff]
    %v3225 = vld [vmem:[#allocation5 + $0x148] sm:$0xff]
    %v3226 = vld [vmem:[#allocation5 + $0x150] sm:$0xff]
    %v3227 = vld [vmem:[#allocation5 + $0x158] sm:$0xff]
    %v3228 = vld [vmem:[#allocation5 + $0x160] sm:$0xff]
    %v3229 = vld [vmem:[#allocation5 + $0x168] sm:$0xff]
    %v3230 = vld [vmem:[#allocation5 + $0x170] sm:$0xff]
    %v3231 = vld [vmem:[#allocation5 + $0x178] sm:$0xff]
    %v3232 = vld [vmem:[#allocation5 + $0x180] sm:$0xff]
    %v3233 = vld [vmem:[#allocation5 + $0x188] sm:$0xff]
    %v3234 = vld [vmem:[#allocation5 + $0x190] sm:$0xff]
    %v3235 = vld [vmem:[#allocation5 + $0x198] sm:$0xff]
    %v3236 = vld [vmem:[#allocation5 + $0x1a0] sm:$0xff]
    %v3237 = vld [vmem:[#allocation5 + $0x1a8] sm:$0xff]
    %v3238 = vld [vmem:[#allocation5 + $0x1b0] sm:$0xff]
    %v3239 = vld [vmem:[#allocation5 + $0x1b8] sm:$0xff]
    %v3240 = vld [vmem:[#allocation5 + $0x1c0] sm:$0xff]
    %v3241 = vld [vmem:[#allocation5 + $0x1c8] sm:$0xff]
    %v3242 = vld [vmem:[#allocation5 + $0x1d0] sm:$0xff]
    %v3243 = vld [vmem:[#allocation5 + $0x1d8] sm:$0xff]
    %v3244 = vld [vmem:[#allocation5 + $0x1e0] sm:$0xff]
    %v3245 = vld [vmem:[#allocation5 + $0x1e8] sm:$0xff]
    %v3246 = vld [vmem:[#allocation5 + $0x1f0] sm:$0xff]
    %v3247 = vld [vmem:[#allocation5 + $0x1f8] sm:$0xff]
    %v3248 = vld [vmem:[#allocation5 + $0x200] sm:$0xff]
    %v3249 = vld [vmem:[#allocation5 + $0x208] sm:$0xff]
    %v3250 = vld [vmem:[#allocation5 + $0x210] sm:$0xff]
    %v3251 = vld [vmem:[#allocation5 + $0x218] sm:$0xff]
    %v3252 = vld [vmem:[#allocation5 + $0x220] sm:$0xff]
    %v3253 = vld [vmem:[#allocation5 + $0x228] sm:$0xff]
    %v3254 = vld [vmem:[#allocation5 + $0x230] sm:$0xff]
    %v3255 = vld [vmem:[#allocation5 + $0x238] sm:$0xff]
    %v3256 = vld [vmem:[#allocation5 + $0x240] sm:$0xff]
    %v3257 = vld [vmem:[#allocation5 + $0x248] sm:$0xff]
    %v3258 = vld [vmem:[#allocation5 + $0x250] sm:$0xff]
    %v3259 = vld [vmem:[#allocation5 + $0x258] sm:$0xff]
    %v3260 = vld [vmem:[#allocation5 + $0x260] sm:$0xff]
    %v3261 = vld [vmem:[#allocation5 + $0x268] sm:$0xff]
    %v3262 = vld [vmem:[#allocation5 + $0x270] sm:$0xff]
    %v3263 = vld [vmem:[#allocation5 + $0x278] sm:$0xff]
    %v3264 = vld [vmem:[#allocation5 + $0x280] sm:$0xff]
    %v3265 = vld [vmem:[#allocation5 + $0x288] sm:$0xff]
    %v3266 = vld [vmem:[#allocation5 + $0x290] sm:$0xff]
    %v3267 = vld [vmem:[#allocation5 + $0x298] sm:$0xff]
    %v3268 = vld [vmem:[#allocation5 + $0x2a0] sm:$0xff]
    %v3269 = vld [vmem:[#allocation5 + $0x2a8] sm:$0xff]
    %v3270 = vld [vmem:[#allocation5 + $0x2b0] sm:$0xff]
    %v3271 = vld [vmem:[#allocation5 + $0x2b8] sm:$0xff]
    %v3272 = vld [vmem:[#allocation5 + $0x2c0] sm:$0xff]
    %v3273 = vld [vmem:[#allocation5 + $0x2c8] sm:$0xff]
    %v3274 = vld [vmem:[#allocation5 + $0x2d0] sm:$0xff]
    %v3275 = vld [vmem:[#allocation5 + $0x2d8] sm:$0xff]
    %v3276 = vld [vmem:[#allocation5 + $0x2e0] sm:$0xff]
    %v3277 = vld [vmem:[#allocation5 + $0x2e8] sm:$0xff]
    %v3278 = vld [vmem:[#allocation5 + $0x2f0] sm:$0xff]
    %v3279 = vld [vmem:[#allocation5 + $0x2f8] sm:$0xff]
    %v3280 = vld [vmem:[#allocation5 + $0x300] sm:$0xff]
    %v3281 = vld [vmem:[#allocation5 + $0x308] sm:$0xff]
    %v3282 = vld [vmem:[#allocation5 + $0x310] sm:$0xff]
    %v3283 = vld [vmem:[#allocation5 + $0x318] sm:$0xff]
    %v3284 = vld [vmem:[#allocation5 + $0x320] sm:$0xff]
    %v3285 = vld [vmem:[#allocation5 + $0x328] sm:$0xff]
    %v3286 = vld [vmem:[#allocation5 + $0x330] sm:$0xff]
    %v3287 = vld [vmem:[#allocation5 + $0x338] sm:$0xff]
    %v3288 = vld [vmem:[#allocation5 + $0x340] sm:$0xff]
    %v3289 = vld [vmem:[#allocation5 + $0x348] sm:$0xff]
    %v3290 = vld [vmem:[#allocation5 + $0x350] sm:$0xff]
    %v3291 = vld [vmem:[#allocation5 + $0x358] sm:$0xff]
    %v3292 = vld [vmem:[#allocation5 + $0x360] sm:$0xff]
    %v3293 = vld [vmem:[#allocation5 + $0x368] sm:$0xff]
    %v3294 = vld [vmem:[#allocation5 + $0x370] sm:$0xff]
    %v3295 = vld [vmem:[#allocation5 + $0x378] sm:$0xff]
    %v3296 = vld [vmem:[#allocation5 + $0x380] sm:$0xff]
    %v3297 = vld [vmem:[#allocation5 + $0x388] sm:$0xff]
    %v3298 = vld [vmem:[#allocation5 + $0x390] sm:$0xff]
    %v3299 = vld [vmem:[#allocation5 + $0x398] sm:$0xff]
    %v3300 = vld [vmem:[#allocation5 + $0x3a0] sm:$0xff]
    %v3301 = vld [vmem:[#allocation5 + $0x3a8] sm:$0xff]
    %v3302 = vld [vmem:[#allocation5 + $0x3b0] sm:$0xff]
    %v3303 = vld [vmem:[#allocation5 + $0x3b8] sm:$0xff]
    %v3304 = vld [vmem:[#allocation5 + $0x3c0] sm:$0xff]
    %v3305 = vld [vmem:[#allocation5 + $0x3c8] sm:$0xff]
    %v3306 = vld [vmem:[#allocation5 + $0x3d0] sm:$0xff]
    %v3307 = vld [vmem:[#allocation5 + $0x3d8] sm:$0xff]
    %v3308 = vld [vmem:[#allocation5 + $0x3e0] sm:$0xff]
    %v3309 = vld [vmem:[#allocation5 + $0x3e8] sm:$0xff]
    %v3310 = vld [vmem:[#allocation5 + $0x3f0] sm:$0xff]
    %v3311 = vld [vmem:[#allocation5 + $0x3f8] sm:$0xff]
    %v3312 = vlaneseq
    %v3313 = vshrl.u32 %v3312, 7
    %v3314 = vsub.s32 3, %v3313
    %v3315 = vrot.slane %v243, %v3314
    %v3316 = vlaneseq
    %v3317 = vshrl.u32 %v3316, 7
    %v3318 = vsub.s32 3, %v3317
    %v3319 = vrot.slane %v244, %v3318
    %v3320 = vlaneseq
    %v3321 = vshrl.u32 %v3320, 7
    %v3322 = vsub.s32 3, %v3321
    %v3323 = vrot.slane %v245, %v3322
    %v3324 = vlaneseq
    %v3325 = vshrl.u32 %v3324, 7
    %v3326 = vsub.s32 3, %v3325
    %v3327 = vrot.slane %v246, %v3326
    %3328 = vmatprep.subr.bf16.mxu0 %v3185
    %3329 = vmatpush1.bf16.msra.mxu0 %v3184
    %3330 = vmatprep.subr.bf16.mxu0 %v3189
    %3331 = vmatpush1.bf16.msra.mxu0 %v3188
    %3332 = vmatprep.subr.bf16.mxu0 %v3193
    %3333 = vmatpush1.bf16.msra.mxu0 %v3192
    %3334 = vmatprep.subr.bf16.mxu0 %v3197
    %3335 = vmatpush1.bf16.msra.mxu0 %v3196
    %3336 = vmatprep.subr.bf16.mxu0 %v3201
    %3337 = vmatpush1.bf16.msra.mxu0 %v3200
    %3338 = vmatprep.subr.bf16.mxu0 %v3205
    %3339 = vmatpush1.bf16.msra.mxu0 %v3204
    %3340 = vmatprep.subr.bf16.mxu0 %v3209
    %3341 = vmatpush1.bf16.msra.mxu0 %v3208
    %3342 = vmatprep.subr.bf16.mxu0 %v3213
    %3343 = vmatpush1.bf16.msra.mxu0 %v3212
    %3344 = vmatprep.subr.bf16.mxu0 %v3217
    %3345 = vmatpush1.bf16.msra.mxu0 %v3216
    %3346 = vmatprep.subr.bf16.mxu0 %v3221
    %3347 = vmatpush1.bf16.msra.mxu0 %v3220
    %3348 = vmatprep.subr.bf16.mxu0 %v3225
    %3349 = vmatpush1.bf16.msra.mxu0 %v3224
    %3350 = vmatprep.subr.bf16.mxu0 %v3229
    %3351 = vmatpush1.bf16.msra.mxu0 %v3228
    %3352 = vmatprep.subr.bf16.mxu0 %v3233
    %3353 = vmatpush1.bf16.msra.mxu0 %v3232
    %3354 = vmatprep.subr.bf16.mxu0 %v3237
    %3355 = vmatpush1.bf16.msra.mxu0 %v3236
    %3356 = vmatprep.subr.bf16.mxu0 %v3241
    %3357 = vmatpush1.bf16.msra.mxu0 %v3240
    %3358 = vmatprep.subr.bf16.mxu0 %v3245
    %3359 = vmatpush1.bf16.msra.mxu0 %v3244
    %3360 = vmatprep.mubr.bf16.mxu0 %v3181
    %3361 = vmatmul.mubr.bf16.gmra.mrb[0].mxu0 %v3180
    %v3362 = vpop.f32.mrb[0].mxu0
    %v3363 = vadd.f32 %v3315, %v3362
    %v3364 = vpop.f32.mrb[0].mxu0
    %v3365 = vadd.f32 %v3319, %v3364
    %v3366 = vpop.f32.mrb[0].mxu0
    %v3367 = vpop.f32.mrb[0].mxu0
    %3368 = vdwg.mxu0
    %3369 = vmatprep.subr.bf16.mxu0 %v3249
    %3370 = vmatpush1.bf16.msra.mxu0 %v3248
    %3371 = vmatprep.subr.bf16.mxu0 %v3253
    %3372 = vmatpush1.bf16.msra.mxu0 %v3252
    %3373 = vmatprep.subr.bf16.mxu0 %v3257
    %3374 = vmatpush1.bf16.msra.mxu0 %v3256
    %3375 = vmatprep.subr.bf16.mxu0 %v3261
    %3376 = vmatpush1.bf16.msra.mxu0 %v3260
    %3377 = vmatprep.subr.bf16.mxu0 %v3265
    %3378 = vmatpush1.bf16.msra.mxu0 %v3264
    %3379 = vmatprep.subr.bf16.mxu0 %v3269
    %3380 = vmatpush1.bf16.msra.mxu0 %v3268
    %3381 = vmatprep.subr.bf16.mxu0 %v3273
    %3382 = vmatpush1.bf16.msra.mxu0 %v3272
    %3383 = vmatprep.subr.bf16.mxu0 %v3277
    %3384 = vmatpush1.bf16.msra.mxu0 %v3276
    %3385 = vmatprep.subr.bf16.mxu0 %v3281
    %3386 = vmatpush1.bf16.msra.mxu0 %v3280
    %3387 = vmatprep.subr.bf16.mxu0 %v3285
    %3388 = vmatpush1.bf16.msra.mxu0 %v3284
    %3389 = vmatprep.subr.bf16.mxu0 %v3289
    %3390 = vmatpush1.bf16.msra.mxu0 %v3288
    %3391 = vmatprep.subr.bf16.mxu0 %v3293
    %3392 = vmatpush1.bf16.msra.mxu0 %v3292
    %3393 = vmatprep.subr.bf16.mxu0 %v3297
    %3394 = vmatpush1.bf16.msra.mxu0 %v3296
    %3395 = vmatprep.subr.bf16.mxu0 %v3301
    %3396 = vmatpush1.bf16.msra.mxu0 %v3300
    %3397 = vmatprep.subr.bf16.mxu0 %v3305
    %3398 = vmatpush1.bf16.msra.mxu0 %v3304
    %3399 = vmatprep.subr.bf16.mxu0 %v3309
    %3400 = vmatpush1.bf16.msra.mxu0 %v3308
    %3401 = vmatprep.mubr.bf16.mxu0 %v3183
    %3402 = vmatmul.mubr.bf16.gmra.mrb[0].mxu0 %v3182
    %v3403 = vpop.f32.mrb[0].mxu0
    %v3404 = vadd.f32 %v3363, %v3403
    %v3405 = vpop.f32.mrb[0].mxu0
    %v3406 = vadd.f32 %v3365, %v3405
    %v3407 = vpop.f32.mrb[0].mxu0
    %v3408 = vpop.f32.mrb[0].mxu0
    %3409 = vdwg.mxu0
    %3410 = vmatprep.subr.bf16.mxu0 %v3187
    %3411 = vmatpush1.bf16.msra.mxu0 %v3186
    %3412 = vmatprep.subr.bf16.mxu0 %v3191
    %3413 = vmatpush1.bf16.msra.mxu0 %v3190
    %3414 = vmatprep.subr.bf16.mxu0 %v3195
    %3415 = vmatpush1.bf16.msra.mxu0 %v3194
    %3416 = vmatprep.subr.bf16.mxu0 %v3199
    %3417 = vmatpush1.bf16.msra.mxu0 %v3198
    %3418 = vmatprep.subr.bf16.mxu0 %v3203
    %3419 = vmatpush1.bf16.msra.mxu0 %v3202
    %3420 = vmatprep.subr.bf16.mxu0 %v3207
    %3421 = vmatpush1.bf16.msra.mxu0 %v3206
    %3422 = vmatprep.subr.bf16.mxu0 %v3211
    %3423 = vmatpush1.bf16.msra.mxu0 %v3210
    %3424 = vmatprep.subr.bf16.mxu0 %v3215
    %3425 = vmatpush1.bf16.msra.mxu0 %v3214
    %3426 = vmatprep.subr.bf16.mxu0 %v3219
    %3427 = vmatpush1.bf16.msra.mxu0 %v3218
    %3428 = vmatprep.subr.bf16.mxu0 %v3223
    %3429 = vmatpush1.bf16.msra.mxu0 %v3222
    %3430 = vmatprep.subr.bf16.mxu0 %v3227
    %3431 = vmatpush1.bf16.msra.mxu0 %v3226
    %3432 = vmatprep.subr.bf16.mxu0 %v3231
    %3433 = vmatpush1.bf16.msra.mxu0 %v3230
    %3434 = vmatprep.subr.bf16.mxu0 %v3235
    %3435 = vmatpush1.bf16.msra.mxu0 %v3234
    %3436 = vmatprep.subr.bf16.mxu0 %v3239
    %3437 = vmatpush1.bf16.msra.mxu0 %v3238
    %3438 = vmatprep.subr.bf16.mxu0 %v3243
    %3439 = vmatpush1.bf16.msra.mxu0 %v3242
    %3440 = vmatprep.subr.bf16.mxu0 %v3247
    %3441 = vmatpush1.bf16.msra.mxu0 %v3246
    %3442 = vmatprep.mubr.bf16.mxu0 %v3181
    %3443 = vmatmul.mubr.bf16.gmra.mrb[0].mxu0 %v3180
    %v3444 = vpop.f32.mrb[0].mxu0
    %v3445 = vadd.f32 %v3323, %v3444
    %v3446 = vpop.f32.mrb[0].mxu0
    %v3447 = vadd.f32 %v3327, %v3446
    %v3448 = vpop.f32.mrb[0].mxu0
    %v3449 = vpop.f32.mrb[0].mxu0
    %3450 = vdwg.mxu0
    %3451 = vmatprep.subr.bf16.mxu0 %v3251
    %3452 = vmatpush1.bf16.msra.mxu0 %v3250
    %3453 = vmatprep.subr.bf16.mxu0 %v3255
    %3454 = vmatpush1.bf16.msra.mxu0 %v3254
    %3455 = vmatprep.subr.bf16.mxu0 %v3259
    %3456 = vmatpush1.bf16.msra.mxu0 %v3258
    %3457 = vmatprep.subr.bf16.mxu0 %v3263
    %3458 = vmatpush1.bf16.msra.mxu0 %v3262
    %3459 = vmatprep.subr.bf16.mxu0 %v3267
    %3460 = vmatpush1.bf16.msra.mxu0 %v3266
    %3461 = vmatprep.subr.bf16.mxu0 %v3271
    %3462 = vmatpush1.bf16.msra.mxu0 %v3270
    %3463 = vmatprep.subr.bf16.mxu0 %v3275
    %3464 = vmatpush1.bf16.msra.mxu0 %v3274
    %3465 = vmatprep.subr.bf16.mxu0 %v3279
    %3466 = vmatpush1.bf16.msra.mxu0 %v3278
    %3467 = vmatprep.subr.bf16.mxu0 %v3283
    %3468 = vmatpush1.bf16.msra.mxu0 %v3282
    %3469 = vmatprep.subr.bf16.mxu0 %v3287
    %3470 = vmatpush1.bf16.msra.mxu0 %v3286
    %3471 = vmatprep.subr.bf16.mxu0 %v3291
    %3472 = vmatpush1.bf16.msra.mxu0 %v3290
    %3473 = vmatprep.subr.bf16.mxu0 %v3295
    %3474 = vmatpush1.bf16.msra.mxu0 %v3294
    %3475 = vmatprep.subr.bf16.mxu0 %v3299
    %3476 = vmatpush1.bf16.msra.mxu0 %v3298
    %3477 = vmatprep.subr.bf16.mxu0 %v3303
    %3478 = vmatpush1.bf16.msra.mxu0 %v3302
    %3479 = vmatprep.subr.bf16.mxu0 %v3307
    %3480 = vmatpush1.bf16.msra.mxu0 %v3306
    %3481 = vmatprep.subr.bf16.mxu0 %v3311
    %3482 = vmatpush1.bf16.msra.mxu0 %v3310
    %3483 = vmatprep.mubr.bf16.mxu0 %v3183
    %3484 = vmatmul.mubr.bf16.gmra.mrb[0].mxu0 %v3182
    %v3485 = vpop.f32.mrb[0].mxu0
    %v3486 = vadd.f32 %v3445, %v3485
    %v3487 = vpop.f32.mrb[0].mxu0
    %v3488 = vadd.f32 %v3447, %v3487
    %v3489 = vpop.f32.mrb[0].mxu0
    %v3490 = vpop.f32.mrb[0].mxu0
    %3491 = vdwg.mxu0
    %v3492 = vmax.f32 %v3404, 0.0
    %v3493 = vmax.f32 %v3406, 0.0
    %v3494 = vmax.f32 %v3486, 0.0
    %v3495 = vmax.f32 %v3488, 0.0
    %s3496 = sshll.u32 %s2859, 4
    %3497 = dma.done %s173, %s3496
    %v3498 = vpack.c.bf16 %v3492, %v3492
    %v3499 = vpack.c.bf16 %v3493, %v3493
    %v3500 = vpack.c.bf16 %v3494, %v3494
    %v3501 = vpack.c.bf16 %v3495, %v3495
    %v3502 = vld [vmem:[#allocation6] sm:$0xff]
    %v3503 = vld [vmem:[#allocation6 + $0x8] sm:$0xff]
    %v3504 = vld [vmem:[#allocation6 + $0x10] sm:$0xff]
    %v3505 = vld [vmem:[#allocation6 + $0x18] sm:$0xff]
    %v3506 = vld [vmem:[#allocation6 + $0x20] sm:$0xff]
    %v3507 = vld [vmem:[#allocation6 + $0x28] sm:$0xff]
    %v3508 = vld [vmem:[#allocation6 + $0x30] sm:$0xff]
    %v3509 = vld [vmem:[#allocation6 + $0x38] sm:$0xff]
    %v3510 = vld [vmem:[#allocation6 + $0x40] sm:$0xff]
    %v3511 = vld [vmem:[#allocation6 + $0x48] sm:$0xff]
    %v3512 = vld [vmem:[#allocation6 + $0x50] sm:$0xff]
    %v3513 = vld [vmem:[#allocation6 + $0x58] sm:$0xff]
    %v3514 = vld [vmem:[#allocation6 + $0x60] sm:$0xff]
    %v3515 = vld [vmem:[#allocation6 + $0x68] sm:$0xff]
    %v3516 = vld [vmem:[#allocation6 + $0x70] sm:$0xff]
    %v3517 = vld [vmem:[#allocation6 + $0x78] sm:$0xff]
    %v3518 = vld [vmem:[#allocation6 + $0x80] sm:$0xff]
    %v3519 = vld [vmem:[#allocation6 + $0x88] sm:$0xff]
    %v3520 = vld [vmem:[#allocation6 + $0x90] sm:$0xff]
    %v3521 = vld [vmem:[#allocation6 + $0x98] sm:$0xff]
    %v3522 = vld [vmem:[#allocation6 + $0xa0] sm:$0xff]
    %v3523 = vld [vmem:[#allocation6 + $0xa8] sm:$0xff]
    %v3524 = vld [vmem:[#allocation6 + $0xb0] sm:$0xff]
    %v3525 = vld [vmem:[#allocation6 + $0xb8] sm:$0xff]
    %v3526 = vld [vmem:[#allocation6 + $0xc0] sm:$0xff]
    %v3527 = vld [vmem:[#allocation6 + $0xc8] sm:$0xff]
    %v3528 = vld [vmem:[#allocation6 + $0xd0] sm:$0xff]
    %v3529 = vld [vmem:[#allocation6 + $0xd8] sm:$0xff]
    %v3530 = vld [vmem:[#allocation6 + $0xe0] sm:$0xff]
    %v3531 = vld [vmem:[#allocation6 + $0xe8] sm:$0xff]
    %v3532 = vld [vmem:[#allocation6 + $0xf0] sm:$0xff]
    %v3533 = vld [vmem:[#allocation6 + $0xf8] sm:$0xff]
    %v3534 = vld [vmem:[#allocation6 + $0x100] sm:$0xff]
    %v3535 = vld [vmem:[#allocation6 + $0x108] sm:$0xff]
    %v3536 = vld [vmem:[#allocation6 + $0x110] sm:$0xff]
    %v3537 = vld [vmem:[#allocation6 + $0x118] sm:$0xff]
    %v3538 = vld [vmem:[#allocation6 + $0x120] sm:$0xff]
    %v3539 = vld [vmem:[#allocation6 + $0x128] sm:$0xff]
    %v3540 = vld [vmem:[#allocation6 + $0x130] sm:$0xff]
    %v3541 = vld [vmem:[#allocation6 + $0x138] sm:$0xff]
    %v3542 = vld [vmem:[#allocation6 + $0x140] sm:$0xff]
    %v3543 = vld [vmem:[#allocation6 + $0x148] sm:$0xff]
    %v3544 = vld [vmem:[#allocation6 + $0x150] sm:$0xff]
    %v3545 = vld [vmem:[#allocation6 + $0x158] sm:$0xff]
    %v3546 = vld [vmem:[#allocation6 + $0x160] sm:$0xff]
    %v3547 = vld [vmem:[#allocation6 + $0x168] sm:$0xff]
    %v3548 = vld [vmem:[#allocation6 + $0x170] sm:$0xff]
    %v3549 = vld [vmem:[#allocation6 + $0x178] sm:$0xff]
    %v3550 = vld [vmem:[#allocation6 + $0x180] sm:$0xff]
    %v3551 = vld [vmem:[#allocation6 + $0x188] sm:$0xff]
    %v3552 = vld [vmem:[#allocation6 + $0x190] sm:$0xff]
    %v3553 = vld [vmem:[#allocation6 + $0x198] sm:$0xff]
    %v3554 = vld [vmem:[#allocation6 + $0x1a0] sm:$0xff]
    %v3555 = vld [vmem:[#allocation6 + $0x1a8] sm:$0xff]
    %v3556 = vld [vmem:[#allocation6 + $0x1b0] sm:$0xff]
    %v3557 = vld [vmem:[#allocation6 + $0x1b8] sm:$0xff]
    %v3558 = vld [vmem:[#allocation6 + $0x1c0] sm:$0xff]
    %v3559 = vld [vmem:[#allocation6 + $0x1c8] sm:$0xff]
    %v3560 = vld [vmem:[#allocation6 + $0x1d0] sm:$0xff]
    %v3561 = vld [vmem:[#allocation6 + $0x1d8] sm:$0xff]
    %v3562 = vld [vmem:[#allocation6 + $0x1e0] sm:$0xff]
    %v3563 = vld [vmem:[#allocation6 + $0x1e8] sm:$0xff]
    %v3564 = vld [vmem:[#allocation6 + $0x1f0] sm:$0xff]
    %v3565 = vld [vmem:[#allocation6 + $0x1f8] sm:$0xff]
    %v3566 = vld [vmem:[#allocation6 + $0x200] sm:$0xff]
    %v3567 = vld [vmem:[#allocation6 + $0x208] sm:$0xff]
    %v3568 = vld [vmem:[#allocation6 + $0x210] sm:$0xff]
    %v3569 = vld [vmem:[#allocation6 + $0x218] sm:$0xff]
    %v3570 = vld [vmem:[#allocation6 + $0x220] sm:$0xff]
    %v3571 = vld [vmem:[#allocation6 + $0x228] sm:$0xff]
    %v3572 = vld [vmem:[#allocation6 + $0x230] sm:$0xff]
    %v3573 = vld [vmem:[#allocation6 + $0x238] sm:$0xff]
    %v3574 = vld [vmem:[#allocation6 + $0x240] sm:$0xff]
    %v3575 = vld [vmem:[#allocation6 + $0x248] sm:$0xff]
    %v3576 = vld [vmem:[#allocation6 + $0x250] sm:$0xff]
    %v3577 = vld [vmem:[#allocation6 + $0x258] sm:$0xff]
    %v3578 = vld [vmem:[#allocation6 + $0x260] sm:$0xff]
    %v3579 = vld [vmem:[#allocation6 + $0x268] sm:$0xff]
    %v3580 = vld [vmem:[#allocation6 + $0x270] sm:$0xff]
    %v3581 = vld [vmem:[#allocation6 + $0x278] sm:$0xff]
    %v3582 = vld [vmem:[#allocation6 + $0x280] sm:$0xff]
    %v3583 = vld [vmem:[#allocation6 + $0x288] sm:$0xff]
    %v3584 = vld [vmem:[#allocation6 + $0x290] sm:$0xff]
    %v3585 = vld [vmem:[#allocation6 + $0x298] sm:$0xff]
    %v3586 = vld [vmem:[#allocation6 + $0x2a0] sm:$0xff]
    %v3587 = vld [vmem:[#allocation6 + $0x2a8] sm:$0xff]
    %v3588 = vld [vmem:[#allocation6 + $0x2b0] sm:$0xff]
    %v3589 = vld [vmem:[#allocation6 + $0x2b8] sm:$0xff]
    %v3590 = vld [vmem:[#allocation6 + $0x2c0] sm:$0xff]
    %v3591 = vld [vmem:[#allocation6 + $0x2c8] sm:$0xff]
    %v3592 = vld [vmem:[#allocation6 + $0x2d0] sm:$0xff]
    %v3593 = vld [vmem:[#allocation6 + $0x2d8] sm:$0xff]
    %v3594 = vld [vmem:[#allocation6 + $0x2e0] sm:$0xff]
    %v3595 = vld [vmem:[#allocation6 + $0x2e8] sm:$0xff]
    %v3596 = vld [vmem:[#allocation6 + $0x2f0] sm:$0xff]
    %v3597 = vld [vmem:[#allocation6 + $0x2f8] sm:$0xff]
    %v3598 = vld [vmem:[#allocation6 + $0x300] sm:$0xff]
    %v3599 = vld [vmem:[#allocation6 + $0x308] sm:$0xff]
    %v3600 = vld [vmem:[#allocation6 + $0x310] sm:$0xff]
    %v3601 = vld [vmem:[#allocation6 + $0x318] sm:$0xff]
    %v3602 = vld [vmem:[#allocation6 + $0x320] sm:$0xff]
    %v3603 = vld [vmem:[#allocation6 + $0x328] sm:$0xff]
    %v3604 = vld [vmem:[#allocation6 + $0x330] sm:$0xff]
    %v3605 = vld [vmem:[#allocation6 + $0x338] sm:$0xff]
    %v3606 = vld [vmem:[#allocation6 + $0x340] sm:$0xff]
    %v3607 = vld [vmem:[#allocation6 + $0x348] sm:$0xff]
    %v3608 = vld [vmem:[#allocation6 + $0x350] sm:$0xff]
    %v3609 = vld [vmem:[#allocation6 + $0x358] sm:$0xff]
    %v3610 = vld [vmem:[#allocation6 + $0x360] sm:$0xff]
    %v3611 = vld [vmem:[#allocation6 + $0x368] sm:$0xff]
    %v3612 = vld [vmem:[#allocation6 + $0x370] sm:$0xff]
    %v3613 = vld [vmem:[#allocation6 + $0x378] sm:$0xff]
    %v3614 = vld [vmem:[#allocation6 + $0x380] sm:$0xff]
    %v3615 = vld [vmem:[#allocation6 + $0x388] sm:$0xff]
    %v3616 = vld [vmem:[#allocation6 + $0x390] sm:$0xff]
    %v3617 = vld [vmem:[#allocation6 + $0x398] sm:$0xff]
    %v3618 = vld [vmem:[#allocation6 + $0x3a0] sm:$0xff]
    %v3619 = vld [vmem:[#allocation6 + $0x3a8] sm:$0xff]
    %v3620 = vld [vmem:[#allocation6 + $0x3b0] sm:$0xff]
    %v3621 = vld [vmem:[#allocation6 + $0x3b8] sm:$0xff]
    %v3622 = vld [vmem:[#allocation6 + $0x3c0] sm:$0xff]
    %v3623 = vld [vmem:[#allocation6 + $0x3c8] sm:$0xff]
    %v3624 = vld [vmem:[#allocation6 + $0x3d0] sm:$0xff]
    %v3625 = vld [vmem:[#allocation6 + $0x3d8] sm:$0xff]
    %v3626 = vld [vmem:[#allocation6 + $0x3e0] sm:$0xff]
    %v3627 = vld [vmem:[#allocation6 + $0x3e8] sm:$0xff]
    %v3628 = vld [vmem:[#allocation6 + $0x3f0] sm:$0xff]
    %v3629 = vld [vmem:[#allocation6 + $0x3f8] sm:$0xff]
    %v3630 = vlaneseq
    %v3631 = vshrl.u32 %v3630, 7
    %v3632 = vsub.s32 4, %v3631
    %v3633 = vrot.slane %v243, %v3632
    %v3634 = vlaneseq
    %v3635 = vshrl.u32 %v3634, 7
    %v3636 = vsub.s32 4, %v3635
    %v3637 = vrot.slane %v244, %v3636
    %v3638 = vlaneseq
    %v3639 = vshrl.u32 %v3638, 7
    %v3640 = vsub.s32 4, %v3639
    %v3641 = vrot.slane %v245, %v3640
    %v3642 = vlaneseq
    %v3643 = vshrl.u32 %v3642, 7
    %v3644 = vsub.s32 4, %v3643
    %v3645 = vrot.slane %v246, %v3644
    %3646 = vmatprep.subr.bf16.mxu0 %v3503
    %3647 = vmatpush1.bf16.msra.mxu0 %v3502
    %3648 = vmatprep.subr.bf16.mxu0 %v3507
    %3649 = vmatpush1.bf16.msra.mxu0 %v3506
    %3650 = vmatprep.subr.bf16.mxu0 %v3511
    %3651 = vmatpush1.bf16.msra.mxu0 %v3510
    %3652 = vmatprep.subr.bf16.mxu0 %v3515
    %3653 = vmatpush1.bf16.msra.mxu0 %v3514
    %3654 = vmatprep.subr.bf16.mxu0 %v3519
    %3655 = vmatpush1.bf16.msra.mxu0 %v3518
    %3656 = vmatprep.subr.bf16.mxu0 %v3523
    %3657 = vmatpush1.bf16.msra.mxu0 %v3522
    %3658 = vmatprep.subr.bf16.mxu0 %v3527
    %3659 = vmatpush1.bf16.msra.mxu0 %v3526
    %3660 = vmatprep.subr.bf16.mxu0 %v3531
    %3661 = vmatpush1.bf16.msra.mxu0 %v3530
    %3662 = vmatprep.subr.bf16.mxu0 %v3535
    %3663 = vmatpush1.bf16.msra.mxu0 %v3534
    %3664 = vmatprep.subr.bf16.mxu0 %v3539
    %3665 = vmatpush1.bf16.msra.mxu0 %v3538
    %3666 = vmatprep.subr.bf16.mxu0 %v3543
    %3667 = vmatpush1.bf16.msra.mxu0 %v3542
    %3668 = vmatprep.subr.bf16.mxu0 %v3547
    %3669 = vmatpush1.bf16.msra.mxu0 %v3546
    %3670 = vmatprep.subr.bf16.mxu0 %v3551
    %3671 = vmatpush1.bf16.msra.mxu0 %v3550
    %3672 = vmatprep.subr.bf16.mxu0 %v3555
    %3673 = vmatpush1.bf16.msra.mxu0 %v3554
    %3674 = vmatprep.subr.bf16.mxu0 %v3559
    %3675 = vmatpush1.bf16.msra.mxu0 %v3558
    %3676 = vmatprep.subr.bf16.mxu0 %v3563
    %3677 = vmatpush1.bf16.msra.mxu0 %v3562
    %3678 = vmatprep.mubr.bf16.mxu0 %v3499
    %3679 = vmatmul.mubr.bf16.gmra.mrb[0].mxu0 %v3498
    %v3680 = vpop.f32.mrb[0].mxu0
    %v3681 = vadd.f32 %v3633, %v3680
    %v3682 = vpop.f32.mrb[0].mxu0
    %v3683 = vadd.f32 %v3637, %v3682
    %v3684 = vpop.f32.mrb[0].mxu0
    %v3685 = vpop.f32.mrb[0].mxu0
    %3686 = vdwg.mxu0
    %3687 = vmatprep.subr.bf16.mxu0 %v3567
    %3688 = vmatpush1.bf16.msra.mxu0 %v3566
    %3689 = vmatprep.subr.bf16.mxu0 %v3571
    %3690 = vmatpush1.bf16.msra.mxu0 %v3570
    %3691 = vmatprep.subr.bf16.mxu0 %v3575
    %3692 = vmatpush1.bf16.msra.mxu0 %v3574
    %3693 = vmatprep.subr.bf16.mxu0 %v3579
    %3694 = vmatpush1.bf16.msra.mxu0 %v3578
    %3695 = vmatprep.subr.bf16.mxu0 %v3583
    %3696 = vmatpush1.bf16.msra.mxu0 %v3582
    %3697 = vmatprep.subr.bf16.mxu0 %v3587
    %3698 = vmatpush1.bf16.msra.mxu0 %v3586
    %3699 = vmatprep.subr.bf16.mxu0 %v3591
    %3700 = vmatpush1.bf16.msra.mxu0 %v3590
    %3701 = vmatprep.subr.bf16.mxu0 %v3595
    %3702 = vmatpush1.bf16.msra.mxu0 %v3594
    %3703 = vmatprep.subr.bf16.mxu0 %v3599
    %3704 = vmatpush1.bf16.msra.mxu0 %v3598
    %3705 = vmatprep.subr.bf16.mxu0 %v3603
    %3706 = vmatpush1.bf16.msra.mxu0 %v3602
    %3707 = vmatprep.subr.bf16.mxu0 %v3607
    %3708 = vmatpush1.bf16.msra.mxu0 %v3606
    %3709 = vmatprep.subr.bf16.mxu0 %v3611
    %3710 = vmatpush1.bf16.msra.mxu0 %v3610
    %3711 = vmatprep.subr.bf16.mxu0 %v3615
    %3712 = vmatpush1.bf16.msra.mxu0 %v3614
    %3713 = vmatprep.subr.bf16.mxu0 %v3619
    %3714 = vmatpush1.bf16.msra.mxu0 %v3618
    %3715 = vmatprep.subr.bf16.mxu0 %v3623
    %3716 = vmatpush1.bf16.msra.mxu0 %v3622
    %3717 = vmatprep.subr.bf16.mxu0 %v3627
    %3718 = vmatpush1.bf16.msra.mxu0 %v3626
    %3719 = vmatprep.mubr.bf16.mxu0 %v3501
    %3720 = vmatmul.mubr.bf16.gmra.mrb[0].mxu0 %v3500
    %v3721 = vpop.f32.mrb[0].mxu0
    %v3722 = vadd.f32 %v3681, %v3721
    %v3723 = vpop.f32.mrb[0].mxu0
    %v3724 = vadd.f32 %v3683, %v3723
    %v3725 = vpop.f32.mrb[0].mxu0
    %v3726 = vpop.f32.mrb[0].mxu0
    %3727 = vdwg.mxu0
    %3728 = vmatprep.subr.bf16.mxu0 %v3505
    %3729 = vmatpush1.bf16.msra.mxu0 %v3504
    %3730 = vmatprep.subr.bf16.mxu0 %v3509
    %3731 = vmatpush1.bf16.msra.mxu0 %v3508
    %3732 = vmatprep.subr.bf16.mxu0 %v3513
    %3733 = vmatpush1.bf16.msra.mxu0 %v3512
    %3734 = vmatprep.subr.bf16.mxu0 %v3517
    %3735 = vmatpush1.bf16.msra.mxu0 %v3516
    %3736 = vmatprep.subr.bf16.mxu0 %v3521
    %3737 = vmatpush1.bf16.msra.mxu0 %v3520
    %3738 = vmatprep.subr.bf16.mxu0 %v3525
    %3739 = vmatpush1.bf16.msra.mxu0 %v3524
    %3740 = vmatprep.subr.bf16.mxu0 %v3529
    %3741 = vmatpush1.bf16.msra.mxu0 %v3528
    %3742 = vmatprep.subr.bf16.mxu0 %v3533
    %3743 = vmatpush1.bf16.msra.mxu0 %v3532
    %3744 = vmatprep.subr.bf16.mxu0 %v3537
    %3745 = vmatpush1.bf16.msra.mxu0 %v3536
    %3746 = vmatprep.subr.bf16.mxu0 %v3541
    %3747 = vmatpush1.bf16.msra.mxu0 %v3540
    %3748 = vmatprep.subr.bf16.mxu0 %v3545
    %3749 = vmatpush1.bf16.msra.mxu0 %v3544
    %3750 = vmatprep.subr.bf16.mxu0 %v3549
    %3751 = vmatpush1.bf16.msra.mxu0 %v3548
    %3752 = vmatprep.subr.bf16.mxu0 %v3553
    %3753 = vmatpush1.bf16.msra.mxu0 %v3552
    %3754 = vmatprep.subr.bf16.mxu0 %v3557
    %3755 = vmatpush1.bf16.msra.mxu0 %v3556
    %3756 = vmatprep.subr.bf16.mxu0 %v3561
    %3757 = vmatpush1.bf16.msra.mxu0 %v3560
    %3758 = vmatprep.subr.bf16.mxu0 %v3565
    %3759 = vmatpush1.bf16.msra.mxu0 %v3564
    %3760 = vmatprep.mubr.bf16.mxu0 %v3499
    %3761 = vmatmul.mubr.bf16.gmra.mrb[0].mxu0 %v3498
    %v3762 = vpop.f32.mrb[0].mxu0
    %v3763 = vadd.f32 %v3641, %v3762
    %v3764 = vpop.f32.mrb[0].mxu0
    %v3765 = vadd.f32 %v3645, %v3764
    %v3766 = vpop.f32.mrb[0].mxu0
    %v3767 = vpop.f32.mrb[0].mxu0
    %3768 = vdwg.mxu0
    %3769 = vmatprep.subr.bf16.mxu0 %v3569
    %3770 = vmatpush1.bf16.msra.mxu0 %v3568
    %3771 = vmatprep.subr.bf16.mxu0 %v3573
    %3772 = vmatpush1.bf16.msra.mxu0 %v3572
    %3773 = vmatprep.subr.bf16.mxu0 %v3577
    %3774 = vmatpush1.bf16.msra.mxu0 %v3576
    %3775 = vmatprep.subr.bf16.mxu0 %v3581
    %3776 = vmatpush1.bf16.msra.mxu0 %v3580
    %3777 = vmatprep.subr.bf16.mxu0 %v3585
    %3778 = vmatpush1.bf16.msra.mxu0 %v3584
    %3779 = vmatprep.subr.bf16.mxu0 %v3589
    %3780 = vmatpush1.bf16.msra.mxu0 %v3588
    %3781 = vmatprep.subr.bf16.mxu0 %v3593
    %3782 = vmatpush1.bf16.msra.mxu0 %v3592
    %3783 = vmatprep.subr.bf16.mxu0 %v3597
    %3784 = vmatpush1.bf16.msra.mxu0 %v3596
    %3785 = vmatprep.subr.bf16.mxu0 %v3601
    %3786 = vmatpush1.bf16.msra.mxu0 %v3600
    %3787 = vmatprep.subr.bf16.mxu0 %v3605
    %3788 = vmatpush1.bf16.msra.mxu0 %v3604
    %3789 = vmatprep.subr.bf16.mxu0 %v3609
    %3790 = vmatpush1.bf16.msra.mxu0 %v3608
    %3791 = vmatprep.subr.bf16.mxu0 %v3613
    %3792 = vmatpush1.bf16.msra.mxu0 %v3612
    %3793 = vmatprep.subr.bf16.mxu0 %v3617
    %3794 = vmatpush1.bf16.msra.mxu0 %v3616
    %3795 = vmatprep.subr.bf16.mxu0 %v3621
    %3796 = vmatpush1.bf16.msra.mxu0 %v3620
    %3797 = vmatprep.subr.bf16.mxu0 %v3625
    %3798 = vmatpush1.bf16.msra.mxu0 %v3624
    %3799 = vmatprep.subr.bf16.mxu0 %v3629
    %3800 = vmatpush1.bf16.msra.mxu0 %v3628
    %3801 = vmatprep.mubr.bf16.mxu0 %v3501
    %3802 = vmatmul.mubr.bf16.gmra.mrb[0].mxu0 %v3500
    %v3803 = vpop.f32.mrb[0].mxu0
    %v3804 = vadd.f32 %v3763, %v3803
    %v3805 = vpop.f32.mrb[0].mxu0
    %v3806 = vadd.f32 %v3765, %v3805
    %v3807 = vpop.f32.mrb[0].mxu0
    %v3808 = vpop.f32.mrb[0].mxu0
    %3809 = vdwg.mxu0
    %v3810 = vmax.f32 %v3722, 0.0
    %v3811 = vmax.f32 %v3724, 0.0
    %v3812 = vmax.f32 %v3804, 0.0
    %v3813 = vmax.f32 %v3806, 0.0
    %s3814 = sshll.u32 %s2859, 4
    %3815 = dma.done %s208, %s3814
    %v3816 = vpack.c.bf16 %v3810, %v3810
    %v3817 = vpack.c.bf16 %v3811, %v3811
    %v3818 = vpack.c.bf16 %v3812, %v3812
    %v3819 = vpack.c.bf16 %v3813, %v3813
    %v3820 = vld [vmem:[#allocation7] sm:$0xff]
    %v3821 = vld [vmem:[#allocation7 + $0x8] sm:$0xff]
    %v3822 = vld [vmem:[#allocation7 + $0x10] sm:$0xff]
    %v3823 = vld [vmem:[#allocation7 + $0x18] sm:$0xff]
    %v3824 = vld [vmem:[#allocation7 + $0x20] sm:$0xff]
    %v3825 = vld [vmem:[#allocation7 + $0x28] sm:$0xff]
    %v3826 = vld [vmem:[#allocation7 + $0x30] sm:$0xff]
    %v3827 = vld [vmem:[#allocation7 + $0x38] sm:$0xff]
    %v3828 = vld [vmem:[#allocation7 + $0x40] sm:$0xff]
    %v3829 = vld [vmem:[#allocation7 + $0x48] sm:$0xff]
    %v3830 = vld [vmem:[#allocation7 + $0x50] sm:$0xff]
    %v3831 = vld [vmem:[#allocation7 + $0x58] sm:$0xff]
    %v3832 = vld [vmem:[#allocation7 + $0x60] sm:$0xff]
    %v3833 = vld [vmem:[#allocation7 + $0x68] sm:$0xff]
    %v3834 = vld [vmem:[#allocation7 + $0x70] sm:$0xff]
    %v3835 = vld [vmem:[#allocation7 + $0x78] sm:$0xff]
    %v3836 = vld [vmem:[#allocation7 + $0x80] sm:$0xff]
    %v3837 = vld [vmem:[#allocation7 + $0x88] sm:$0xff]
    %v3838 = vld [vmem:[#allocation7 + $0x90] sm:$0xff]
    %v3839 = vld [vmem:[#allocation7 + $0x98] sm:$0xff]
    %v3840 = vld [vmem:[#allocation7 + $0xa0] sm:$0xff]
    %v3841 = vld [vmem:[#allocation7 + $0xa8] sm:$0xff]
    %v3842 = vld [vmem:[#allocation7 + $0xb0] sm:$0xff]
    %v3843 = vld [vmem:[#allocation7 + $0xb8] sm:$0xff]
    %v3844 = vld [vmem:[#allocation7 + $0xc0] sm:$0xff]
    %v3845 = vld [vmem:[#allocation7 + $0xc8] sm:$0xff]
    %v3846 = vld [vmem:[#allocation7 + $0xd0] sm:$0xff]
    %v3847 = vld [vmem:[#allocation7 + $0xd8] sm:$0xff]
    %v3848 = vld [vmem:[#allocation7 + $0xe0] sm:$0xff]
    %v3849 = vld [vmem:[#allocation7 + $0xe8] sm:$0xff]
    %v3850 = vld [vmem:[#allocation7 + $0xf0] sm:$0xff]
    %v3851 = vld [vmem:[#allocation7 + $0xf8] sm:$0xff]
    %v3852 = vld [vmem:[#allocation7 + $0x100] sm:$0xff]
    %v3853 = vld [vmem:[#allocation7 + $0x108] sm:$0xff]
    %v3854 = vld [vmem:[#allocation7 + $0x110] sm:$0xff]
    %v3855 = vld [vmem:[#allocation7 + $0x118] sm:$0xff]
    %v3856 = vld [vmem:[#allocation7 + $0x120] sm:$0xff]
    %v3857 = vld [vmem:[#allocation7 + $0x128] sm:$0xff]
    %v3858 = vld [vmem:[#allocation7 + $0x130] sm:$0xff]
    %v3859 = vld [vmem:[#allocation7 + $0x138] sm:$0xff]
    %v3860 = vld [vmem:[#allocation7 + $0x140] sm:$0xff]
    %v3861 = vld [vmem:[#allocation7 + $0x148] sm:$0xff]
    %v3862 = vld [vmem:[#allocation7 + $0x150] sm:$0xff]
    %v3863 = vld [vmem:[#allocation7 + $0x158] sm:$0xff]
    %v3864 = vld [vmem:[#allocation7 + $0x160] sm:$0xff]
    %v3865 = vld [vmem:[#allocation7 + $0x168] sm:$0xff]
    %v3866 = vld [vmem:[#allocation7 + $0x170] sm:$0xff]
    %v3867 = vld [vmem:[#allocation7 + $0x178] sm:$0xff]
    %v3868 = vld [vmem:[#allocation7 + $0x180] sm:$0xff]
    %v3869 = vld [vmem:[#allocation7 + $0x188] sm:$0xff]
    %v3870 = vld [vmem:[#allocation7 + $0x190] sm:$0xff]
    %v3871 = vld [vmem:[#allocation7 + $0x198] sm:$0xff]
    %v3872 = vld [vmem:[#allocation7 + $0x1a0] sm:$0xff]
    %v3873 = vld [vmem:[#allocation7 + $0x1a8] sm:$0xff]
    %v3874 = vld [vmem:[#allocation7 + $0x1b0] sm:$0xff]
    %v3875 = vld [vmem:[#allocation7 + $0x1b8] sm:$0xff]
    %v3876 = vld [vmem:[#allocation7 + $0x1c0] sm:$0xff]
    %v3877 = vld [vmem:[#allocation7 + $0x1c8] sm:$0xff]
    %v3878 = vld [vmem:[#allocation7 + $0x1d0] sm:$0xff]
    %v3879 = vld [vmem:[#allocation7 + $0x1d8] sm:$0xff]
    %v3880 = vld [vmem:[#allocation7 + $0x1e0] sm:$0xff]
    %v3881 = vld [vmem:[#allocation7 + $0x1e8] sm:$0xff]
    %v3882 = vld [vmem:[#allocation7 + $0x1f0] sm:$0xff]
    %v3883 = vld [vmem:[#allocation7 + $0x1f8] sm:$0xff]
    %v3884 = vld [vmem:[#allocation7 + $0x200] sm:$0xff]
    %v3885 = vld [vmem:[#allocation7 + $0x208] sm:$0xff]
    %v3886 = vld [vmem:[#allocation7 + $0x210] sm:$0xff]
    %v3887 = vld [vmem:[#allocation7 + $0x218] sm:$0xff]
    %v3888 = vld [vmem:[#allocation7 + $0x220] sm:$0xff]
    %v3889 = vld [vmem:[#allocation7 + $0x228] sm:$0xff]
    %v3890 = vld [vmem:[#allocation7 + $0x230] sm:$0xff]
    %v3891 = vld [vmem:[#allocation7 + $0x238] sm:$0xff]
    %v3892 = vld [vmem:[#allocation7 + $0x240] sm:$0xff]
    %v3893 = vld [vmem:[#allocation7 + $0x248] sm:$0xff]
    %v3894 = vld [vmem:[#allocation7 + $0x250] sm:$0xff]
    %v3895 = vld [vmem:[#allocation7 + $0x258] sm:$0xff]
    %v3896 = vld [vmem:[#allocation7 + $0x260] sm:$0xff]
    %v3897 = vld [vmem:[#allocation7 + $0x268] sm:$0xff]
    %v3898 = vld [vmem:[#allocation7 + $0x270] sm:$0xff]
    %v3899 = vld [vmem:[#allocation7 + $0x278] sm:$0xff]
    %v3900 = vld [vmem:[#allocation7 + $0x280] sm:$0xff]
    %v3901 = vld [vmem:[#allocation7 + $0x288] sm:$0xff]
    %v3902 = vld [vmem:[#allocation7 + $0x290] sm:$0xff]
    %v3903 = vld [vmem:[#allocation7 + $0x298] sm:$0xff]
    %v3904 = vld [vmem:[#allocation7 + $0x2a0] sm:$0xff]
    %v3905 = vld [vmem:[#allocation7 + $0x2a8] sm:$0xff]
    %v3906 = vld [vmem:[#allocation7 + $0x2b0] sm:$0xff]
    %v3907 = vld [vmem:[#allocation7 + $0x2b8] sm:$0xff]
    %v3908 = vld [vmem:[#allocation7 + $0x2c0] sm:$0xff]
    %v3909 = vld [vmem:[#allocation7 + $0x2c8] sm:$0xff]
    %v3910 = vld [vmem:[#allocation7 + $0x2d0] sm:$0xff]
    %v3911 = vld [vmem:[#allocation7 + $0x2d8] sm:$0xff]
    %v3912 = vld [vmem:[#allocation7 + $0x2e0] sm:$0xff]
    %v3913 = vld [vmem:[#allocation7 + $0x2e8] sm:$0xff]
    %v3914 = vld [vmem:[#allocation7 + $0x2f0] sm:$0xff]
    %v3915 = vld [vmem:[#allocation7 + $0x2f8] sm:$0xff]
    %v3916 = vld [vmem:[#allocation7 + $0x300] sm:$0xff]
    %v3917 = vld [vmem:[#allocation7 + $0x308] sm:$0xff]
    %v3918 = vld [vmem:[#allocation7 + $0x310] sm:$0xff]
    %v3919 = vld [vmem:[#allocation7 + $0x318] sm:$0xff]
    %v3920 = vld [vmem:[#allocation7 + $0x320] sm:$0xff]
    %v3921 = vld [vmem:[#allocation7 + $0x328] sm:$0xff]
    %v3922 = vld [vmem:[#allocation7 + $0x330] sm:$0xff]
    %v3923 = vld [vmem:[#allocation7 + $0x338] sm:$0xff]
    %v3924 = vld [vmem:[#allocation7 + $0x340] sm:$0xff]
    %v3925 = vld [vmem:[#allocation7 + $0x348] sm:$0xff]
    %v3926 = vld [vmem:[#allocation7 + $0x350] sm:$0xff]
    %v3927 = vld [vmem:[#allocation7 + $0x358] sm:$0xff]
    %v3928 = vld [vmem:[#allocation7 + $0x360] sm:$0xff]
    %v3929 = vld [vmem:[#allocation7 + $0x368] sm:$0xff]
    %v3930 = vld [vmem:[#allocation7 + $0x370] sm:$0xff]
    %v3931 = vld [vmem:[#allocation7 + $0x378] sm:$0xff]
    %v3932 = vld [vmem:[#allocation7 + $0x380] sm:$0xff]
    %v3933 = vld [vmem:[#allocation7 + $0x388] sm:$0xff]
    %v3934 = vld [vmem:[#allocation7 + $0x390] sm:$0xff]
    %v3935 = vld [vmem:[#allocation7 + $0x398] sm:$0xff]
    %v3936 = vld [vmem:[#allocation7 + $0x3a0] sm:$0xff]
    %v3937 = vld [vmem:[#allocation7 + $0x3a8] sm:$0xff]
    %v3938 = vld [vmem:[#allocation7 + $0x3b0] sm:$0xff]
    %v3939 = vld [vmem:[#allocation7 + $0x3b8] sm:$0xff]
    %v3940 = vld [vmem:[#allocation7 + $0x3c0] sm:$0xff]
    %v3941 = vld [vmem:[#allocation7 + $0x3c8] sm:$0xff]
    %v3942 = vld [vmem:[#allocation7 + $0x3d0] sm:$0xff]
    %v3943 = vld [vmem:[#allocation7 + $0x3d8] sm:$0xff]
    %v3944 = vld [vmem:[#allocation7 + $0x3e0] sm:$0xff]
    %v3945 = vld [vmem:[#allocation7 + $0x3e8] sm:$0xff]
    %v3946 = vld [vmem:[#allocation7 + $0x3f0] sm:$0xff]
    %v3947 = vld [vmem:[#allocation7 + $0x3f8] sm:$0xff]
    %v3948 = vlaneseq
    %v3949 = vshrl.u32 %v3948, 7
    %v3950 = vsub.s32 5, %v3949
    %v3951 = vrot.slane %v243, %v3950
    %v3952 = vlaneseq
    %v3953 = vshrl.u32 %v3952, 7
    %v3954 = vsub.s32 5, %v3953
    %v3955 = vrot.slane %v244, %v3954
    %v3956 = vlaneseq
    %v3957 = vshrl.u32 %v3956, 7
    %v3958 = vsub.s32 5, %v3957
    %v3959 = vrot.slane %v245, %v3958
    %v3960 = vlaneseq
    %v3961 = vshrl.u32 %v3960, 7
    %v3962 = vsub.s32 5, %v3961
    %v3963 = vrot.slane %v246, %v3962
    %3964 = vmatprep.subr.bf16.mxu0 %v3821
    %3965 = vmatpush1.bf16.msra.mxu0 %v3820
    %3966 = vmatprep.subr.bf16.mxu0 %v3825
    %3967 = vmatpush1.bf16.msra.mxu0 %v3824
    %3968 = vmatprep.subr.bf16.mxu0 %v3829
    %3969 = vmatpush1.bf16.msra.mxu0 %v3828
    %3970 = vmatprep.subr.bf16.mxu0 %v3833
    %3971 = vmatpush1.bf16.msra.mxu0 %v3832
    %3972 = vmatprep.subr.bf16.mxu0 %v3837
    %3973 = vmatpush1.bf16.msra.mxu0 %v3836
    %3974 = vmatprep.subr.bf16.mxu0 %v3841
    %3975 = vmatpush1.bf16.msra.mxu0 %v3840
    %3976 = vmatprep.subr.bf16.mxu0 %v3845
    %3977 = vmatpush1.bf16.msra.mxu0 %v3844
    %3978 = vmatprep.subr.bf16.mxu0 %v3849
    %3979 = vmatpush1.bf16.msra.mxu0 %v3848
    %3980 = vmatprep.subr.bf16.mxu0 %v3853
    %3981 = vmatpush1.bf16.msra.mxu0 %v3852
    %3982 = vmatprep.subr.bf16.mxu0 %v3857
    %3983 = vmatpush1.bf16.msra.mxu0 %v3856
    %3984 = vmatprep.subr.bf16.mxu0 %v3861
    %3985 = vmatpush1.bf16.msra.mxu0 %v3860
    %3986 = vmatprep.subr.bf16.mxu0 %v3865
    %3987 = vmatpush1.bf16.msra.mxu0 %v3864
    %3988 = vmatprep.subr.bf16.mxu0 %v3869
    %3989 = vmatpush1.bf16.msra.mxu0 %v3868
    %3990 = vmatprep.subr.bf16.mxu0 %v3873
    %3991 = vmatpush1.bf16.msra.mxu0 %v3872
    %3992 = vmatprep.subr.bf16.mxu0 %v3877
    %3993 = vmatpush1.bf16.msra.mxu0 %v3876
    %3994 = vmatprep.subr.bf16.mxu0 %v3881
    %3995 = vmatpush1.bf16.msra.mxu0 %v3880
    %3996 = vmatprep.mubr.bf16.mxu0 %v3817
    %3997 = vmatmul.mubr.bf16.gmra.mrb[0].mxu0 %v3816
    %v3998 = vpop.f32.mrb[0].mxu0
    %v3999 = vadd.f32 %v3951, %v3998
    %v4000 = vpop.f32.mrb[0].mxu0
    %v4001 = vadd.f32 %v3955, %v4000
    %v4002 = vpop.f32.mrb[0].mxu0
    %v4003 = vpop.f32.mrb[0].mxu0
    %4004 = vdwg.mxu0
    %4005 = vmatprep.subr.bf16.mxu0 %v3885
    %4006 = vmatpush1.bf16.msra.mxu0 %v3884
    %4007 = vmatprep.subr.bf16.mxu0 %v3889
    %4008 = vmatpush1.bf16.msra.mxu0 %v3888
    %4009 = vmatprep.subr.bf16.mxu0 %v3893
    %4010 = vmatpush1.bf16.msra.mxu0 %v3892
    %4011 = vmatprep.subr.bf16.mxu0 %v3897
    %4012 = vmatpush1.bf16.msra.mxu0 %v3896
    %4013 = vmatprep.subr.bf16.mxu0 %v3901
    %4014 = vmatpush1.bf16.msra.mxu0 %v3900
    %4015 = vmatprep.subr.bf16.mxu0 %v3905
    %4016 = vmatpush1.bf16.msra.mxu0 %v3904
    %4017 = vmatprep.subr.bf16.mxu0 %v3909
    %4018 = vmatpush1.bf16.msra.mxu0 %v3908
    %4019 = vmatprep.subr.bf16.mxu0 %v3913
    %4020 = vmatpush1.bf16.msra.mxu0 %v3912
    %4021 = vmatprep.subr.bf16.mxu0 %v3917
    %4022 = vmatpush1.bf16.msra.mxu0 %v3916
    %4023 = vmatprep.subr.bf16.mxu0 %v3921
    %4024 = vmatpush1.bf16.msra.mxu0 %v3920
    %4025 = vmatprep.subr.bf16.mxu0 %v3925
    %4026 = vmatpush1.bf16.msra.mxu0 %v3924
    %4027 = vmatprep.subr.bf16.mxu0 %v3929
    %4028 = vmatpush1.bf16.msra.mxu0 %v3928
    %4029 = vmatprep.subr.bf16.mxu0 %v3933
    %4030 = vmatpush1.bf16.msra.mxu0 %v3932
    %4031 = vmatprep.subr.bf16.mxu0 %v3937
    %4032 = vmatpush1.bf16.msra.mxu0 %v3936
    %4033 = vmatprep.subr.bf16.mxu0 %v3941
    %4034 = vmatpush1.bf16.msra.mxu0 %v3940
    %4035 = vmatprep.subr.bf16.mxu0 %v3945
    %4036 = vmatpush1.bf16.msra.mxu0 %v3944
    %4037 = vmatprep.mubr.bf16.mxu0 %v3819
    %4038 = vmatmul.mubr.bf16.gmra.mrb[0].mxu0 %v3818
    %v4039 = vpop.f32.mrb[0].mxu0
    %v4040 = vadd.f32 %v3999, %v4039
    %v4041 = vpop.f32.mrb[0].mxu0
    %v4042 = vadd.f32 %v4001, %v4041
    %v4043 = vpop.f32.mrb[0].mxu0
    %v4044 = vpop.f32.mrb[0].mxu0
    %4045 = vdwg.mxu0
    %4046 = vmatprep.subr.bf16.mxu0 %v3823
    %4047 = vmatpush1.bf16.msra.mxu0 %v3822
    %4048 = vmatprep.subr.bf16.mxu0 %v3827
    %4049 = vmatpush1.bf16.msra.mxu0 %v3826
    %4050 = vmatprep.subr.bf16.mxu0 %v3831
    %4051 = vmatpush1.bf16.msra.mxu0 %v3830
    %4052 = vmatprep.subr.bf16.mxu0 %v3835
    %4053 = vmatpush1.bf16.msra.mxu0 %v3834
    %4054 = vmatprep.subr.bf16.mxu0 %v3839
    %4055 = vmatpush1.bf16.msra.mxu0 %v3838
    %4056 = vmatprep.subr.bf16.mxu0 %v3843
    %4057 = vmatpush1.bf16.msra.mxu0 %v3842
    %4058 = vmatprep.subr.bf16.mxu0 %v3847
    %4059 = vmatpush1.bf16.msra.mxu0 %v3846
    %4060 = vmatprep.subr.bf16.mxu0 %v3851
    %4061 = vmatpush1.bf16.msra.mxu0 %v3850
    %4062 = vmatprep.subr.bf16.mxu0 %v3855
    %4063 = vmatpush1.bf16.msra.mxu0 %v3854
    %4064 = vmatprep.subr.bf16.mxu0 %v3859
    %4065 = vmatpush1.bf16.msra.mxu0 %v3858
    %4066 = vmatprep.subr.bf16.mxu0 %v3863
    %4067 = vmatpush1.bf16.msra.mxu0 %v3862
    %4068 = vmatprep.subr.bf16.mxu0 %v3867
    %4069 = vmatpush1.bf16.msra.mxu0 %v3866
    %4070 = vmatprep.subr.bf16.mxu0 %v3871
    %4071 = vmatpush1.bf16.msra.mxu0 %v3870
    %4072 = vmatprep.subr.bf16.mxu0 %v3875
    %4073 = vmatpush1.bf16.msra.mxu0 %v3874
    %4074 = vmatprep.subr.bf16.mxu0 %v3879
    %4075 = vmatpush1.bf16.msra.mxu0 %v3878
    %4076 = vmatprep.subr.bf16.mxu0 %v3883
    %4077 = vmatpush1.bf16.msra.mxu0 %v3882
    %4078 = vmatprep.mubr.bf16.mxu0 %v3817
    %4079 = vmatmul.mubr.bf16.gmra.mrb[0].mxu0 %v3816
    %v4080 = vpop.f32.mrb[0].mxu0
    %v4081 = vadd.f32 %v3959, %v4080
    %v4082 = vpop.f32.mrb[0].mxu0
    %v4083 = vadd.f32 %v3963, %v4082
    %v4084 = vpop.f32.mrb[0].mxu0
    %v4085 = vpop.f32.mrb[0].mxu0
    %4086 = vdwg.mxu0
    %4087 = vmatprep.subr.bf16.mxu0 %v3887
    %4088 = vmatpush1.bf16.msra.mxu0 %v3886
    %4089 = vmatprep.subr.bf16.mxu0 %v3891
    %4090 = vmatpush1.bf16.msra.mxu0 %v3890
    %4091 = vmatprep.subr.bf16.mxu0 %v3895
    %4092 = vmatpush1.bf16.msra.mxu0 %v3894
    %4093 = vmatprep.subr.bf16.mxu0 %v3899
    %4094 = vmatpush1.bf16.msra.mxu0 %v3898
    %4095 = vmatprep.subr.bf16.mxu0 %v3903
    %4096 = vmatpush1.bf16.msra.mxu0 %v3902
    %4097 = vmatprep.subr.bf16.mxu0 %v3907
    %4098 = vmatpush1.bf16.msra.mxu0 %v3906
    %4099 = vmatprep.subr.bf16.mxu0 %v3911
    %4100 = vmatpush1.bf16.msra.mxu0 %v3910
    %4101 = vmatprep.subr.bf16.mxu0 %v3915
    %4102 = vmatpush1.bf16.msra.mxu0 %v3914
    %4103 = vmatprep.subr.bf16.mxu0 %v3919
    %4104 = vmatpush1.bf16.msra.mxu0 %v3918
    %4105 = vmatprep.subr.bf16.mxu0 %v3923
    %4106 = vmatpush1.bf16.msra.mxu0 %v3922
    %4107 = vmatprep.subr.bf16.mxu0 %v3927
    %4108 = vmatpush1.bf16.msra.mxu0 %v3926
    %4109 = vmatprep.subr.bf16.mxu0 %v3931
    %4110 = vmatpush1.bf16.msra.mxu0 %v3930
    %4111 = vmatprep.subr.bf16.mxu0 %v3935
    %4112 = vmatpush1.bf16.msra.mxu0 %v3934
    %4113 = vmatprep.subr.bf16.mxu0 %v3939
    %4114 = vmatpush1.bf16.msra.mxu0 %v3938
    %4115 = vmatprep.subr.bf16.mxu0 %v3943
    %4116 = vmatpush1.bf16.msra.mxu0 %v3942
    %4117 = vmatprep.subr.bf16.mxu0 %v3947
    %4118 = vmatpush1.bf16.msra.mxu0 %v3946
    %4119 = vmatprep.mubr.bf16.mxu0 %v3819
    %4120 = vmatmul.mubr.bf16.gmra.mrb[0].mxu0 %v3818
    %v4121 = vpop.f32.mrb[0].mxu0
    %v4122 = vadd.f32 %v4081, %v4121
    %v4123 = vpop.f32.mrb[0].mxu0
    %v4124 = vadd.f32 %v4083, %v4123
    %v4125 = vpop.f32.mrb[0].mxu0
    %v4126 = vpop.f32.mrb[0].mxu0
    %4127 = vdwg.mxu0
    %v4128 = vmax.f32 %v4040, 0.0
    %v4129 = vmax.f32 %v4042, 0.0
    %v4130 = vmax.f32 %v4122, 0.0
    %v4131 = vmax.f32 %v4124, 0.0
    %v4132 = vlaneseq
    %v4133 = vshrl.u32 %v4132, 7
    %v4134 = vsub.s32 6, %v4133
    %v4135 = vrot.slane %v243, %v4134
    %v4136 = vlaneseq
    %v4137 = vshrl.u32 %v4136, 7
    %v4138 = vsub.s32 6, %v4137
    %v4139 = vrot.slane %v244, %v4138
    %v4140 = vlaneseq
    %v4141 = vshrl.u32 %v4140, 7
    %v4142 = vsub.s32 6, %v4141
    %v4143 = vrot.slane %v245, %v4142
    %v4144 = vlaneseq
    %v4145 = vshrl.u32 %v4144, 7
    %v4146 = vsub.s32 6, %v4145
    %v4147 = vrot.slane %v246, %v4146
    %v4148 = vmul.f32 %v4128, %v4135
    %v4149 = vmul.f32 %v4129, %v4139
    %v4150 = vmul.f32 %v4130, %v4143
    %v4151 = vmul.f32 %v4131, %v4147
    %v4152 = vadd.f32 %v4148, %v4149
    %v4153 = vadd.f32 %v4152, %v4150
    %v4154 = vadd.f32 %v4153, %v4151
    %4155 = vadd.xlane.f32.xlu0 %v4154
    %v4156 = vpop.xlane.xlu0 %4155
    %v4157 = vlaneseq
    %v4158 = vshrl.u32 %v4157, 7
    %v4159 = vsub.s32 7, %v4158
    %v4160 = vrot.slane %v243, %v4159
    %v4161 = vadd.f32 %v4156, %v4160
    %vm4162 = vcmask 7168
    %4163 = vst.msk [vmem:[%s11] sm:$0xff] %vm4162, %v4161
    %v4164 = vlaneseq
    %v4165 = vshrl.u32 %v4164, 7
    %v4166 = vcvt.s32.f32 %v4165
    %v4167 = vsel %vm4162, %v4161, -inf
    %v4168 = vrot.slane %v4167, 4
    %v4169 = vmax.f32 %v4167, %v4168
    %v4170 = vrot.slane %v4169, 2
    %v4171 = vmax.f32 %v4169, %v4170
    %v4172 = vrot.slane %v4171, 1
    %v4173 = vmax.f32 %v4171, %v4172
    %vm4174 = vcmp.ge.f32.partialorder %v4161, %v4173
    %v4175 = vsel %vm4174, %v4166, 8.0
    %v4176 = vsel %vm4162, %v4175, inf
    %v4177 = vrot.slane %v4176, 4
    %v4178 = vmin.f32 %v4176, %v4177
    %v4179 = vrot.slane %v4178, 2
    %v4180 = vmin.f32 %v4178, %v4179
    %v4181 = vrot.slane %v4180, 1
    %v4182 = vmin.f32 %v4180, %v4181
    %v4183 = vcvt.f32.s32.to.zero.pseudo %v4182
    %vm4184 = vcmask 0
    %4185 = vst.msk [vmem:[#allocation14] sm:$0x1] %vm4184, %v4183
    // Predicated region
    $region34: #{farmer_lstm_forward.1} parent=1 // pred_check
      _
    $region35: #{farmer_lstm_forward.1} parent=1 // pred_check_branch
      %4187 = sbr.rel (0) target = $region37
    $region36: #{farmer_lstm_forward.1} parent=1 // pred_region
      _
    $region37: #{farmer_lstm_forward.1} parent=1 // pred_fallthru
      _
    // Predicated region
    $region38: #{farmer_lstm_forward.1} parent=1 // pred_check
      _
    $region39: #{farmer_lstm_forward.1} parent=1 // pred_check_branch
      %4189 = sbr.rel (0) target = $region41
    $region40: #{farmer_lstm_forward.1} parent=1 // pred_region
      %s4191 = ssub.s32 16, 16
      %4192 = vsyncadd [#allocation11], %s4191
      %s4194 = sshll.u32 [#allocation14], 4
      %s4195 = int_to_ptr.vmem [resolvable:$true] %s4194
      %4197 = dma.vmem_to_hbm [thread:$0]  %s4195, 16, %s12, [#allocation11]
    $region41: #{farmer_lstm_forward.1} parent=1 // pred_fallthru
      _
    // Predicated region
    $region42: #{farmer_lstm_forward.1} parent=1 // pred_check
      _
    $region43: #{farmer_lstm_forward.1} parent=1 // pred_check_branch
      %4199 = sbr.rel (0) target = $region45
    $region44: #{farmer_lstm_forward.1} parent=1 // pred_region
      _
    $region45: #{farmer_lstm_forward.1} parent=1 // pred_fallthru
      _
    // Predicated region
    $region46: #{farmer_lstm_forward.1} parent=1 // pred_check
      _
    $region47: #{farmer_lstm_forward.1} parent=1 // pred_check_branch
      %4201 = sbr.rel (0) target = $region49
    $region48: #{farmer_lstm_forward.1} parent=1 // pred_region
      %4202 = dma.done [#allocation11], 16
    $region49: #{farmer_lstm_forward.1} parent=1 // pred_fallthru
      _
    %4203 = vsyncpa [#allocation10], 1
    %4204 = vsyncpa [#allocation13], 1
    %4205 = vsyncpa [#allocation11], 1
  %4206 = vsyncmov [#allocation8]
  %s4207 = vpop.sfrf %4206
  %p4208 = scmp.eq.s32.totalorder %s4207, 0
  %p4209 = pneg %p4208
  %4211 = shalt.err (%p4209)
  %s4212 = scalar_lea.sflag [#allocation8], 1
  %4213 = vsyncmov %s4212
  %s4214 = vpop.sfrf %4213
  %p4215 = scmp.eq.s32.totalorder %s4214, 0
  %p4216 = pneg %p4215
  %4218 = shalt.err (%p4216)
  %s4219 = scalar_lea.sflag [#allocation8], 2
  %4220 = vsyncmov %s4219
  %s4221 = vpop.sfrf %4220
  %p4222 = scmp.eq.s32.totalorder %s4221, 0
  %p4223 = pneg %p4222
  %4225 = shalt.err (%p4223)
  %s4226 = scalar_lea.sflag [#allocation8], 3
  %4227 = vsyncmov %s4226
  %s4228 = vpop.sfrf %4227
  %p4229 = scmp.eq.s32.totalorder %s4228, 0
  %p4230 = pneg %p4229
  %4232 = shalt.err (%p4230)
  %s4233 = scalar_lea.sflag [#allocation8], 4
  %4234 = vsyncmov %s4233
  %s4235 = vpop.sfrf %4234
  %p4236 = scmp.eq.s32.totalorder %s4235, 0
  %p4237 = pneg %p4236
  %4239 = shalt.err (%p4237)
  %s4240 = scalar_lea.sflag [#allocation8], 5
  %4241 = vsyncmov %s4240
  %s4242 = vpop.sfrf %4241
  %p4243 = scmp.eq.s32.totalorder %s4242, 0
  %p4244 = pneg %p4243
  %4246 = shalt.err (%p4244)

</llo_original>
